<compile_context>
chip_gen: v7x
topology: tpu7x:2x2x1
jax: 0.10.0
libtpu: 0.0.40
codegen_flags: <defaults>
</compile_context>

<pallas_src>
import functools

import jax
import jax.numpy as jnp
from jax.experimental import pallas as pl
from jax.experimental.pallas import tpu as pltpu


# ------------------------------------------------------------------ params ---

def _orthogonal(key, shape):
    """Mimics torch.nn.init.orthogonal_ (gain=1)."""
    rows, cols = shape
    a = jax.random.normal(key, (rows, cols), dtype=jnp.float32)
    if rows < cols:
        a = a.T
    q, r = jnp.linalg.qr(a)
    q = q * jnp.sign(jnp.diag(r))[None, :]
    if rows < cols:
        q = q.T
    return q.astype(jnp.float32)


def make_params(key, inputs_dim, outputs_dim, recurrent_N):
    """Deterministic params: orthogonal weights, zero biases, default LayerNorm.

    Weights are stored transposed vs. torch ((in, 4H) / (H, 4H)), gate columns
    in torch order [i, f, g, o]; the wrapper reorders to the kernel's layout.
    """
    H = outputs_dim
    layer_params = []
    keys = jax.random.split(key, 2 * recurrent_N)
    for l in range(recurrent_N):
        in_dim = inputs_dim if l == 0 else H
        w_ih = _orthogonal(keys[2 * l], (4 * H, in_dim))      # torch layout (4H, in)
        w_hh = _orthogonal(keys[2 * l + 1], (4 * H, H))       # torch layout (4H, H)
        b = jnp.zeros((1, 4 * H), jnp.float32)                # b_ih + b_hh = 0
        layer_params.append((w_ih.T, w_hh.T, b))              # (in,4H), (H,4H), (1,4H)
    ln_w = jnp.ones((1, H), jnp.float32)
    ln_b = jnp.zeros((1, H), jnp.float32)
    return layer_params, ln_w, ln_b


def _pick_tb(T, max_tb=8):
    """Largest divisor of T that is <= max_tb (timesteps per grid step)."""
    tb = 1
    for cand in range(1, min(T, max_tb) + 1):
        if T % cand == 0:
            tb = cand
    return tb


def _pick_nb(N):
    """Number of parallel batch blocks (uses the 2nd TensorCore on v7x).

    Each block's N must stay sublane-legal (multiple of 8)."""
    return 2 if (N % 16 == 0) else 1


def _reorder_gates(w):
    """Torch gate order [i, f, g, o] -> kernel order [i, f, o | g] (last axis = 4H)."""
    H = w.shape[-1] // 4
    return jnp.concatenate([w[..., :2 * H], w[..., 3 * H:], w[..., 2 * H:3 * H]],
                           axis=-1)


# ------------------------------------------------------------------ kernel ---

def _cell_math(gates, c_prev, H):
    """LSTM cell update with pre-reordered gate columns [i, f, o | g].

    Sigmoid over the 3H slice, tanh over the last H slice: half the EUP work of
    activating the full 4H with both nonlinearities. All math in f32.
    """
    sig = jax.nn.sigmoid(gates[:, :3 * H])      # i, f, o
    g_g = jnp.tanh(gates[:, 3 * H:])            # g
    i_g = sig[:, :H]
    f_g = sig[:, H:2 * H]
    o_g = sig[:, 2 * H:3 * H]
    c_new = f_g * c_prev + i_g * g_g
    h_new = o_g * jnp.tanh(c_new)
    return h_new, c_new


def _lstm_rec_kernel(L, H, Tb, Nb,
                     x_ref, m_ref, h0_ref, c0_ref, w_ih0_ref, b0_ref, w_hh_ref,
                     *rest):
    # rest layout:
    #   [w_ih_1 .. w_ih_{L-1}, b_1 .. b_{L-1}, ln_w, ln_b,
    #    y_ref, h_out_ref, c_out_ref, h_s, c_s]
    n_wih = L - 1
    w_ih_refs = rest[:n_wih]
    b_refs = rest[n_wih:2 * n_wih]
    ln_w_ref, ln_b_ref = rest[2 * n_wih], rest[2 * n_wih + 1]
    y_ref, h_out_ref, c_out_ref = rest[2 * n_wih + 2:2 * n_wih + 5]
    h_s, c_s = rest[2 * n_wih + 5], rest[2 * n_wih + 6]

    G = 4 * H
    bf = jnp.bfloat16
    tblk = pl.program_id(1)          # sequential time-block axis (grid axis 1)

    @pl.when(tblk == 0)
    def _():
        h_s[...] = h0_ref[...]
        c_s[...] = c0_ref[...]

    # Fused layer-0 input projection for the WHOLE time block: depends only on x,
    # so it is off the serial recurrence chain (one big MXU issue, no HBM gate
    # round-trip). bf16 operands, f32 accumulation, f32 bias add.
    din = x_ref.shape[-1]
    x2 = x_ref[...].reshape(Tb * Nb, din).astype(bf)          # sublane-merge, free
    xg = jnp.dot(x2, w_ih0_ref[...],
                 preferred_element_type=jnp.float32) + b0_ref[...]   # (Tb*Nb, G) f32

    for tt in range(Tb):                          # static unroll over the time block
        m = m_ref[tt]                             # (Nb, 1) binary reset mask

        # Masked previous hidden states for ALL layers, fused into a single
        # recurrent matmul against the block-diagonal W_hh: one MXU issue per
        # timestep instead of L, and it only depends on carried state.
        h_all = jnp.concatenate([h_s[l] for l in range(L)], axis=-1) * m  # (Nb, L*H)
        rec = jnp.dot(h_all.astype(bf), w_hh_ref[...],
                      preferred_element_type=jnp.float32)                 # (Nb, L*G)
        c_prevs = [c_s[l] * m for l in range(L)]

        # Layer 0: input gates precomputed above.
        gates = xg[tt * Nb:(tt + 1) * Nb, :] + rec[:, 0:G]
        h_new, c_new = _cell_math(gates, c_prevs[0], H)
        h_s[0] = h_new
        c_s[0] = c_new
        layer_in = h_new

        # Layers 1..L-1: only the inter-layer x @ W_ih matmul stays on the chain.
        for l in range(1, L):
            gates = (jnp.dot(layer_in.astype(bf), w_ih_refs[l - 1][...],
                             preferred_element_type=jnp.float32)
                     + rec[:, l * G:(l + 1) * G] + b_refs[l - 1][...])
            h_new, c_new = _cell_math(gates, c_prevs[l], H)
            h_s[l] = h_new
            c_s[l] = c_new
            layer_in = h_new

        # Stash raw top-layer output; LayerNorm is applied block-wise below.
        y_ref[tt] = layer_in

    # Batched LayerNorm(H), eps=1e-5, over the whole (Tb, Nb, H) block (f32).
    # NOTE: H=32 keeps these tiles lane-sparse; at production sizes pick H a
    # multiple of 128 (or a lane-dense writeback layout) for full-width stores.
    y = y_ref[...]
    mu = jnp.mean(y, axis=-1, keepdims=True)
    var = jnp.mean((y - mu) ** 2, axis=-1, keepdims=True)
    y_ref[...] = (y - mu) * jax.lax.rsqrt(var + 1e-5) * ln_w_ref[...] + ln_b_ref[...]

    # Final (h, c) written exactly once per batch block, on the last time block.
    @pl.when(tblk == pl.num_programs(1) - 1)
    def _():
        h_out_ref[...] = h_s[...]
        c_out_ref[...] = c_s[...]


# ----------------------------------------------------------------- wrapper ---

def lstm_layer_forward(x, hxs, masks, layer_params, ln_w, ln_b, recurrent_N,
                       max_tb=8):
    B, Din = x.shape
    N, L, twoH = hxs.shape
    H = twoH // 2
    G = 4 * H
    assert L == recurrent_N
    T = B // N
    Tb = _pick_tb(T, max_tb)
    NB = _pick_nb(N)
    Nb = N // NB
    bf = jnp.bfloat16

    x3 = x.reshape(T, N, Din)
    m3 = masks.reshape(T, N, 1)
    h0 = jnp.transpose(hxs[:, :, :H], (1, 0, 2))   # (L, N, H)
    c0 = jnp.transpose(hxs[:, :, H:], (1, 0, 2))   # (L, N, H)

    # ---- pack weights: gate-reorder [i,f,o|g], bf16 matmul operands ----------
    w_ih0_bf = _reorder_gates(layer_params[0][0]).astype(bf)        # (Din, G)
    b0_r = _reorder_gates(layer_params[0][2])                       # (1, G) f32
    # Block-diagonal recurrent weight: all L per-step h@W_hh in one MXU issue.
    w_hh_bd = jnp.zeros((L * H, L * G), jnp.float32)
    for l in range(L):
        w_hh_bd = w_hh_bd.at[l * H:(l + 1) * H, l * G:(l + 1) * G].set(
            _reorder_gates(layer_params[l][1]))
    w_hh_bd = w_hh_bd.astype(bf)
    w_ih_bf = [_reorder_gates(layer_params[l][0]).astype(bf) for l in range(1, L)]
    b_r = [_reorder_gates(layer_params[l][2]) for l in range(1, L)]

    # ---- single fused pallas_call: grid = (batch blocks, time blocks) --------
    in_specs = [
        pl.BlockSpec((Tb, Nb, Din), lambda b, t: (t, b, 0)),    # x
        pl.BlockSpec((Tb, Nb, 1), lambda b, t: (t, b, 0)),      # masks
        pl.BlockSpec((L, Nb, H), lambda b, t: (0, b, 0)),       # h0
        pl.BlockSpec((L, Nb, H), lambda b, t: (0, b, 0)),       # c0
        pl.BlockSpec((Din, G), lambda b, t: (0, 0)),            # w_ih0 (bf16)
        pl.BlockSpec((1, G), lambda b, t: (0, 0)),              # b0
        pl.BlockSpec((L * H, L * G), lambda b, t: (0, 0)),      # block-diag W_hh (bf16)
    ]
    for _ in range(L - 1):
        in_specs.append(pl.BlockSpec((H, G), lambda b, t: (0, 0)))   # w_ih_l (bf16)
    for _ in range(L - 1):
        in_specs.append(pl.BlockSpec((1, G), lambda b, t: (0, 0)))   # b_l
    in_specs.append(pl.BlockSpec((1, H), lambda b, t: (0, 0)))       # ln_w
    in_specs.append(pl.BlockSpec((1, H), lambda b, t: (0, 0)))       # ln_b

    out_specs = [
        pl.BlockSpec((Tb, Nb, H), lambda b, t: (t, b, 0)),
        pl.BlockSpec((L, Nb, H), lambda b, t: (0, b, 0)),
        pl.BlockSpec((L, Nb, H), lambda b, t: (0, b, 0)),
    ]
    out_shape = (
        jax.ShapeDtypeStruct((T, N, H), jnp.float32),
        jax.ShapeDtypeStruct((L, N, H), jnp.float32),
        jax.ShapeDtypeStruct((L, N, H), jnp.float32),
    )

    kernel = functools.partial(_lstm_rec_kernel, L, H, Tb, Nb)

    y, h_out, c_out = pl.pallas_call(
        kernel,
        out_shape=out_shape,
        grid_spec=pltpu.PrefetchScalarGridSpec(
            num_scalar_prefetch=0,
            grid=(NB, T // Tb),
            in_specs=in_specs,
            out_specs=out_specs,
            scratch_shapes=[pltpu.VMEM((L, Nb, H), jnp.float32),   # h state
                            pltpu.VMEM((L, Nb, H), jnp.float32)],  # c state
        ),
        compiler_params=pltpu.CompilerParams(
            # batch blocks are independent (2nd TC on v7x); time is sequential.
            dimension_semantics=("parallel", "arbitrary"),
            # Explicit scoped-VMEM budget: > default (16/32 MiB), < v7x's 64 MiB.
            vmem_limit_bytes=48 * 1024 * 1024),
    )(x3, m3, h0, c0, w_ih0_bf, b0_r, w_hh_bd, *w_ih_bf, *b_r, ln_w, ln_b)

    y = y.reshape(T * N, H)
    hxs_out = jnp.concatenate(
        [jnp.transpose(h_out, (1, 0, 2)), jnp.transpose(c_out, (1, 0, 2))], axis=2)
    return y, hxs_out


# --------------------------------------------------------------- reference ---

def lstm_layer_reference(x, hxs, masks, layer_params, ln_w, ln_b, recurrent_N):
    """Pure-JAX reference. Matmul operands cast to bf16 (f32 accumulate) to match
    the kernel's native MXU precision; all elementwise math in f32."""
    B, Din = x.shape
    N, L, twoH = hxs.shape
    H = twoH // 2
    T = B // N
    bf = jnp.bfloat16
    x3 = x.reshape(T, N, Din)
    m3 = masks.reshape(T, N, 1)
    h = jnp.transpose(hxs[:, :, :H], (1, 0, 2))
    c = jnp.transpose(hxs[:, :, H:], (1, 0, 2))
    ys = []
    for t in range(T):
        layer_in = x3[t]
        hs, cs = [], []
        for l in range(L):
            w_ih, w_hh, b = layer_params[l]
            hp = h[l] * m3[t]
            cp = c[l] * m3[t]
            gates = (jnp.dot(layer_in.astype(bf), w_ih.astype(bf),
                             preferred_element_type=jnp.float32)
                     + jnp.dot(hp.astype(bf), w_hh.astype(bf),
                               preferred_element_type=jnp.float32) + b)
            i = jax.nn.sigmoid(gates[:, :H])
            f = jax.nn.sigmoid(gates[:, H:2 * H])
            g = jnp.tanh(gates[:, 2 * H:3 * H])
            o = jax.nn.sigmoid(gates[:, 3 * H:])
            cn = f * cp + i * g
            hn = o * jnp.tanh(cn)
            hs.append(hn)
            cs.append(cn)
            layer_in = hn
        h = jnp.stack(hs)
        c = jnp.stack(cs)
        ys.append(layer_in)
    y = jnp.stack(ys).reshape(T * N, H)
    mu = y.mean(-1, keepdims=True)
    var = ((y - mu) ** 2).mean(-1, keepdims=True)
    y = (y - mu) * jax.lax.rsqrt(var + 1e-5) * ln_w + ln_b
    hxs_out = jnp.concatenate(
        [jnp.transpose(h, (1, 0, 2)), jnp.transpose(c, (1, 0, 2))], axis=2)
    return y, hxs_out


# -------------------------------------------------------------------- main ---

if __name__ == "__main__":
    inputs_dim = 32
    outputs_dim = 32       # H
    recurrent_N = 2        # L
    T, N = 16, 16          # Tb=8 -> 2 time blocks (state carried), NB=2 batch blocks

    key = jax.random.PRNGKey(0)
    kp, kx, kh = jax.random.split(key, 3)

    layer_params, ln_w, ln_b = make_params(kp, inputs_dim, outputs_dim, recurrent_N)

    x = jax.random.normal(kx, (T * N, inputs_dim), dtype=jnp.float32)
    hxs = jax.random.normal(kh, (N, recurrent_N, 2 * outputs_dim), dtype=jnp.float32)
    # binary masks with episode resets inside blocks and at the time-block boundary
    masks = (jnp.ones((T, N), jnp.float32)
             .at[2, 3].set(0.0).at[5, 12].set(0.0).at[8, 0].set(0.0)
             .at[11, 7].set(0.0).at[13, 2].set(0.0))
    masks = masks.reshape(T * N, 1)

    fwd = jax.jit(lambda x_, hxs_, m_, lp_, w_, b_: lstm_layer_forward(
        x_, hxs_, m_, lp_, w_, b_, recurrent_N))

    y, hxs_out = fwd(x, hxs, masks, layer_params, ln_w, ln_b)
    jax.block_until_ready((y, hxs_out))

    y_ref, hxs_ref = lstm_layer_reference(x, hxs, masks, layer_params, ln_w, ln_b,
                                          recurrent_N)
    assert jnp.allclose(y, y_ref, atol=1e-3, rtol=1e-3)
    assert jnp.allclose(hxs_out, hxs_ref, atol=1e-3, rtol=1e-3)

    print("KERNEL_OK")
</pallas_src>

<mosaic_0001>
module attributes {stable_mosaic.version = 11 : i64} {
  func.func @_lstm_rec_kernel(%arg0: i32, %arg1: i32, %arg2: memref<8x8x32xf32, #tpu.memory_space<vmem>>, %arg3: memref<8x8x1xf32, #tpu.memory_space<vmem>>, %arg4: memref<2x8x32xf32, #tpu.memory_space<vmem>>, %arg5: memref<2x8x32xf32, #tpu.memory_space<vmem>>, %arg6: memref<32x128xbf16, #tpu.memory_space<vmem>>, %arg7: memref<1x128xf32, #tpu.memory_space<vmem>>, %arg8: memref<64x256xbf16, #tpu.memory_space<vmem>>, %arg9: memref<32x128xbf16, #tpu.memory_space<vmem>>, %arg10: memref<1x128xf32, #tpu.memory_space<vmem>>, %arg11: memref<1x32xf32, #tpu.memory_space<vmem>>, %arg12: memref<1x32xf32, #tpu.memory_space<vmem>>, %arg13: memref<8x8x32xf32, #tpu.memory_space<vmem>>, %arg14: memref<2x8x32xf32, #tpu.memory_space<vmem>>, %arg15: memref<2x8x32xf32, #tpu.memory_space<vmem>>, %arg16: memref<2x8x32xf32, #tpu.memory_space<vmem>>, %arg17: memref<2x8x32xf32, #tpu.memory_space<vmem>>) attributes {dimension_semantics = [#tpu.dimension_semantics<parallel>, #tpu.dimension_semantics<arbitrary>], iteration_bounds = array<i64: 2, 2>, scalar_prefetch = 0 : i64, scratch_operands = 2 : i64, tpu.core_type = #tpu.core_type<tc>, window_params = [{transform_indices = @transform_0, window_bounds = array<i64: 8, 8, 32>}, {transform_indices = @transform_1, window_bounds = array<i64: 8, 8, 1>}, {transform_indices = @transform_2, window_bounds = array<i64: 2, 8, 32>}, {transform_indices = @transform_3, window_bounds = array<i64: 2, 8, 32>}, {pipeline_mode = #tpu.pipeline_mode<synchronous>, transform_indices = @transform_4, window_bounds = array<i64: 32, 128>}, {pipeline_mode = #tpu.pipeline_mode<synchronous>, transform_indices = @transform_5, window_bounds = array<i64: 1, 128>}, {pipeline_mode = #tpu.pipeline_mode<synchronous>, transform_indices = @transform_6, window_bounds = array<i64: 64, 256>}, {pipeline_mode = #tpu.pipeline_mode<synchronous>, transform_indices = @transform_7, window_bounds = array<i64: 32, 128>}, {pipeline_mode = #tpu.pipeline_mode<synchronous>, transform_indices = @transform_8, window_bounds = array<i64: 1, 128>}, {pipeline_mode = #tpu.pipeline_mode<synchronous>, transform_indices = @transform_9, window_bounds = array<i64: 1, 32>}, {pipeline_mode = #tpu.pipeline_mode<synchronous>, transform_indices = @transform_10, window_bounds = array<i64: 1, 32>}, {transform_indices = @transform_11, window_bounds = array<i64: 8, 8, 32>}, {transform_indices = @transform_12, window_bounds = array<i64: 2, 8, 32>}, {transform_indices = @transform_13, window_bounds = array<i64: 2, 8, 32>}]} {
    %c0_i32 = arith.constant 0 : i32
    %0 = arith.cmpi eq, %arg1, %c0_i32 : i32
    %1 = arith.extui %0 : i1 to i32
    %c0_i32_0 = arith.constant 0 : i32
    %2 = arith.cmpi ne, %1, %c0_i32_0 : i32
    scf.if %2 {
      %c0_336 = arith.constant 0 : index
      %c0_337 = arith.constant 0 : index
      %c0_338 = arith.constant 0 : index
      %666 = vector.load %arg4[%c0_336, %c0_337, %c0_338] : memref<2x8x32xf32, #tpu.memory_space<vmem>>, vector<2x8x32xf32>
      %c0_339 = arith.constant 0 : index
      %c0_340 = arith.constant 0 : index
      %c0_341 = arith.constant 0 : index
      %667 = vector.load %arg16[%c0_339, %c0_340, %c0_341] : memref<2x8x32xf32, #tpu.memory_space<vmem>>, vector<2x8x32xf32>
      tpu.vector_store %arg16[%c0_339, %c0_340, %c0_341], %666 {strides = array<i32>} : memref<2x8x32xf32, #tpu.memory_space<vmem>>, vector<2x8x32xf32>,
      %c0_342 = arith.constant 0 : index
      %c0_343 = arith.constant 0 : index
      %c0_344 = arith.constant 0 : index
      %668 = vector.load %arg5[%c0_342, %c0_343, %c0_344] : memref<2x8x32xf32, #tpu.memory_space<vmem>>, vector<2x8x32xf32>
      %c0_345 = arith.constant 0 : index
      %c0_346 = arith.constant 0 : index
      %c0_347 = arith.constant 0 : index
      %669 = vector.load %arg17[%c0_345, %c0_346, %c0_347] : memref<2x8x32xf32, #tpu.memory_space<vmem>>, vector<2x8x32xf32>
      tpu.vector_store %arg17[%c0_345, %c0_346, %c0_347], %668 {strides = array<i32>} : memref<2x8x32xf32, #tpu.memory_space<vmem>>, vector<2x8x32xf32>,
    } else {
    }
    %c0 = arith.constant 0 : index
    %c0_1 = arith.constant 0 : index
    %c0_2 = arith.constant 0 : index
    %3 = vector.load %arg2[%c0, %c0_1, %c0_2] : memref<8x8x32xf32, #tpu.memory_space<vmem>>, vector<8x8x32xf32>
    %4 = vector.shape_cast %3 : vector<8x8x32xf32> to vector<64x32xf32>
    %5 = arith.truncf %4 : vector<64x32xf32> to vector<64x32xbf16>
    %c0_3 = arith.constant 0 : index
    %c0_4 = arith.constant 0 : index
    %6 = vector.load %arg6[%c0_3, %c0_4] : memref<32x128xbf16, #tpu.memory_space<vmem>>, vector<32x128xbf16>
    %cst = arith.constant dense<0.000000e+00> : vector<64x128xf32>
    %7 = tpu.matmul %5, %6, %cst {dimension_numbers = #tpu.dot_dimension_numbers<[1], [0], [0], [1], [0, 0, 1, 1], [], []>} : vector<64x32xbf16>, vector<32x128xbf16>, vector<64x128xf32> -> vector<64x128xf32>
    %c0_5 = arith.constant 0 : index
    %c0_6 = arith.constant 0 : index
    %8 = vector.load %arg7[%c0_5, %c0_6] : memref<1x128xf32, #tpu.memory_space<vmem>>, vector<1x128xf32>
    %9 = vector.broadcast %8 : vector<1x128xf32> to vector<64x128xf32>
    %10 = arith.addf %7, %9 : vector<64x128xf32>
    %c0_7 = arith.constant 0 : index
    %c0_8 = arith.constant 0 : index
    %c0_9 = arith.constant 0 : index
    %11 = vector.load %arg3[%c0_7, %c0_8, %c0_9] : memref<8x8x1xf32, #tpu.memory_space<vmem>>, vector<1x8x1xf32>
    %12 = vector.shape_cast %11 : vector<1x8x1xf32> to vector<8x1xf32>
    %c0_10 = arith.constant 0 : index
    %c0_11 = arith.constant 0 : index
    %c0_12 = arith.constant 0 : index
    %13 = vector.load %arg16[%c0_10, %c0_11, %c0_12] : memref<2x8x32xf32, #tpu.memory_space<vmem>>, vector<1x8x32xf32>
    %14 = vector.shape_cast %13 : vector<1x8x32xf32> to vector<8x32xf32>
    %c1 = arith.constant 1 : index
    %c0_13 = arith.constant 0 : index
    %c0_14 = arith.constant 0 : index
    %15 = vector.load %arg16[%c1, %c0_13, %c0_14] : memref<2x8x32xf32, #tpu.memory_space<vmem>>, vector<1x8x32xf32>
    %16 = vector.shape_cast %15 : vector<1x8x32xf32> to vector<8x32xf32>
    %17 = tpu.concatenate %14, %16 in 1 : vector<8x32xf32>, vector<8x32xf32> -> vector<8x64xf32>
    %18 = vector.broadcast %12 : vector<8x1xf32> to vector<8x64xf32>
    %19 = arith.mulf %17, %18 : vector<8x64xf32>
    %20 = arith.truncf %19 : vector<8x64xf32> to vector<8x64xbf16>
    %c0_15 = arith.constant 0 : index
    %c0_16 = arith.constant 0 : index
    %21 = vector.load %arg8[%c0_15, %c0_16] : memref<64x256xbf16, #tpu.memory_space<vmem>>, vector<64x256xbf16>
    %cst_17 = arith.constant dense<0.000000e+00> : vector<8x256xf32>
    %22 = tpu.matmul %20, %21, %cst_17 {dimension_numbers = #tpu.dot_dimension_numbers<[1], [0], [0], [1], [0, 0, 1, 1], [], []>} : vector<8x64xbf16>, vector<64x256xbf16>, vector<8x256xf32> -> vector<8x256xf32>
    %c0_18 = arith.constant 0 : index
    %c0_19 = arith.constant 0 : index
    %c0_20 = arith.constant 0 : index
    %23 = vector.load %arg17[%c0_18, %c0_19, %c0_20] : memref<2x8x32xf32, #tpu.memory_space<vmem>>, vector<1x8x32xf32>
    %24 = vector.shape_cast %23 : vector<1x8x32xf32> to vector<8x32xf32>
    %25 = vector.broadcast %12 : vector<8x1xf32> to vector<8x32xf32>
    %26 = arith.mulf %24, %25 : vector<8x32xf32>
    %c1_21 = arith.constant 1 : index
    %c0_22 = arith.constant 0 : index
    %c0_23 = arith.constant 0 : index
    %27 = vector.load %arg17[%c1_21, %c0_22, %c0_23] : memref<2x8x32xf32, #tpu.memory_space<vmem>>, vector<1x8x32xf32>
    %28 = vector.shape_cast %27 : vector<1x8x32xf32> to vector<8x32xf32>
    %29 = vector.broadcast %12 : vector<8x1xf32> to vector<8x32xf32>
    %30 = arith.mulf %28, %29 : vector<8x32xf32>
    %31 = vector.extract_strided_slice %10 {offsets = [0, 0], sizes = [8, 128], strides = [1, 1]} : vector<64x128xf32> to vector<8x128xf32>
    %32 = vector.extract_strided_slice %22 {offsets = [0, 0], sizes = [8, 128], strides = [1, 1]} : vector<8x256xf32> to vector<8x128xf32>
    %33 = arith.addf %31, %32 : vector<8x128xf32>
    %34 = vector.extract_strided_slice %33 {offsets = [0, 0], sizes = [8, 96], strides = [1, 1]} : vector<8x128xf32> to vector<8x96xf32>
    %35 = arith.negf %34 : vector<8x96xf32>
    %36 = math.exp %35 : vector<8x96xf32>
    %cst_24 = arith.constant 1.000000e+00 : f32
    %37 = vector.broadcast %cst_24 : f32 to vector<8x96xf32>
    %38 = arith.addf %37, %36 : vector<8x96xf32>
    %39 = arith.divf %37, %38 : vector<8x96xf32>
    %40 = vector.extract_strided_slice %33 {offsets = [0, 96], sizes = [8, 32], strides = [1, 1]} : vector<8x128xf32> to vector<8x32xf32>
    %41 = math.tanh %40 : vector<8x32xf32>
    %42 = vector.extract_strided_slice %39 {offsets = [0, 0], sizes = [8, 32], strides = [1, 1]} : vector<8x96xf32> to vector<8x32xf32>
    %43 = vector.extract_strided_slice %39 {offsets = [0, 32], sizes = [8, 32], strides = [1, 1]} : vector<8x96xf32> to vector<8x32xf32>
    %44 = vector.extract_strided_slice %39 {offsets = [0, 64], sizes = [8, 32], strides = [1, 1]} : vector<8x96xf32> to vector<8x32xf32>
    %45 = arith.mulf %43, %26 : vector<8x32xf32>
    %46 = arith.mulf %42, %41 : vector<8x32xf32>
    %47 = arith.addf %45, %46 : vector<8x32xf32>
    %48 = math.tanh %47 : vector<8x32xf32>
    %49 = arith.mulf %44, %48 : vector<8x32xf32>
    %c0_25 = arith.constant 0 : index
    %c0_26 = arith.constant 0 : index
    %c0_27 = arith.constant 0 : index
    %50 = vector.load %arg16[%c0_25, %c0_26, %c0_27] : memref<2x8x32xf32, #tpu.memory_space<vmem>>, vector<1x8x32xf32>
    %51 = vector.shape_cast %50 : vector<1x8x32xf32> to vector<8x32xf32>
    %52 = vector.shape_cast %49 : vector<8x32xf32> to vector<1x8x32xf32>
    tpu.vector_store %arg16[%c0_25, %c0_26, %c0_27], %52 {strides = array<i32>} : memref<2x8x32xf32, #tpu.memory_space<vmem>>, vector<1x8x32xf32>,
    %c0_28 = arith.constant 0 : index
    %c0_29 = arith.constant 0 : index
    %c0_30 = arith.constant 0 : index
    %53 = vector.load %arg17[%c0_28, %c0_29, %c0_30] : memref<2x8x32xf32, #tpu.memory_space<vmem>>, vector<1x8x32xf32>
    %54 = vector.shape_cast %53 : vector<1x8x32xf32> to vector<8x32xf32>
    %55 = vector.shape_cast %47 : vector<8x32xf32> to vector<1x8x32xf32>
    tpu.vector_store %arg17[%c0_28, %c0_29, %c0_30], %55 {strides = array<i32>} : memref<2x8x32xf32, #tpu.memory_space<vmem>>, vector<1x8x32xf32>,
    %56 = arith.truncf %49 : vector<8x32xf32> to vector<8x32xbf16>
    %c0_31 = arith.constant 0 : index
    %c0_32 = arith.constant 0 : index
    %57 = vector.load %arg9[%c0_31, %c0_32] : memref<32x128xbf16, #tpu.memory_space<vmem>>, vector<32x128xbf16>
    %cst_33 = arith.constant dense<0.000000e+00> : vector<8x128xf32>
    %58 = tpu.matmul %56, %57, %cst_33 {dimension_numbers = #tpu.dot_dimension_numbers<[1], [0], [0], [1], [0, 0, 1, 1], [], []>} : vector<8x32xbf16>, vector<32x128xbf16>, vector<8x128xf32> -> vector<8x128xf32>
    %59 = vector.extract_strided_slice %22 {offsets = [0, 128], sizes = [8, 128], strides = [1, 1]} : vector<8x256xf32> to vector<8x128xf32>
    %60 = arith.addf %58, %59 : vector<8x128xf32>
    %c0_34 = arith.constant 0 : index
    %c0_35 = arith.constant 0 : index
    %61 = vector.load %arg10[%c0_34, %c0_35] : memref<1x128xf32, #tpu.memory_space<vmem>>, vector<1x128xf32>
    %62 = vector.broadcast %61 : vector<1x128xf32> to vector<8x128xf32>
    %63 = arith.addf %60, %62 : vector<8x128xf32>
    %64 = vector.extract_strided_slice %63 {offsets = [0, 0], sizes = [8, 96], strides = [1, 1]} : vector<8x128xf32> to vector<8x96xf32>
    %65 = arith.negf %64 : vector<8x96xf32>
    %66 = math.exp %65 : vector<8x96xf32>
    %cst_36 = arith.constant 1.000000e+00 : f32
    %67 = vector.broadcast %cst_36 : f32 to vector<8x96xf32>
    %68 = arith.addf %67, %66 : vector<8x96xf32>
    %69 = arith.divf %67, %68 : vector<8x96xf32>
    %70 = vector.extract_strided_slice %63 {offsets = [0, 96], sizes = [8, 32], strides = [1, 1]} : vector<8x128xf32> to vector<8x32xf32>
    %71 = math.tanh %70 : vector<8x32xf32>
    %72 = vector.extract_strided_slice %69 {offsets = [0, 0], sizes = [8, 32], strides = [1, 1]} : vector<8x96xf32> to vector<8x32xf32>
    %73 = vector.extract_strided_slice %69 {offsets = [0, 32], sizes = [8, 32], strides = [1, 1]} : vector<8x96xf32> to vector<8x32xf32>
    %74 = vector.extract_strided_slice %69 {offsets = [0, 64], sizes = [8, 32], strides = [1, 1]} : vector<8x96xf32> to vector<8x32xf32>
    %75 = arith.mulf %73, %30 : vector<8x32xf32>
    %76 = arith.mulf %72, %71 : vector<8x32xf32>
    %77 = arith.addf %75, %76 : vector<8x32xf32>
    %78 = math.tanh %77 : vector<8x32xf32>
    %79 = arith.mulf %74, %78 : vector<8x32xf32>
    %c1_37 = arith.constant 1 : index
    %c0_38 = arith.constant 0 : index
    %c0_39 = arith.constant 0 : index
    %80 = vector.load %arg16[%c1_37, %c0_38, %c0_39] : memref<2x8x32xf32, #tpu.memory_space<vmem>>, vector<1x8x32xf32>
    %81 = vector.shape_cast %80 : vector<1x8x32xf32> to vector<8x32xf32>
    %82 = vector.shape_cast %79 : vector<8x32xf32> to vector<1x8x32xf32>
    tpu.vector_store %arg16[%c1_37, %c0_38, %c0_39], %82 {strides = array<i32>} : memref<2x8x32xf32, #tpu.memory_space<vmem>>, vector<1x8x32xf32>,
    %c1_40 = arith.constant 1 : index
    %c0_41 = arith.constant 0 : index
    %c0_42 = arith.constant 0 : index
    %83 = vector.load %arg17[%c1_40, %c0_41, %c0_42] : memref<2x8x32xf32, #tpu.memory_space<vmem>>, vector<1x8x32xf32>
    %84 = vector.shape_cast %83 : vector<1x8x32xf32> to vector<8x32xf32>
    %85 = vector.shape_cast %77 : vector<8x32xf32> to vector<1x8x32xf32>
    tpu.vector_store %arg17[%c1_40, %c0_41, %c0_42], %85 {strides = array<i32>} : memref<2x8x32xf32, #tpu.memory_space<vmem>>, vector<1x8x32xf32>,
    %c0_43 = arith.constant 0 : index
    %c0_44 = arith.constant 0 : index
    %c0_45 = arith.constant 0 : index
    %86 = vector.load %arg13[%c0_43, %c0_44, %c0_45] : memref<8x8x32xf32, #tpu.memory_space<vmem>>, vector<1x8x32xf32>
    %87 = vector.shape_cast %86 : vector<1x8x32xf32> to vector<8x32xf32>
    %88 = vector.shape_cast %79 : vector<8x32xf32> to vector<1x8x32xf32>
    tpu.vector_store %arg13[%c0_43, %c0_44, %c0_45], %88 {strides = array<i32>} : memref<8x8x32xf32, #tpu.memory_space<vmem>>, vector<1x8x32xf32>,
    %c1_46 = arith.constant 1 : index
    %c0_47 = arith.constant 0 : index
    %c0_48 = arith.constant 0 : index
    %89 = vector.load %arg3[%c1_46, %c0_47, %c0_48] : memref<8x8x1xf32, #tpu.memory_space<vmem>>, vector<1x8x1xf32>
    %90 = vector.shape_cast %89 : vector<1x8x1xf32> to vector<8x1xf32>
    %c0_49 = arith.constant 0 : index
    %c0_50 = arith.constant 0 : index
    %c0_51 = arith.constant 0 : index
    %91 = vector.load %arg16[%c0_49, %c0_50, %c0_51] : memref<2x8x32xf32, #tpu.memory_space<vmem>>, vector<1x8x32xf32>
    %92 = vector.shape_cast %91 : vector<1x8x32xf32> to vector<8x32xf32>
    %c1_52 = arith.constant 1 : index
    %c0_53 = arith.constant 0 : index
    %c0_54 = arith.constant 0 : index
    %93 = vector.load %arg16[%c1_52, %c0_53, %c0_54] : memref<2x8x32xf32, #tpu.memory_space<vmem>>, vector<1x8x32xf32>
    %94 = vector.shape_cast %93 : vector<1x8x32xf32> to vector<8x32xf32>
    %95 = tpu.concatenate %92, %94 in 1 : vector<8x32xf32>, vector<8x32xf32> -> vector<8x64xf32>
    %96 = vector.broadcast %90 : vector<8x1xf32> to vector<8x64xf32>
    %97 = arith.mulf %95, %96 : vector<8x64xf32>
    %98 = arith.truncf %97 : vector<8x64xf32> to vector<8x64xbf16>
    %c0_55 = arith.constant 0 : index
    %c0_56 = arith.constant 0 : index
    %99 = vector.load %arg8[%c0_55, %c0_56] : memref<64x256xbf16, #tpu.memory_space<vmem>>, vector<64x256xbf16>
    %cst_57 = arith.constant dense<0.000000e+00> : vector<8x256xf32>
    %100 = tpu.matmul %98, %99, %cst_57 {dimension_numbers = #tpu.dot_dimension_numbers<[1], [0], [0], [1], [0, 0, 1, 1], [], []>} : vector<8x64xbf16>, vector<64x256xbf16>, vector<8x256xf32> -> vector<8x256xf32>
    %c0_58 = arith.constant 0 : index
    %c0_59 = arith.constant 0 : index
    %c0_60 = arith.constant 0 : index
    %101 = vector.load %arg17[%c0_58, %c0_59, %c0_60] : memref<2x8x32xf32, #tpu.memory_space<vmem>>, vector<1x8x32xf32>
    %102 = vector.shape_cast %101 : vector<1x8x32xf32> to vector<8x32xf32>
    %103 = vector.broadcast %90 : vector<8x1xf32> to vector<8x32xf32>
    %104 = arith.mulf %102, %103 : vector<8x32xf32>
    %c1_61 = arith.constant 1 : index
    %c0_62 = arith.constant 0 : index
    %c0_63 = arith.constant 0 : index
    %105 = vector.load %arg17[%c1_61, %c0_62, %c0_63] : memref<2x8x32xf32, #tpu.memory_space<vmem>>, vector<1x8x32xf32>
    %106 = vector.shape_cast %105 : vector<1x8x32xf32> to vector<8x32xf32>
    %107 = vector.broadcast %90 : vector<8x1xf32> to vector<8x32xf32>
    %108 = arith.mulf %106, %107 : vector<8x32xf32>
    %109 = vector.extract_strided_slice %10 {offsets = [8, 0], sizes = [8, 128], strides = [1, 1]} : vector<64x128xf32> to vector<8x128xf32>
    %110 = vector.extract_strided_slice %100 {offsets = [0, 0], sizes = [8, 128], strides = [1, 1]} : vector<8x256xf32> to vector<8x128xf32>
    %111 = arith.addf %109, %110 : vector<8x128xf32>
    %112 = vector.extract_strided_slice %111 {offsets = [0, 0], sizes = [8, 96], strides = [1, 1]} : vector<8x128xf32> to vector<8x96xf32>
    %113 = arith.negf %112 : vector<8x96xf32>
    %114 = math.exp %113 : vector<8x96xf32>
    %cst_64 = arith.constant 1.000000e+00 : f32
    %115 = vector.broadcast %cst_64 : f32 to vector<8x96xf32>
    %116 = arith.addf %115, %114 : vector<8x96xf32>
    %117 = arith.divf %115, %116 : vector<8x96xf32>
    %118 = vector.extract_strided_slice %111 {offsets = [0, 96], sizes = [8, 32], strides = [1, 1]} : vector<8x128xf32> to vector<8x32xf32>
    %119 = math.tanh %118 : vector<8x32xf32>
    %120 = vector.extract_strided_slice %117 {offsets = [0, 0], sizes = [8, 32], strides = [1, 1]} : vector<8x96xf32> to vector<8x32xf32>
    %121 = vector.extract_strided_slice %117 {offsets = [0, 32], sizes = [8, 32], strides = [1, 1]} : vector<8x96xf32> to vector<8x32xf32>
    %122 = vector.extract_strided_slice %117 {offsets = [0, 64], sizes = [8, 32], strides = [1, 1]} : vector<8x96xf32> to vector<8x32xf32>
    %123 = arith.mulf %121, %104 : vector<8x32xf32>
    %124 = arith.mulf %120, %119 : vector<8x32xf32>
    %125 = arith.addf %123, %124 : vector<8x32xf32>
    %126 = math.tanh %125 : vector<8x32xf32>
    %127 = arith.mulf %122, %126 : vector<8x32xf32>
    %c0_65 = arith.constant 0 : index
    %c0_66 = arith.constant 0 : index
    %c0_67 = arith.constant 0 : index
    %128 = vector.load %arg16[%c0_65, %c0_66, %c0_67] : memref<2x8x32xf32, #tpu.memory_space<vmem>>, vector<1x8x32xf32>
    %129 = vector.shape_cast %128 : vector<1x8x32xf32> to vector<8x32xf32>
    %130 = vector.shape_cast %127 : vector<8x32xf32> to vector<1x8x32xf32>
    tpu.vector_store %arg16[%c0_65, %c0_66, %c0_67], %130 {strides = array<i32>} : memref<2x8x32xf32, #tpu.memory_space<vmem>>, vector<1x8x32xf32>,
    %c0_68 = arith.constant 0 : index
    %c0_69 = arith.constant 0 : index
    %c0_70 = arith.constant 0 : index
    %131 = vector.load %arg17[%c0_68, %c0_69, %c0_70] : memref<2x8x32xf32, #tpu.memory_space<vmem>>, vector<1x8x32xf32>
    %132 = vector.shape_cast %131 : vector<1x8x32xf32> to vector<8x32xf32>
    %133 = vector.shape_cast %125 : vector<8x32xf32> to vector<1x8x32xf32>
    tpu.vector_store %arg17[%c0_68, %c0_69, %c0_70], %133 {strides = array<i32>} : memref<2x8x32xf32, #tpu.memory_space<vmem>>, vector<1x8x32xf32>,
    %134 = arith.truncf %127 : vector<8x32xf32> to vector<8x32xbf16>
    %c0_71 = arith.constant 0 : index
    %c0_72 = arith.constant 0 : index
    %135 = vector.load %arg9[%c0_71, %c0_72] : memref<32x128xbf16, #tpu.memory_space<vmem>>, vector<32x128xbf16>
    %cst_73 = arith.constant dense<0.000000e+00> : vector<8x128xf32>
    %136 = tpu.matmul %134, %135, %cst_73 {dimension_numbers = #tpu.dot_dimension_numbers<[1], [0], [0], [1], [0, 0, 1, 1], [], []>} : vector<8x32xbf16>, vector<32x128xbf16>, vector<8x128xf32> -> vector<8x128xf32>
    %137 = vector.extract_strided_slice %100 {offsets = [0, 128], sizes = [8, 128], strides = [1, 1]} : vector<8x256xf32> to vector<8x128xf32>
    %138 = arith.addf %136, %137 : vector<8x128xf32>
    %c0_74 = arith.constant 0 : index
    %c0_75 = arith.constant 0 : index
    %139 = vector.load %arg10[%c0_74, %c0_75] : memref<1x128xf32, #tpu.memory_space<vmem>>, vector<1x128xf32>
    %140 = vector.broadcast %139 : vector<1x128xf32> to vector<8x128xf32>
    %141 = arith.addf %138, %140 : vector<8x128xf32>
    %142 = vector.extract_strided_slice %141 {offsets = [0, 0], sizes = [8, 96], strides = [1, 1]} : vector<8x128xf32> to vector<8x96xf32>
    %143 = arith.negf %142 : vector<8x96xf32>
    %144 = math.exp %143 : vector<8x96xf32>
    %cst_76 = arith.constant 1.000000e+00 : f32
    %145 = vector.broadcast %cst_76 : f32 to vector<8x96xf32>
    %146 = arith.addf %145, %144 : vector<8x96xf32>
    %147 = arith.divf %145, %146 : vector<8x96xf32>
    %148 = vector.extract_strided_slice %141 {offsets = [0, 96], sizes = [8, 32], strides = [1, 1]} : vector<8x128xf32> to vector<8x32xf32>
    %149 = math.tanh %148 : vector<8x32xf32>
    %150 = vector.extract_strided_slice %147 {offsets = [0, 0], sizes = [8, 32], strides = [1, 1]} : vector<8x96xf32> to vector<8x32xf32>
    %151 = vector.extract_strided_slice %147 {offsets = [0, 32], sizes = [8, 32], strides = [1, 1]} : vector<8x96xf32> to vector<8x32xf32>
    %152 = vector.extract_strided_slice %147 {offsets = [0, 64], sizes = [8, 32], strides = [1, 1]} : vector<8x96xf32> to vector<8x32xf32>
    %153 = arith.mulf %151, %108 : vector<8x32xf32>
    %154 = arith.mulf %150, %149 : vector<8x32xf32>
    %155 = arith.addf %153, %154 : vector<8x32xf32>
    %156 = math.tanh %155 : vector<8x32xf32>
    %157 = arith.mulf %152, %156 : vector<8x32xf32>
    %c1_77 = arith.constant 1 : index
    %c0_78 = arith.constant 0 : index
    %c0_79 = arith.constant 0 : index
    %158 = vector.load %arg16[%c1_77, %c0_78, %c0_79] : memref<2x8x32xf32, #tpu.memory_space<vmem>>, vector<1x8x32xf32>
    %159 = vector.shape_cast %158 : vector<1x8x32xf32> to vector<8x32xf32>
    %160 = vector.shape_cast %157 : vector<8x32xf32> to vector<1x8x32xf32>
    tpu.vector_store %arg16[%c1_77, %c0_78, %c0_79], %160 {strides = array<i32>} : memref<2x8x32xf32, #tpu.memory_space<vmem>>, vector<1x8x32xf32>,
    %c1_80 = arith.constant 1 : index
    %c0_81 = arith.constant 0 : index
    %c0_82 = arith.constant 0 : index
    %161 = vector.load %arg17[%c1_80, %c0_81, %c0_82] : memref<2x8x32xf32, #tpu.memory_space<vmem>>, vector<1x8x32xf32>
    %162 = vector.shape_cast %161 : vector<1x8x32xf32> to vector<8x32xf32>
    %163 = vector.shape_cast %155 : vector<8x32xf32> to vector<1x8x32xf32>
    tpu.vector_store %arg17[%c1_80, %c0_81, %c0_82], %163 {strides = array<i32>} : memref<2x8x32xf32, #tpu.memory_space<vmem>>, vector<1x8x32xf32>,
    %c1_83 = arith.constant 1 : index
    %c0_84 = arith.constant 0 : index
    %c0_85 = arith.constant 0 : index
    %164 = vector.load %arg13[%c1_83, %c0_84, %c0_85] : memref<8x8x32xf32, #tpu.memory_space<vmem>>, vector<1x8x32xf32>
    %165 = vector.shape_cast %164 : vector<1x8x32xf32> to vector<8x32xf32>
    %166 = vector.shape_cast %157 : vector<8x32xf32> to vector<1x8x32xf32>
    tpu.vector_store %arg13[%c1_83, %c0_84, %c0_85], %166 {strides = array<i32>} : memref<8x8x32xf32, #tpu.memory_space<vmem>>, vector<1x8x32xf32>,
    %c2 = arith.constant 2 : index
    %c0_86 = arith.constant 0 : index
    %c0_87 = arith.constant 0 : index
    %167 = vector.load %arg3[%c2, %c0_86, %c0_87] : memref<8x8x1xf32, #tpu.memory_space<vmem>>, vector<1x8x1xf32>
    %168 = vector.shape_cast %167 : vector<1x8x1xf32> to vector<8x1xf32>
    %c0_88 = arith.constant 0 : index
    %c0_89 = arith.constant 0 : index
    %c0_90 = arith.constant 0 : index
    %169 = vector.load %arg16[%c0_88, %c0_89, %c0_90] : memref<2x8x32xf32, #tpu.memory_space<vmem>>, vector<1x8x32xf32>
    %170 = vector.shape_cast %169 : vector<1x8x32xf32> to vector<8x32xf32>
    %c1_91 = arith.constant 1 : index
    %c0_92 = arith.constant 0 : index
    %c0_93 = arith.constant 0 : index
    %171 = vector.load %arg16[%c1_91, %c0_92, %c0_93] : memref<2x8x32xf32, #tpu.memory_space<vmem>>, vector<1x8x32xf32>
    %172 = vector.shape_cast %171 : vector<1x8x32xf32> to vector<8x32xf32>
    %173 = tpu.concatenate %170, %172 in 1 : vector<8x32xf32>, vector<8x32xf32> -> vector<8x64xf32>
    %174 = vector.broadcast %168 : vector<8x1xf32> to vector<8x64xf32>
    %175 = arith.mulf %173, %174 : vector<8x64xf32>
    %176 = arith.truncf %175 : vector<8x64xf32> to vector<8x64xbf16>
    %c0_94 = arith.constant 0 : index
    %c0_95 = arith.constant 0 : index
    %177 = vector.load %arg8[%c0_94, %c0_95] : memref<64x256xbf16, #tpu.memory_space<vmem>>, vector<64x256xbf16>
    %cst_96 = arith.constant dense<0.000000e+00> : vector<8x256xf32>
    %178 = tpu.matmul %176, %177, %cst_96 {dimension_numbers = #tpu.dot_dimension_numbers<[1], [0], [0], [1], [0, 0, 1, 1], [], []>} : vector<8x64xbf16>, vector<64x256xbf16>, vector<8x256xf32> -> vector<8x256xf32>
    %c0_97 = arith.constant 0 : index
    %c0_98 = arith.constant 0 : index
    %c0_99 = arith.constant 0 : index
    %179 = vector.load %arg17[%c0_97, %c0_98, %c0_99] : memref<2x8x32xf32, #tpu.memory_space<vmem>>, vector<1x8x32xf32>
    %180 = vector.shape_cast %179 : vector<1x8x32xf32> to vector<8x32xf32>
    %181 = vector.broadcast %168 : vector<8x1xf32> to vector<8x32xf32>
    %182 = arith.mulf %180, %181 : vector<8x32xf32>
    %c1_100 = arith.constant 1 : index
    %c0_101 = arith.constant 0 : index
    %c0_102 = arith.constant 0 : index
    %183 = vector.load %arg17[%c1_100, %c0_101, %c0_102] : memref<2x8x32xf32, #tpu.memory_space<vmem>>, vector<1x8x32xf32>
    %184 = vector.shape_cast %183 : vector<1x8x32xf32> to vector<8x32xf32>
    %185 = vector.broadcast %168 : vector<8x1xf32> to vector<8x32xf32>
    %186 = arith.mulf %184, %185 : vector<8x32xf32>
    %187 = vector.extract_strided_slice %10 {offsets = [16, 0], sizes = [8, 128], strides = [1, 1]} : vector<64x128xf32> to vector<8x128xf32>
    %188 = vector.extract_strided_slice %178 {offsets = [0, 0], sizes = [8, 128], strides = [1, 1]} : vector<8x256xf32> to vector<8x128xf32>
    %189 = arith.addf %187, %188 : vector<8x128xf32>
    %190 = vector.extract_strided_slice %189 {offsets = [0, 0], sizes = [8, 96], strides = [1, 1]} : vector<8x128xf32> to vector<8x96xf32>
    %191 = arith.negf %190 : vector<8x96xf32>
    %192 = math.exp %191 : vector<8x96xf32>
    %cst_103 = arith.constant 1.000000e+00 : f32
    %193 = vector.broadcast %cst_103 : f32 to vector<8x96xf32>
    %194 = arith.addf %193, %192 : vector<8x96xf32>
    %195 = arith.divf %193, %194 : vector<8x96xf32>
    %196 = vector.extract_strided_slice %189 {offsets = [0, 96], sizes = [8, 32], strides = [1, 1]} : vector<8x128xf32> to vector<8x32xf32>
    %197 = math.tanh %196 : vector<8x32xf32>
    %198 = vector.extract_strided_slice %195 {offsets = [0, 0], sizes = [8, 32], strides = [1, 1]} : vector<8x96xf32> to vector<8x32xf32>
    %199 = vector.extract_strided_slice %195 {offsets = [0, 32], sizes = [8, 32], strides = [1, 1]} : vector<8x96xf32> to vector<8x32xf32>
    %200 = vector.extract_strided_slice %195 {offsets = [0, 64], sizes = [8, 32], strides = [1, 1]} : vector<8x96xf32> to vector<8x32xf32>
    %201 = arith.mulf %199, %182 : vector<8x32xf32>
    %202 = arith.mulf %198, %197 : vector<8x32xf32>
    %203 = arith.addf %201, %202 : vector<8x32xf32>
    %204 = math.tanh %203 : vector<8x32xf32>
    %205 = arith.mulf %200, %204 : vector<8x32xf32>
    %c0_104 = arith.constant 0 : index
    %c0_105 = arith.constant 0 : index
    %c0_106 = arith.constant 0 : index
    %206 = vector.load %arg16[%c0_104, %c0_105, %c0_106] : memref<2x8x32xf32, #tpu.memory_space<vmem>>, vector<1x8x32xf32>
    %207 = vector.shape_cast %206 : vector<1x8x32xf32> to vector<8x32xf32>
    %208 = vector.shape_cast %205 : vector<8x32xf32> to vector<1x8x32xf32>
    tpu.vector_store %arg16[%c0_104, %c0_105, %c0_106], %208 {strides = array<i32>} : memref<2x8x32xf32, #tpu.memory_space<vmem>>, vector<1x8x32xf32>,
    %c0_107 = arith.constant 0 : index
    %c0_108 = arith.constant 0 : index
    %c0_109 = arith.constant 0 : index
    %209 = vector.load %arg17[%c0_107, %c0_108, %c0_109] : memref<2x8x32xf32, #tpu.memory_space<vmem>>, vector<1x8x32xf32>
    %210 = vector.shape_cast %209 : vector<1x8x32xf32> to vector<8x32xf32>
    %211 = vector.shape_cast %203 : vector<8x32xf32> to vector<1x8x32xf32>
    tpu.vector_store %arg17[%c0_107, %c0_108, %c0_109], %211 {strides = array<i32>} : memref<2x8x32xf32, #tpu.memory_space<vmem>>, vector<1x8x32xf32>,
    %212 = arith.truncf %205 : vector<8x32xf32> to vector<8x32xbf16>
    %c0_110 = arith.constant 0 : index
    %c0_111 = arith.constant 0 : index
    %213 = vector.load %arg9[%c0_110, %c0_111] : memref<32x128xbf16, #tpu.memory_space<vmem>>, vector<32x128xbf16>
    %cst_112 = arith.constant dense<0.000000e+00> : vector<8x128xf32>
    %214 = tpu.matmul %212, %213, %cst_112 {dimension_numbers = #tpu.dot_dimension_numbers<[1], [0], [0], [1], [0, 0, 1, 1], [], []>} : vector<8x32xbf16>, vector<32x128xbf16>, vector<8x128xf32> -> vector<8x128xf32>
    %215 = vector.extract_strided_slice %178 {offsets = [0, 128], sizes = [8, 128], strides = [1, 1]} : vector<8x256xf32> to vector<8x128xf32>
    %216 = arith.addf %214, %215 : vector<8x128xf32>
    %c0_113 = arith.constant 0 : index
    %c0_114 = arith.constant 0 : index
    %217 = vector.load %arg10[%c0_113, %c0_114] : memref<1x128xf32, #tpu.memory_space<vmem>>, vector<1x128xf32>
    %218 = vector.broadcast %217 : vector<1x128xf32> to vector<8x128xf32>
    %219 = arith.addf %216, %218 : vector<8x128xf32>
    %220 = vector.extract_strided_slice %219 {offsets = [0, 0], sizes = [8, 96], strides = [1, 1]} : vector<8x128xf32> to vector<8x96xf32>
    %221 = arith.negf %220 : vector<8x96xf32>
    %222 = math.exp %221 : vector<8x96xf32>
    %cst_115 = arith.constant 1.000000e+00 : f32
    %223 = vector.broadcast %cst_115 : f32 to vector<8x96xf32>
    %224 = arith.addf %223, %222 : vector<8x96xf32>
    %225 = arith.divf %223, %224 : vector<8x96xf32>
    %226 = vector.extract_strided_slice %219 {offsets = [0, 96], sizes = [8, 32], strides = [1, 1]} : vector<8x128xf32> to vector<8x32xf32>
    %227 = math.tanh %226 : vector<8x32xf32>
    %228 = vector.extract_strided_slice %225 {offsets = [0, 0], sizes = [8, 32], strides = [1, 1]} : vector<8x96xf32> to vector<8x32xf32>
    %229 = vector.extract_strided_slice %225 {offsets = [0, 32], sizes = [8, 32], strides = [1, 1]} : vector<8x96xf32> to vector<8x32xf32>
    %230 = vector.extract_strided_slice %225 {offsets = [0, 64], sizes = [8, 32], strides = [1, 1]} : vector<8x96xf32> to vector<8x32xf32>
    %231 = arith.mulf %229, %186 : vector<8x32xf32>
    %232 = arith.mulf %228, %227 : vector<8x32xf32>
    %233 = arith.addf %231, %232 : vector<8x32xf32>
    %234 = math.tanh %233 : vector<8x32xf32>
    %235 = arith.mulf %230, %234 : vector<8x32xf32>
    %c1_116 = arith.constant 1 : index
    %c0_117 = arith.constant 0 : index
    %c0_118 = arith.constant 0 : index
    %236 = vector.load %arg16[%c1_116, %c0_117, %c0_118] : memref<2x8x32xf32, #tpu.memory_space<vmem>>, vector<1x8x32xf32>
    %237 = vector.shape_cast %236 : vector<1x8x32xf32> to vector<8x32xf32>
    %238 = vector.shape_cast %235 : vector<8x32xf32> to vector<1x8x32xf32>
    tpu.vector_store %arg16[%c1_116, %c0_117, %c0_118], %238 {strides = array<i32>} : memref<2x8x32xf32, #tpu.memory_space<vmem>>, vector<1x8x32xf32>,
    %c1_119 = arith.constant 1 : index
    %c0_120 = arith.constant 0 : index
    %c0_121 = arith.constant 0 : index
    %239 = vector.load %arg17[%c1_119, %c0_120, %c0_121] : memref<2x8x32xf32, #tpu.memory_space<vmem>>, vector<1x8x32xf32>
    %240 = vector.shape_cast %239 : vector<1x8x32xf32> to vector<8x32xf32>
    %241 = vector.shape_cast %233 : vector<8x32xf32> to vector<1x8x32xf32>
    tpu.vector_store %arg17[%c1_119, %c0_120, %c0_121], %241 {strides = array<i32>} : memref<2x8x32xf32, #tpu.memory_space<vmem>>, vector<1x8x32xf32>,
    %c2_122 = arith.constant 2 : index
    %c0_123 = arith.constant 0 : index
    %c0_124 = arith.constant 0 : index
    %242 = vector.load %arg13[%c2_122, %c0_123, %c0_124] : memref<8x8x32xf32, #tpu.memory_space<vmem>>, vector<1x8x32xf32>
    %243 = vector.shape_cast %242 : vector<1x8x32xf32> to vector<8x32xf32>
    %244 = vector.shape_cast %235 : vector<8x32xf32> to vector<1x8x32xf32>
    tpu.vector_store %arg13[%c2_122, %c0_123, %c0_124], %244 {strides = array<i32>} : memref<8x8x32xf32, #tpu.memory_space<vmem>>, vector<1x8x32xf32>,
    %c3 = arith.constant 3 : index
    %c0_125 = arith.constant 0 : index
    %c0_126 = arith.constant 0 : index
    %245 = vector.load %arg3[%c3, %c0_125, %c0_126] : memref<8x8x1xf32, #tpu.memory_space<vmem>>, vector<1x8x1xf32>
    %246 = vector.shape_cast %245 : vector<1x8x1xf32> to vector<8x1xf32>
    %c0_127 = arith.constant 0 : index
    %c0_128 = arith.constant 0 : index
    %c0_129 = arith.constant 0 : index
    %247 = vector.load %arg16[%c0_127, %c0_128, %c0_129] : memref<2x8x32xf32, #tpu.memory_space<vmem>>, vector<1x8x32xf32>
    %248 = vector.shape_cast %247 : vector<1x8x32xf32> to vector<8x32xf32>
    %c1_130 = arith.constant 1 : index
    %c0_131 = arith.constant 0 : index
    %c0_132 = arith.constant 0 : index
    %249 = vector.load %arg16[%c1_130, %c0_131, %c0_132] : memref<2x8x32xf32, #tpu.memory_space<vmem>>, vector<1x8x32xf32>
    %250 = vector.shape_cast %249 : vector<1x8x32xf32> to vector<8x32xf32>
    %251 = tpu.concatenate %248, %250 in 1 : vector<8x32xf32>, vector<8x32xf32> -> vector<8x64xf32>
    %252 = vector.broadcast %246 : vector<8x1xf32> to vector<8x64xf32>
    %253 = arith.mulf %251, %252 : vector<8x64xf32>
    %254 = arith.truncf %253 : vector<8x64xf32> to vector<8x64xbf16>
    %c0_133 = arith.constant 0 : index
    %c0_134 = arith.constant 0 : index
    %255 = vector.load %arg8[%c0_133, %c0_134] : memref<64x256xbf16, #tpu.memory_space<vmem>>, vector<64x256xbf16>
    %cst_135 = arith.constant dense<0.000000e+00> : vector<8x256xf32>
    %256 = tpu.matmul %254, %255, %cst_135 {dimension_numbers = #tpu.dot_dimension_numbers<[1], [0], [0], [1], [0, 0, 1, 1], [], []>} : vector<8x64xbf16>, vector<64x256xbf16>, vector<8x256xf32> -> vector<8x256xf32>
    %c0_136 = arith.constant 0 : index
    %c0_137 = arith.constant 0 : index
    %c0_138 = arith.constant 0 : index
    %257 = vector.load %arg17[%c0_136, %c0_137, %c0_138] : memref<2x8x32xf32, #tpu.memory_space<vmem>>, vector<1x8x32xf32>
    %258 = vector.shape_cast %257 : vector<1x8x32xf32> to vector<8x32xf32>
    %259 = vector.broadcast %246 : vector<8x1xf32> to vector<8x32xf32>
    %260 = arith.mulf %258, %259 : vector<8x32xf32>
    %c1_139 = arith.constant 1 : index
    %c0_140 = arith.constant 0 : index
    %c0_141 = arith.constant 0 : index
    %261 = vector.load %arg17[%c1_139, %c0_140, %c0_141] : memref<2x8x32xf32, #tpu.memory_space<vmem>>, vector<1x8x32xf32>
    %262 = vector.shape_cast %261 : vector<1x8x32xf32> to vector<8x32xf32>
    %263 = vector.broadcast %246 : vector<8x1xf32> to vector<8x32xf32>
    %264 = arith.mulf %262, %263 : vector<8x32xf32>
    %265 = vector.extract_strided_slice %10 {offsets = [24, 0], sizes = [8, 128], strides = [1, 1]} : vector<64x128xf32> to vector<8x128xf32>
    %266 = vector.extract_strided_slice %256 {offsets = [0, 0], sizes = [8, 128], strides = [1, 1]} : vector<8x256xf32> to vector<8x128xf32>
    %267 = arith.addf %265, %266 : vector<8x128xf32>
    %268 = vector.extract_strided_slice %267 {offsets = [0, 0], sizes = [8, 96], strides = [1, 1]} : vector<8x128xf32> to vector<8x96xf32>
    %269 = arith.negf %268 : vector<8x96xf32>
    %270 = math.exp %269 : vector<8x96xf32>
    %cst_142 = arith.constant 1.000000e+00 : f32
    %271 = vector.broadcast %cst_142 : f32 to vector<8x96xf32>
    %272 = arith.addf %271, %270 : vector<8x96xf32>
    %273 = arith.divf %271, %272 : vector<8x96xf32>
    %274 = vector.extract_strided_slice %267 {offsets = [0, 96], sizes = [8, 32], strides = [1, 1]} : vector<8x128xf32> to vector<8x32xf32>
    %275 = math.tanh %274 : vector<8x32xf32>
    %276 = vector.extract_strided_slice %273 {offsets = [0, 0], sizes = [8, 32], strides = [1, 1]} : vector<8x96xf32> to vector<8x32xf32>
    %277 = vector.extract_strided_slice %273 {offsets = [0, 32], sizes = [8, 32], strides = [1, 1]} : vector<8x96xf32> to vector<8x32xf32>
    %278 = vector.extract_strided_slice %273 {offsets = [0, 64], sizes = [8, 32], strides = [1, 1]} : vector<8x96xf32> to vector<8x32xf32>
    %279 = arith.mulf %277, %260 : vector<8x32xf32>
    %280 = arith.mulf %276, %275 : vector<8x32xf32>
    %281 = arith.addf %279, %280 : vector<8x32xf32>
    %282 = math.tanh %281 : vector<8x32xf32>
    %283 = arith.mulf %278, %282 : vector<8x32xf32>
    %c0_143 = arith.constant 0 : index
    %c0_144 = arith.constant 0 : index
    %c0_145 = arith.constant 0 : index
    %284 = vector.load %arg16[%c0_143, %c0_144, %c0_145] : memref<2x8x32xf32, #tpu.memory_space<vmem>>, vector<1x8x32xf32>
    %285 = vector.shape_cast %284 : vector<1x8x32xf32> to vector<8x32xf32>
    %286 = vector.shape_cast %283 : vector<8x32xf32> to vector<1x8x32xf32>
    tpu.vector_store %arg16[%c0_143, %c0_144, %c0_145], %286 {strides = array<i32>} : memref<2x8x32xf32, #tpu.memory_space<vmem>>, vector<1x8x32xf32>,
    %c0_146 = arith.constant 0 : index
    %c0_147 = arith.constant 0 : index
    %c0_148 = arith.constant 0 : index
    %287 = vector.load %arg17[%c0_146, %c0_147, %c0_148] : memref<2x8x32xf32, #tpu.memory_space<vmem>>, vector<1x8x32xf32>
    %288 = vector.shape_cast %287 : vector<1x8x32xf32> to vector<8x32xf32>
    %289 = vector.shape_cast %281 : vector<8x32xf32> to vector<1x8x32xf32>
    tpu.vector_store %arg17[%c0_146, %c0_147, %c0_148], %289 {strides = array<i32>} : memref<2x8x32xf32, #tpu.memory_space<vmem>>, vector<1x8x32xf32>,
    %290 = arith.truncf %283 : vector<8x32xf32> to vector<8x32xbf16>
    %c0_149 = arith.constant 0 : index
    %c0_150 = arith.constant 0 : index
    %291 = vector.load %arg9[%c0_149, %c0_150] : memref<32x128xbf16, #tpu.memory_space<vmem>>, vector<32x128xbf16>
    %cst_151 = arith.constant dense<0.000000e+00> : vector<8x128xf32>
    %292 = tpu.matmul %290, %291, %cst_151 {dimension_numbers = #tpu.dot_dimension_numbers<[1], [0], [0], [1], [0, 0, 1, 1], [], []>} : vector<8x32xbf16>, vector<32x128xbf16>, vector<8x128xf32> -> vector<8x128xf32>
    %293 = vector.extract_strided_slice %256 {offsets = [0, 128], sizes = [8, 128], strides = [1, 1]} : vector<8x256xf32> to vector<8x128xf32>
    %294 = arith.addf %292, %293 : vector<8x128xf32>
    %c0_152 = arith.constant 0 : index
    %c0_153 = arith.constant 0 : index
    %295 = vector.load %arg10[%c0_152, %c0_153] : memref<1x128xf32, #tpu.memory_space<vmem>>, vector<1x128xf32>
    %296 = vector.broadcast %295 : vector<1x128xf32> to vector<8x128xf32>
    %297 = arith.addf %294, %296 : vector<8x128xf32>
    %298 = vector.extract_strided_slice %297 {offsets = [0, 0], sizes = [8, 96], strides = [1, 1]} : vector<8x128xf32> to vector<8x96xf32>
    %299 = arith.negf %298 : vector<8x96xf32>
    %300 = math.exp %299 : vector<8x96xf32>
    %cst_154 = arith.constant 1.000000e+00 : f32
    %301 = vector.broadcast %cst_154 : f32 to vector<8x96xf32>
    %302 = arith.addf %301, %300 : vector<8x96xf32>
    %303 = arith.divf %301, %302 : vector<8x96xf32>
    %304 = vector.extract_strided_slice %297 {offsets = [0, 96], sizes = [8, 32], strides = [1, 1]} : vector<8x128xf32> to vector<8x32xf32>
    %305 = math.tanh %304 : vector<8x32xf32>
    %306 = vector.extract_strided_slice %303 {offsets = [0, 0], sizes = [8, 32], strides = [1, 1]} : vector<8x96xf32> to vector<8x32xf32>
    %307 = vector.extract_strided_slice %303 {offsets = [0, 32], sizes = [8, 32], strides = [1, 1]} : vector<8x96xf32> to vector<8x32xf32>
    %308 = vector.extract_strided_slice %303 {offsets = [0, 64], sizes = [8, 32], strides = [1, 1]} : vector<8x96xf32> to vector<8x32xf32>
    %309 = arith.mulf %307, %264 : vector<8x32xf32>
    %310 = arith.mulf %306, %305 : vector<8x32xf32>
    %311 = arith.addf %309, %310 : vector<8x32xf32>
    %312 = math.tanh %311 : vector<8x32xf32>
    %313 = arith.mulf %308, %312 : vector<8x32xf32>
    %c1_155 = arith.constant 1 : index
    %c0_156 = arith.constant 0 : index
    %c0_157 = arith.constant 0 : index
    %314 = vector.load %arg16[%c1_155, %c0_156, %c0_157] : memref<2x8x32xf32, #tpu.memory_space<vmem>>, vector<1x8x32xf32>
    %315 = vector.shape_cast %314 : vector<1x8x32xf32> to vector<8x32xf32>
    %316 = vector.shape_cast %313 : vector<8x32xf32> to vector<1x8x32xf32>
    tpu.vector_store %arg16[%c1_155, %c0_156, %c0_157], %316 {strides = array<i32>} : memref<2x8x32xf32, #tpu.memory_space<vmem>>, vector<1x8x32xf32>,
    %c1_158 = arith.constant 1 : index
    %c0_159 = arith.constant 0 : index
    %c0_160 = arith.constant 0 : index
    %317 = vector.load %arg17[%c1_158, %c0_159, %c0_160] : memref<2x8x32xf32, #tpu.memory_space<vmem>>, vector<1x8x32xf32>
    %318 = vector.shape_cast %317 : vector<1x8x32xf32> to vector<8x32xf32>
    %319 = vector.shape_cast %311 : vector<8x32xf32> to vector<1x8x32xf32>
    tpu.vector_store %arg17[%c1_158, %c0_159, %c0_160], %319 {strides = array<i32>} : memref<2x8x32xf32, #tpu.memory_space<vmem>>, vector<1x8x32xf32>,
    %c3_161 = arith.constant 3 : index
    %c0_162 = arith.constant 0 : index
    %c0_163 = arith.constant 0 : index
    %320 = vector.load %arg13[%c3_161, %c0_162, %c0_163] : memref<8x8x32xf32, #tpu.memory_space<vmem>>, vector<1x8x32xf32>
    %321 = vector.shape_cast %320 : vector<1x8x32xf32> to vector<8x32xf32>
    %322 = vector.shape_cast %313 : vector<8x32xf32> to vector<1x8x32xf32>
    tpu.vector_store %arg13[%c3_161, %c0_162, %c0_163], %322 {strides = array<i32>} : memref<8x8x32xf32, #tpu.memory_space<vmem>>, vector<1x8x32xf32>,
    %c4 = arith.constant 4 : index
    %c0_164 = arith.constant 0 : index
    %c0_165 = arith.constant 0 : index
    %323 = vector.load %arg3[%c4, %c0_164, %c0_165] : memref<8x8x1xf32, #tpu.memory_space<vmem>>, vector<1x8x1xf32>
    %324 = vector.shape_cast %323 : vector<1x8x1xf32> to vector<8x1xf32>
    %c0_166 = arith.constant 0 : index
    %c0_167 = arith.constant 0 : index
    %c0_168 = arith.constant 0 : index
    %325 = vector.load %arg16[%c0_166, %c0_167, %c0_168] : memref<2x8x32xf32, #tpu.memory_space<vmem>>, vector<1x8x32xf32>
    %326 = vector.shape_cast %325 : vector<1x8x32xf32> to vector<8x32xf32>
    %c1_169 = arith.constant 1 : index
    %c0_170 = arith.constant 0 : index
    %c0_171 = arith.constant 0 : index
    %327 = vector.load %arg16[%c1_169, %c0_170, %c0_171] : memref<2x8x32xf32, #tpu.memory_space<vmem>>, vector<1x8x32xf32>
    %328 = vector.shape_cast %327 : vector<1x8x32xf32> to vector<8x32xf32>
    %329 = tpu.concatenate %326, %328 in 1 : vector<8x32xf32>, vector<8x32xf32> -> vector<8x64xf32>
    %330 = vector.broadcast %324 : vector<8x1xf32> to vector<8x64xf32>
    %331 = arith.mulf %329, %330 : vector<8x64xf32>
    %332 = arith.truncf %331 : vector<8x64xf32> to vector<8x64xbf16>
    %c0_172 = arith.constant 0 : index
    %c0_173 = arith.constant 0 : index
    %333 = vector.load %arg8[%c0_172, %c0_173] : memref<64x256xbf16, #tpu.memory_space<vmem>>, vector<64x256xbf16>
    %cst_174 = arith.constant dense<0.000000e+00> : vector<8x256xf32>
    %334 = tpu.matmul %332, %333, %cst_174 {dimension_numbers = #tpu.dot_dimension_numbers<[1], [0], [0], [1], [0, 0, 1, 1], [], []>} : vector<8x64xbf16>, vector<64x256xbf16>, vector<8x256xf32> -> vector<8x256xf32>
    %c0_175 = arith.constant 0 : index
    %c0_176 = arith.constant 0 : index
    %c0_177 = arith.constant 0 : index
    %335 = vector.load %arg17[%c0_175, %c0_176, %c0_177] : memref<2x8x32xf32, #tpu.memory_space<vmem>>, vector<1x8x32xf32>
    %336 = vector.shape_cast %335 : vector<1x8x32xf32> to vector<8x32xf32>
    %337 = vector.broadcast %324 : vector<8x1xf32> to vector<8x32xf32>
    %338 = arith.mulf %336, %337 : vector<8x32xf32>
    %c1_178 = arith.constant 1 : index
    %c0_179 = arith.constant 0 : index
    %c0_180 = arith.constant 0 : index
    %339 = vector.load %arg17[%c1_178, %c0_179, %c0_180] : memref<2x8x32xf32, #tpu.memory_space<vmem>>, vector<1x8x32xf32>
    %340 = vector.shape_cast %339 : vector<1x8x32xf32> to vector<8x32xf32>
    %341 = vector.broadcast %324 : vector<8x1xf32> to vector<8x32xf32>
    %342 = arith.mulf %340, %341 : vector<8x32xf32>
    %343 = vector.extract_strided_slice %10 {offsets = [32, 0], sizes = [8, 128], strides = [1, 1]} : vector<64x128xf32> to vector<8x128xf32>
    %344 = vector.extract_strided_slice %334 {offsets = [0, 0], sizes = [8, 128], strides = [1, 1]} : vector<8x256xf32> to vector<8x128xf32>
    %345 = arith.addf %343, %344 : vector<8x128xf32>
    %346 = vector.extract_strided_slice %345 {offsets = [0, 0], sizes = [8, 96], strides = [1, 1]} : vector<8x128xf32> to vector<8x96xf32>
    %347 = arith.negf %346 : vector<8x96xf32>
    %348 = math.exp %347 : vector<8x96xf32>
    %cst_181 = arith.constant 1.000000e+00 : f32
    %349 = vector.broadcast %cst_181 : f32 to vector<8x96xf32>
    %350 = arith.addf %349, %348 : vector<8x96xf32>
    %351 = arith.divf %349, %350 : vector<8x96xf32>
    %352 = vector.extract_strided_slice %345 {offsets = [0, 96], sizes = [8, 32], strides = [1, 1]} : vector<8x128xf32> to vector<8x32xf32>
    %353 = math.tanh %352 : vector<8x32xf32>
    %354 = vector.extract_strided_slice %351 {offsets = [0, 0], sizes = [8, 32], strides = [1, 1]} : vector<8x96xf32> to vector<8x32xf32>
    %355 = vector.extract_strided_slice %351 {offsets = [0, 32], sizes = [8, 32], strides = [1, 1]} : vector<8x96xf32> to vector<8x32xf32>
    %356 = vector.extract_strided_slice %351 {offsets = [0, 64], sizes = [8, 32], strides = [1, 1]} : vector<8x96xf32> to vector<8x32xf32>
    %357 = arith.mulf %355, %338 : vector<8x32xf32>
    %358 = arith.mulf %354, %353 : vector<8x32xf32>
    %359 = arith.addf %357, %358 : vector<8x32xf32>
    %360 = math.tanh %359 : vector<8x32xf32>
    %361 = arith.mulf %356, %360 : vector<8x32xf32>
    %c0_182 = arith.constant 0 : index
    %c0_183 = arith.constant 0 : index
    %c0_184 = arith.constant 0 : index
    %362 = vector.load %arg16[%c0_182, %c0_183, %c0_184] : memref<2x8x32xf32, #tpu.memory_space<vmem>>, vector<1x8x32xf32>
    %363 = vector.shape_cast %362 : vector<1x8x32xf32> to vector<8x32xf32>
    %364 = vector.shape_cast %361 : vector<8x32xf32> to vector<1x8x32xf32>
    tpu.vector_store %arg16[%c0_182, %c0_183, %c0_184], %364 {strides = array<i32>} : memref<2x8x32xf32, #tpu.memory_space<vmem>>, vector<1x8x32xf32>,
    %c0_185 = arith.constant 0 : index
    %c0_186 = arith.constant 0 : index
    %c0_187 = arith.constant 0 : index
    %365 = vector.load %arg17[%c0_185, %c0_186, %c0_187] : memref<2x8x32xf32, #tpu.memory_space<vmem>>, vector<1x8x32xf32>
    %366 = vector.shape_cast %365 : vector<1x8x32xf32> to vector<8x32xf32>
    %367 = vector.shape_cast %359 : vector<8x32xf32> to vector<1x8x32xf32>
    tpu.vector_store %arg17[%c0_185, %c0_186, %c0_187], %367 {strides = array<i32>} : memref<2x8x32xf32, #tpu.memory_space<vmem>>, vector<1x8x32xf32>,
    %368 = arith.truncf %361 : vector<8x32xf32> to vector<8x32xbf16>
    %c0_188 = arith.constant 0 : index
    %c0_189 = arith.constant 0 : index
    %369 = vector.load %arg9[%c0_188, %c0_189] : memref<32x128xbf16, #tpu.memory_space<vmem>>, vector<32x128xbf16>
    %cst_190 = arith.constant dense<0.000000e+00> : vector<8x128xf32>
    %370 = tpu.matmul %368, %369, %cst_190 {dimension_numbers = #tpu.dot_dimension_numbers<[1], [0], [0], [1], [0, 0, 1, 1], [], []>} : vector<8x32xbf16>, vector<32x128xbf16>, vector<8x128xf32> -> vector<8x128xf32>
    %371 = vector.extract_strided_slice %334 {offsets = [0, 128], sizes = [8, 128], strides = [1, 1]} : vector<8x256xf32> to vector<8x128xf32>
    %372 = arith.addf %370, %371 : vector<8x128xf32>
    %c0_191 = arith.constant 0 : index
    %c0_192 = arith.constant 0 : index
    %373 = vector.load %arg10[%c0_191, %c0_192] : memref<1x128xf32, #tpu.memory_space<vmem>>, vector<1x128xf32>
    %374 = vector.broadcast %373 : vector<1x128xf32> to vector<8x128xf32>
    %375 = arith.addf %372, %374 : vector<8x128xf32>
    %376 = vector.extract_strided_slice %375 {offsets = [0, 0], sizes = [8, 96], strides = [1, 1]} : vector<8x128xf32> to vector<8x96xf32>
    %377 = arith.negf %376 : vector<8x96xf32>
    %378 = math.exp %377 : vector<8x96xf32>
    %cst_193 = arith.constant 1.000000e+00 : f32
    %379 = vector.broadcast %cst_193 : f32 to vector<8x96xf32>
    %380 = arith.addf %379, %378 : vector<8x96xf32>
    %381 = arith.divf %379, %380 : vector<8x96xf32>
    %382 = vector.extract_strided_slice %375 {offsets = [0, 96], sizes = [8, 32], strides = [1, 1]} : vector<8x128xf32> to vector<8x32xf32>
    %383 = math.tanh %382 : vector<8x32xf32>
    %384 = vector.extract_strided_slice %381 {offsets = [0, 0], sizes = [8, 32], strides = [1, 1]} : vector<8x96xf32> to vector<8x32xf32>
    %385 = vector.extract_strided_slice %381 {offsets = [0, 32], sizes = [8, 32], strides = [1, 1]} : vector<8x96xf32> to vector<8x32xf32>
    %386 = vector.extract_strided_slice %381 {offsets = [0, 64], sizes = [8, 32], strides = [1, 1]} : vector<8x96xf32> to vector<8x32xf32>
    %387 = arith.mulf %385, %342 : vector<8x32xf32>
    %388 = arith.mulf %384, %383 : vector<8x32xf32>
    %389 = arith.addf %387, %388 : vector<8x32xf32>
    %390 = math.tanh %389 : vector<8x32xf32>
    %391 = arith.mulf %386, %390 : vector<8x32xf32>
    %c1_194 = arith.constant 1 : index
    %c0_195 = arith.constant 0 : index
    %c0_196 = arith.constant 0 : index
    %392 = vector.load %arg16[%c1_194, %c0_195, %c0_196] : memref<2x8x32xf32, #tpu.memory_space<vmem>>, vector<1x8x32xf32>
    %393 = vector.shape_cast %392 : vector<1x8x32xf32> to vector<8x32xf32>
    %394 = vector.shape_cast %391 : vector<8x32xf32> to vector<1x8x32xf32>
    tpu.vector_store %arg16[%c1_194, %c0_195, %c0_196], %394 {strides = array<i32>} : memref<2x8x32xf32, #tpu.memory_space<vmem>>, vector<1x8x32xf32>,
    %c1_197 = arith.constant 1 : index
    %c0_198 = arith.constant 0 : index
    %c0_199 = arith.constant 0 : index
    %395 = vector.load %arg17[%c1_197, %c0_198, %c0_199] : memref<2x8x32xf32, #tpu.memory_space<vmem>>, vector<1x8x32xf32>
    %396 = vector.shape_cast %395 : vector<1x8x32xf32> to vector<8x32xf32>
    %397 = vector.shape_cast %389 : vector<8x32xf32> to vector<1x8x32xf32>
    tpu.vector_store %arg17[%c1_197, %c0_198, %c0_199], %397 {strides = array<i32>} : memref<2x8x32xf32, #tpu.memory_space<vmem>>, vector<1x8x32xf32>,
    %c4_200 = arith.constant 4 : index
    %c0_201 = arith.constant 0 : index
    %c0_202 = arith.constant 0 : index
    %398 = vector.load %arg13[%c4_200, %c0_201, %c0_202] : memref<8x8x32xf32, #tpu.memory_space<vmem>>, vector<1x8x32xf32>
    %399 = vector.shape_cast %398 : vector<1x8x32xf32> to vector<8x32xf32>
    %400 = vector.shape_cast %391 : vector<8x32xf32> to vector<1x8x32xf32>
    tpu.vector_store %arg13[%c4_200, %c0_201, %c0_202], %400 {strides = array<i32>} : memref<8x8x32xf32, #tpu.memory_space<vmem>>, vector<1x8x32xf32>,
    %c5 = arith.constant 5 : index
    %c0_203 = arith.constant 0 : index
    %c0_204 = arith.constant 0 : index
    %401 = vector.load %arg3[%c5, %c0_203, %c0_204] : memref<8x8x1xf32, #tpu.memory_space<vmem>>, vector<1x8x1xf32>
    %402 = vector.shape_cast %401 : vector<1x8x1xf32> to vector<8x1xf32>
    %c0_205 = arith.constant 0 : index
    %c0_206 = arith.constant 0 : index
    %c0_207 = arith.constant 0 : index
    %403 = vector.load %arg16[%c0_205, %c0_206, %c0_207] : memref<2x8x32xf32, #tpu.memory_space<vmem>>, vector<1x8x32xf32>
    %404 = vector.shape_cast %403 : vector<1x8x32xf32> to vector<8x32xf32>
    %c1_208 = arith.constant 1 : index
    %c0_209 = arith.constant 0 : index
    %c0_210 = arith.constant 0 : index
    %405 = vector.load %arg16[%c1_208, %c0_209, %c0_210] : memref<2x8x32xf32, #tpu.memory_space<vmem>>, vector<1x8x32xf32>
    %406 = vector.shape_cast %405 : vector<1x8x32xf32> to vector<8x32xf32>
    %407 = tpu.concatenate %404, %406 in 1 : vector<8x32xf32>, vector<8x32xf32> -> vector<8x64xf32>
    %408 = vector.broadcast %402 : vector<8x1xf32> to vector<8x64xf32>
    %409 = arith.mulf %407, %408 : vector<8x64xf32>
    %410 = arith.truncf %409 : vector<8x64xf32> to vector<8x64xbf16>
    %c0_211 = arith.constant 0 : index
    %c0_212 = arith.constant 0 : index
    %411 = vector.load %arg8[%c0_211, %c0_212] : memref<64x256xbf16, #tpu.memory_space<vmem>>, vector<64x256xbf16>
    %cst_213 = arith.constant dense<0.000000e+00> : vector<8x256xf32>
    %412 = tpu.matmul %410, %411, %cst_213 {dimension_numbers = #tpu.dot_dimension_numbers<[1], [0], [0], [1], [0, 0, 1, 1], [], []>} : vector<8x64xbf16>, vector<64x256xbf16>, vector<8x256xf32> -> vector<8x256xf32>
    %c0_214 = arith.constant 0 : index
    %c0_215 = arith.constant 0 : index
    %c0_216 = arith.constant 0 : index
    %413 = vector.load %arg17[%c0_214, %c0_215, %c0_216] : memref<2x8x32xf32, #tpu.memory_space<vmem>>, vector<1x8x32xf32>
    %414 = vector.shape_cast %413 : vector<1x8x32xf32> to vector<8x32xf32>
    %415 = vector.broadcast %402 : vector<8x1xf32> to vector<8x32xf32>
    %416 = arith.mulf %414, %415 : vector<8x32xf32>
    %c1_217 = arith.constant 1 : index
    %c0_218 = arith.constant 0 : index
    %c0_219 = arith.constant 0 : index
    %417 = vector.load %arg17[%c1_217, %c0_218, %c0_219] : memref<2x8x32xf32, #tpu.memory_space<vmem>>, vector<1x8x32xf32>
    %418 = vector.shape_cast %417 : vector<1x8x32xf32> to vector<8x32xf32>
    %419 = vector.broadcast %402 : vector<8x1xf32> to vector<8x32xf32>
    %420 = arith.mulf %418, %419 : vector<8x32xf32>
    %421 = vector.extract_strided_slice %10 {offsets = [40, 0], sizes = [8, 128], strides = [1, 1]} : vector<64x128xf32> to vector<8x128xf32>
    %422 = vector.extract_strided_slice %412 {offsets = [0, 0], sizes = [8, 128], strides = [1, 1]} : vector<8x256xf32> to vector<8x128xf32>
    %423 = arith.addf %421, %422 : vector<8x128xf32>
    %424 = vector.extract_strided_slice %423 {offsets = [0, 0], sizes = [8, 96], strides = [1, 1]} : vector<8x128xf32> to vector<8x96xf32>
    %425 = arith.negf %424 : vector<8x96xf32>
    %426 = math.exp %425 : vector<8x96xf32>
    %cst_220 = arith.constant 1.000000e+00 : f32
    %427 = vector.broadcast %cst_220 : f32 to vector<8x96xf32>
    %428 = arith.addf %427, %426 : vector<8x96xf32>
    %429 = arith.divf %427, %428 : vector<8x96xf32>
    %430 = vector.extract_strided_slice %423 {offsets = [0, 96], sizes = [8, 32], strides = [1, 1]} : vector<8x128xf32> to vector<8x32xf32>
    %431 = math.tanh %430 : vector<8x32xf32>
    %432 = vector.extract_strided_slice %429 {offsets = [0, 0], sizes = [8, 32], strides = [1, 1]} : vector<8x96xf32> to vector<8x32xf32>
    %433 = vector.extract_strided_slice %429 {offsets = [0, 32], sizes = [8, 32], strides = [1, 1]} : vector<8x96xf32> to vector<8x32xf32>
    %434 = vector.extract_strided_slice %429 {offsets = [0, 64], sizes = [8, 32], strides = [1, 1]} : vector<8x96xf32> to vector<8x32xf32>
    %435 = arith.mulf %433, %416 : vector<8x32xf32>
    %436 = arith.mulf %432, %431 : vector<8x32xf32>
    %437 = arith.addf %435, %436 : vector<8x32xf32>
    %438 = math.tanh %437 : vector<8x32xf32>
    %439 = arith.mulf %434, %438 : vector<8x32xf32>
    %c0_221 = arith.constant 0 : index
    %c0_222 = arith.constant 0 : index
    %c0_223 = arith.constant 0 : index
    %440 = vector.load %arg16[%c0_221, %c0_222, %c0_223] : memref<2x8x32xf32, #tpu.memory_space<vmem>>, vector<1x8x32xf32>
    %441 = vector.shape_cast %440 : vector<1x8x32xf32> to vector<8x32xf32>
    %442 = vector.shape_cast %439 : vector<8x32xf32> to vector<1x8x32xf32>
    tpu.vector_store %arg16[%c0_221, %c0_222, %c0_223], %442 {strides = array<i32>} : memref<2x8x32xf32, #tpu.memory_space<vmem>>, vector<1x8x32xf32>,
    %c0_224 = arith.constant 0 : index
    %c0_225 = arith.constant 0 : index
    %c0_226 = arith.constant 0 : index
    %443 = vector.load %arg17[%c0_224, %c0_225, %c0_226] : memref<2x8x32xf32, #tpu.memory_space<vmem>>, vector<1x8x32xf32>
    %444 = vector.shape_cast %443 : vector<1x8x32xf32> to vector<8x32xf32>
    %445 = vector.shape_cast %437 : vector<8x32xf32> to vector<1x8x32xf32>
    tpu.vector_store %arg17[%c0_224, %c0_225, %c0_226], %445 {strides = array<i32>} : memref<2x8x32xf32, #tpu.memory_space<vmem>>, vector<1x8x32xf32>,
    %446 = arith.truncf %439 : vector<8x32xf32> to vector<8x32xbf16>
    %c0_227 = arith.constant 0 : index
    %c0_228 = arith.constant 0 : index
    %447 = vector.load %arg9[%c0_227, %c0_228] : memref<32x128xbf16, #tpu.memory_space<vmem>>, vector<32x128xbf16>
    %cst_229 = arith.constant dense<0.000000e+00> : vector<8x128xf32>
    %448 = tpu.matmul %446, %447, %cst_229 {dimension_numbers = #tpu.dot_dimension_numbers<[1], [0], [0], [1], [0, 0, 1, 1], [], []>} : vector<8x32xbf16>, vector<32x128xbf16>, vector<8x128xf32> -> vector<8x128xf32>
    %449 = vector.extract_strided_slice %412 {offsets = [0, 128], sizes = [8, 128], strides = [1, 1]} : vector<8x256xf32> to vector<8x128xf32>
    %450 = arith.addf %448, %449 : vector<8x128xf32>
    %c0_230 = arith.constant 0 : index
    %c0_231 = arith.constant 0 : index
    %451 = vector.load %arg10[%c0_230, %c0_231] : memref<1x128xf32, #tpu.memory_space<vmem>>, vector<1x128xf32>
    %452 = vector.broadcast %451 : vector<1x128xf32> to vector<8x128xf32>
    %453 = arith.addf %450, %452 : vector<8x128xf32>
    %454 = vector.extract_strided_slice %453 {offsets = [0, 0], sizes = [8, 96], strides = [1, 1]} : vector<8x128xf32> to vector<8x96xf32>
    %455 = arith.negf %454 : vector<8x96xf32>
    %456 = math.exp %455 : vector<8x96xf32>
    %cst_232 = arith.constant 1.000000e+00 : f32
    %457 = vector.broadcast %cst_232 : f32 to vector<8x96xf32>
    %458 = arith.addf %457, %456 : vector<8x96xf32>
    %459 = arith.divf %457, %458 : vector<8x96xf32>
    %460 = vector.extract_strided_slice %453 {offsets = [0, 96], sizes = [8, 32], strides = [1, 1]} : vector<8x128xf32> to vector<8x32xf32>
    %461 = math.tanh %460 : vector<8x32xf32>
    %462 = vector.extract_strided_slice %459 {offsets = [0, 0], sizes = [8, 32], strides = [1, 1]} : vector<8x96xf32> to vector<8x32xf32>
    %463 = vector.extract_strided_slice %459 {offsets = [0, 32], sizes = [8, 32], strides = [1, 1]} : vector<8x96xf32> to vector<8x32xf32>
    %464 = vector.extract_strided_slice %459 {offsets = [0, 64], sizes = [8, 32], strides = [1, 1]} : vector<8x96xf32> to vector<8x32xf32>
    %465 = arith.mulf %463, %420 : vector<8x32xf32>
    %466 = arith.mulf %462, %461 : vector<8x32xf32>
    %467 = arith.addf %465, %466 : vector<8x32xf32>
    %468 = math.tanh %467 : vector<8x32xf32>
    %469 = arith.mulf %464, %468 : vector<8x32xf32>
    %c1_233 = arith.constant 1 : index
    %c0_234 = arith.constant 0 : index
    %c0_235 = arith.constant 0 : index
    %470 = vector.load %arg16[%c1_233, %c0_234, %c0_235] : memref<2x8x32xf32, #tpu.memory_space<vmem>>, vector<1x8x32xf32>
    %471 = vector.shape_cast %470 : vector<1x8x32xf32> to vector<8x32xf32>
    %472 = vector.shape_cast %469 : vector<8x32xf32> to vector<1x8x32xf32>
    tpu.vector_store %arg16[%c1_233, %c0_234, %c0_235], %472 {strides = array<i32>} : memref<2x8x32xf32, #tpu.memory_space<vmem>>, vector<1x8x32xf32>,
    %c1_236 = arith.constant 1 : index
    %c0_237 = arith.constant 0 : index
    %c0_238 = arith.constant 0 : index
    %473 = vector.load %arg17[%c1_236, %c0_237, %c0_238] : memref<2x8x32xf32, #tpu.memory_space<vmem>>, vector<1x8x32xf32>
    %474 = vector.shape_cast %473 : vector<1x8x32xf32> to vector<8x32xf32>
    %475 = vector.shape_cast %467 : vector<8x32xf32> to vector<1x8x32xf32>
    tpu.vector_store %arg17[%c1_236, %c0_237, %c0_238], %475 {strides = array<i32>} : memref<2x8x32xf32, #tpu.memory_space<vmem>>, vector<1x8x32xf32>,
    %c5_239 = arith.constant 5 : index
    %c0_240 = arith.constant 0 : index
    %c0_241 = arith.constant 0 : index
    %476 = vector.load %arg13[%c5_239, %c0_240, %c0_241] : memref<8x8x32xf32, #tpu.memory_space<vmem>>, vector<1x8x32xf32>
    %477 = vector.shape_cast %476 : vector<1x8x32xf32> to vector<8x32xf32>
    %478 = vector.shape_cast %469 : vector<8x32xf32> to vector<1x8x32xf32>
    tpu.vector_store %arg13[%c5_239, %c0_240, %c0_241], %478 {strides = array<i32>} : memref<8x8x32xf32, #tpu.memory_space<vmem>>, vector<1x8x32xf32>,
    %c6 = arith.constant 6 : index
    %c0_242 = arith.constant 0 : index
    %c0_243 = arith.constant 0 : index
    %479 = vector.load %arg3[%c6, %c0_242, %c0_243] : memref<8x8x1xf32, #tpu.memory_space<vmem>>, vector<1x8x1xf32>
    %480 = vector.shape_cast %479 : vector<1x8x1xf32> to vector<8x1xf32>
    %c0_244 = arith.constant 0 : index
    %c0_245 = arith.constant 0 : index
    %c0_246 = arith.constant 0 : index
    %481 = vector.load %arg16[%c0_244, %c0_245, %c0_246] : memref<2x8x32xf32, #tpu.memory_space<vmem>>, vector<1x8x32xf32>
    %482 = vector.shape_cast %481 : vector<1x8x32xf32> to vector<8x32xf32>
    %c1_247 = arith.constant 1 : index
    %c0_248 = arith.constant 0 : index
    %c0_249 = arith.constant 0 : index
    %483 = vector.load %arg16[%c1_247, %c0_248, %c0_249] : memref<2x8x32xf32, #tpu.memory_space<vmem>>, vector<1x8x32xf32>
    %484 = vector.shape_cast %483 : vector<1x8x32xf32> to vector<8x32xf32>
    %485 = tpu.concatenate %482, %484 in 1 : vector<8x32xf32>, vector<8x32xf32> -> vector<8x64xf32>
    %486 = vector.broadcast %480 : vector<8x1xf32> to vector<8x64xf32>
    %487 = arith.mulf %485, %486 : vector<8x64xf32>
    %488 = arith.truncf %487 : vector<8x64xf32> to vector<8x64xbf16>
    %c0_250 = arith.constant 0 : index
    %c0_251 = arith.constant 0 : index
    %489 = vector.load %arg8[%c0_250, %c0_251] : memref<64x256xbf16, #tpu.memory_space<vmem>>, vector<64x256xbf16>
    %cst_252 = arith.constant dense<0.000000e+00> : vector<8x256xf32>
    %490 = tpu.matmul %488, %489, %cst_252 {dimension_numbers = #tpu.dot_dimension_numbers<[1], [0], [0], [1], [0, 0, 1, 1], [], []>} : vector<8x64xbf16>, vector<64x256xbf16>, vector<8x256xf32> -> vector<8x256xf32>
    %c0_253 = arith.constant 0 : index
    %c0_254 = arith.constant 0 : index
    %c0_255 = arith.constant 0 : index
    %491 = vector.load %arg17[%c0_253, %c0_254, %c0_255] : memref<2x8x32xf32, #tpu.memory_space<vmem>>, vector<1x8x32xf32>
    %492 = vector.shape_cast %491 : vector<1x8x32xf32> to vector<8x32xf32>
    %493 = vector.broadcast %480 : vector<8x1xf32> to vector<8x32xf32>
    %494 = arith.mulf %492, %493 : vector<8x32xf32>
    %c1_256 = arith.constant 1 : index
    %c0_257 = arith.constant 0 : index
    %c0_258 = arith.constant 0 : index
    %495 = vector.load %arg17[%c1_256, %c0_257, %c0_258] : memref<2x8x32xf32, #tpu.memory_space<vmem>>, vector<1x8x32xf32>
    %496 = vector.shape_cast %495 : vector<1x8x32xf32> to vector<8x32xf32>
    %497 = vector.broadcast %480 : vector<8x1xf32> to vector<8x32xf32>
    %498 = arith.mulf %496, %497 : vector<8x32xf32>
    %499 = vector.extract_strided_slice %10 {offsets = [48, 0], sizes = [8, 128], strides = [1, 1]} : vector<64x128xf32> to vector<8x128xf32>
    %500 = vector.extract_strided_slice %490 {offsets = [0, 0], sizes = [8, 128], strides = [1, 1]} : vector<8x256xf32> to vector<8x128xf32>
    %501 = arith.addf %499, %500 : vector<8x128xf32>
    %502 = vector.extract_strided_slice %501 {offsets = [0, 0], sizes = [8, 96], strides = [1, 1]} : vector<8x128xf32> to vector<8x96xf32>
    %503 = arith.negf %502 : vector<8x96xf32>
    %504 = math.exp %503 : vector<8x96xf32>
    %cst_259 = arith.constant 1.000000e+00 : f32
    %505 = vector.broadcast %cst_259 : f32 to vector<8x96xf32>
    %506 = arith.addf %505, %504 : vector<8x96xf32>
    %507 = arith.divf %505, %506 : vector<8x96xf32>
    %508 = vector.extract_strided_slice %501 {offsets = [0, 96], sizes = [8, 32], strides = [1, 1]} : vector<8x128xf32> to vector<8x32xf32>
    %509 = math.tanh %508 : vector<8x32xf32>
    %510 = vector.extract_strided_slice %507 {offsets = [0, 0], sizes = [8, 32], strides = [1, 1]} : vector<8x96xf32> to vector<8x32xf32>
    %511 = vector.extract_strided_slice %507 {offsets = [0, 32], sizes = [8, 32], strides = [1, 1]} : vector<8x96xf32> to vector<8x32xf32>
    %512 = vector.extract_strided_slice %507 {offsets = [0, 64], sizes = [8, 32], strides = [1, 1]} : vector<8x96xf32> to vector<8x32xf32>
    %513 = arith.mulf %511, %494 : vector<8x32xf32>
    %514 = arith.mulf %510, %509 : vector<8x32xf32>
    %515 = arith.addf %513, %514 : vector<8x32xf32>
    %516 = math.tanh %515 : vector<8x32xf32>
    %517 = arith.mulf %512, %516 : vector<8x32xf32>
    %c0_260 = arith.constant 0 : index
    %c0_261 = arith.constant 0 : index
    %c0_262 = arith.constant 0 : index
    %518 = vector.load %arg16[%c0_260, %c0_261, %c0_262] : memref<2x8x32xf32, #tpu.memory_space<vmem>>, vector<1x8x32xf32>
    %519 = vector.shape_cast %518 : vector<1x8x32xf32> to vector<8x32xf32>
    %520 = vector.shape_cast %517 : vector<8x32xf32> to vector<1x8x32xf32>
    tpu.vector_store %arg16[%c0_260, %c0_261, %c0_262], %520 {strides = array<i32>} : memref<2x8x32xf32, #tpu.memory_space<vmem>>, vector<1x8x32xf32>,
    %c0_263 = arith.constant 0 : index
    %c0_264 = arith.constant 0 : index
    %c0_265 = arith.constant 0 : index
    %521 = vector.load %arg17[%c0_263, %c0_264, %c0_265] : memref<2x8x32xf32, #tpu.memory_space<vmem>>, vector<1x8x32xf32>
    %522 = vector.shape_cast %521 : vector<1x8x32xf32> to vector<8x32xf32>
    %523 = vector.shape_cast %515 : vector<8x32xf32> to vector<1x8x32xf32>
    tpu.vector_store %arg17[%c0_263, %c0_264, %c0_265], %523 {strides = array<i32>} : memref<2x8x32xf32, #tpu.memory_space<vmem>>, vector<1x8x32xf32>,
    %524 = arith.truncf %517 : vector<8x32xf32> to vector<8x32xbf16>
    %c0_266 = arith.constant 0 : index
    %c0_267 = arith.constant 0 : index
    %525 = vector.load %arg9[%c0_266, %c0_267] : memref<32x128xbf16, #tpu.memory_space<vmem>>, vector<32x128xbf16>
    %cst_268 = arith.constant dense<0.000000e+00> : vector<8x128xf32>
    %526 = tpu.matmul %524, %525, %cst_268 {dimension_numbers = #tpu.dot_dimension_numbers<[1], [0], [0], [1], [0, 0, 1, 1], [], []>} : vector<8x32xbf16>, vector<32x128xbf16>, vector<8x128xf32> -> vector<8x128xf32>
    %527 = vector.extract_strided_slice %490 {offsets = [0, 128], sizes = [8, 128], strides = [1, 1]} : vector<8x256xf32> to vector<8x128xf32>
    %528 = arith.addf %526, %527 : vector<8x128xf32>
    %c0_269 = arith.constant 0 : index
    %c0_270 = arith.constant 0 : index
    %529 = vector.load %arg10[%c0_269, %c0_270] : memref<1x128xf32, #tpu.memory_space<vmem>>, vector<1x128xf32>
    %530 = vector.broadcast %529 : vector<1x128xf32> to vector<8x128xf32>
    %531 = arith.addf %528, %530 : vector<8x128xf32>
    %532 = vector.extract_strided_slice %531 {offsets = [0, 0], sizes = [8, 96], strides = [1, 1]} : vector<8x128xf32> to vector<8x96xf32>
    %533 = arith.negf %532 : vector<8x96xf32>
    %534 = math.exp %533 : vector<8x96xf32>
    %cst_271 = arith.constant 1.000000e+00 : f32
    %535 = vector.broadcast %cst_271 : f32 to vector<8x96xf32>
    %536 = arith.addf %535, %534 : vector<8x96xf32>
    %537 = arith.divf %535, %536 : vector<8x96xf32>
    %538 = vector.extract_strided_slice %531 {offsets = [0, 96], sizes = [8, 32], strides = [1, 1]} : vector<8x128xf32> to vector<8x32xf32>
    %539 = math.tanh %538 : vector<8x32xf32>
    %540 = vector.extract_strided_slice %537 {offsets = [0, 0], sizes = [8, 32], strides = [1, 1]} : vector<8x96xf32> to vector<8x32xf32>
    %541 = vector.extract_strided_slice %537 {offsets = [0, 32], sizes = [8, 32], strides = [1, 1]} : vector<8x96xf32> to vector<8x32xf32>
    %542 = vector.extract_strided_slice %537 {offsets = [0, 64], sizes = [8, 32], strides = [1, 1]} : vector<8x96xf32> to vector<8x32xf32>
    %543 = arith.mulf %541, %498 : vector<8x32xf32>
    %544 = arith.mulf %540, %539 : vector<8x32xf32>
    %545 = arith.addf %543, %544 : vector<8x32xf32>
    %546 = math.tanh %545 : vector<8x32xf32>
    %547 = arith.mulf %542, %546 : vector<8x32xf32>
    %c1_272 = arith.constant 1 : index
    %c0_273 = arith.constant 0 : index
    %c0_274 = arith.constant 0 : index
    %548 = vector.load %arg16[%c1_272, %c0_273, %c0_274] : memref<2x8x32xf32, #tpu.memory_space<vmem>>, vector<1x8x32xf32>
    %549 = vector.shape_cast %548 : vector<1x8x32xf32> to vector<8x32xf32>
    %550 = vector.shape_cast %547 : vector<8x32xf32> to vector<1x8x32xf32>
    tpu.vector_store %arg16[%c1_272, %c0_273, %c0_274], %550 {strides = array<i32>} : memref<2x8x32xf32, #tpu.memory_space<vmem>>, vector<1x8x32xf32>,
    %c1_275 = arith.constant 1 : index
    %c0_276 = arith.constant 0 : index
    %c0_277 = arith.constant 0 : index
    %551 = vector.load %arg17[%c1_275, %c0_276, %c0_277] : memref<2x8x32xf32, #tpu.memory_space<vmem>>, vector<1x8x32xf32>
    %552 = vector.shape_cast %551 : vector<1x8x32xf32> to vector<8x32xf32>
    %553 = vector.shape_cast %545 : vector<8x32xf32> to vector<1x8x32xf32>
    tpu.vector_store %arg17[%c1_275, %c0_276, %c0_277], %553 {strides = array<i32>} : memref<2x8x32xf32, #tpu.memory_space<vmem>>, vector<1x8x32xf32>,
    %c6_278 = arith.constant 6 : index
    %c0_279 = arith.constant 0 : index
    %c0_280 = arith.constant 0 : index
    %554 = vector.load %arg13[%c6_278, %c0_279, %c0_280] : memref<8x8x32xf32, #tpu.memory_space<vmem>>, vector<1x8x32xf32>
    %555 = vector.shape_cast %554 : vector<1x8x32xf32> to vector<8x32xf32>
    %556 = vector.shape_cast %547 : vector<8x32xf32> to vector<1x8x32xf32>
    tpu.vector_store %arg13[%c6_278, %c0_279, %c0_280], %556 {strides = array<i32>} : memref<8x8x32xf32, #tpu.memory_space<vmem>>, vector<1x8x32xf32>,
    %c7 = arith.constant 7 : index
    %c0_281 = arith.constant 0 : index
    %c0_282 = arith.constant 0 : index
    %557 = vector.load %arg3[%c7, %c0_281, %c0_282] : memref<8x8x1xf32, #tpu.memory_space<vmem>>, vector<1x8x1xf32>
    %558 = vector.shape_cast %557 : vector<1x8x1xf32> to vector<8x1xf32>
    %c0_283 = arith.constant 0 : index
    %c0_284 = arith.constant 0 : index
    %c0_285 = arith.constant 0 : index
    %559 = vector.load %arg16[%c0_283, %c0_284, %c0_285] : memref<2x8x32xf32, #tpu.memory_space<vmem>>, vector<1x8x32xf32>
    %560 = vector.shape_cast %559 : vector<1x8x32xf32> to vector<8x32xf32>
    %c1_286 = arith.constant 1 : index
    %c0_287 = arith.constant 0 : index
    %c0_288 = arith.constant 0 : index
    %561 = vector.load %arg16[%c1_286, %c0_287, %c0_288] : memref<2x8x32xf32, #tpu.memory_space<vmem>>, vector<1x8x32xf32>
    %562 = vector.shape_cast %561 : vector<1x8x32xf32> to vector<8x32xf32>
    %563 = tpu.concatenate %560, %562 in 1 : vector<8x32xf32>, vector<8x32xf32> -> vector<8x64xf32>
    %564 = vector.broadcast %558 : vector<8x1xf32> to vector<8x64xf32>
    %565 = arith.mulf %563, %564 : vector<8x64xf32>
    %566 = arith.truncf %565 : vector<8x64xf32> to vector<8x64xbf16>
    %c0_289 = arith.constant 0 : index
    %c0_290 = arith.constant 0 : index
    %567 = vector.load %arg8[%c0_289, %c0_290] : memref<64x256xbf16, #tpu.memory_space<vmem>>, vector<64x256xbf16>
    %cst_291 = arith.constant dense<0.000000e+00> : vector<8x256xf32>
    %568 = tpu.matmul %566, %567, %cst_291 {dimension_numbers = #tpu.dot_dimension_numbers<[1], [0], [0], [1], [0, 0, 1, 1], [], []>} : vector<8x64xbf16>, vector<64x256xbf16>, vector<8x256xf32> -> vector<8x256xf32>
    %c0_292 = arith.constant 0 : index
    %c0_293 = arith.constant 0 : index
    %c0_294 = arith.constant 0 : index
    %569 = vector.load %arg17[%c0_292, %c0_293, %c0_294] : memref<2x8x32xf32, #tpu.memory_space<vmem>>, vector<1x8x32xf32>
    %570 = vector.shape_cast %569 : vector<1x8x32xf32> to vector<8x32xf32>
    %571 = vector.broadcast %558 : vector<8x1xf32> to vector<8x32xf32>
    %572 = arith.mulf %570, %571 : vector<8x32xf32>
    %c1_295 = arith.constant 1 : index
    %c0_296 = arith.constant 0 : index
    %c0_297 = arith.constant 0 : index
    %573 = vector.load %arg17[%c1_295, %c0_296, %c0_297] : memref<2x8x32xf32, #tpu.memory_space<vmem>>, vector<1x8x32xf32>
    %574 = vector.shape_cast %573 : vector<1x8x32xf32> to vector<8x32xf32>
    %575 = vector.broadcast %558 : vector<8x1xf32> to vector<8x32xf32>
    %576 = arith.mulf %574, %575 : vector<8x32xf32>
    %577 = vector.extract_strided_slice %10 {offsets = [56, 0], sizes = [8, 128], strides = [1, 1]} : vector<64x128xf32> to vector<8x128xf32>
    %578 = vector.extract_strided_slice %568 {offsets = [0, 0], sizes = [8, 128], strides = [1, 1]} : vector<8x256xf32> to vector<8x128xf32>
    %579 = arith.addf %577, %578 : vector<8x128xf32>
    %580 = vector.extract_strided_slice %579 {offsets = [0, 0], sizes = [8, 96], strides = [1, 1]} : vector<8x128xf32> to vector<8x96xf32>
    %581 = arith.negf %580 : vector<8x96xf32>
    %582 = math.exp %581 : vector<8x96xf32>
    %cst_298 = arith.constant 1.000000e+00 : f32
    %583 = vector.broadcast %cst_298 : f32 to vector<8x96xf32>
    %584 = arith.addf %583, %582 : vector<8x96xf32>
    %585 = arith.divf %583, %584 : vector<8x96xf32>
    %586 = vector.extract_strided_slice %579 {offsets = [0, 96], sizes = [8, 32], strides = [1, 1]} : vector<8x128xf32> to vector<8x32xf32>
    %587 = math.tanh %586 : vector<8x32xf32>
    %588 = vector.extract_strided_slice %585 {offsets = [0, 0], sizes = [8, 32], strides = [1, 1]} : vector<8x96xf32> to vector<8x32xf32>
    %589 = vector.extract_strided_slice %585 {offsets = [0, 32], sizes = [8, 32], strides = [1, 1]} : vector<8x96xf32> to vector<8x32xf32>
    %590 = vector.extract_strided_slice %585 {offsets = [0, 64], sizes = [8, 32], strides = [1, 1]} : vector<8x96xf32> to vector<8x32xf32>
    %591 = arith.mulf %589, %572 : vector<8x32xf32>
    %592 = arith.mulf %588, %587 : vector<8x32xf32>
    %593 = arith.addf %591, %592 : vector<8x32xf32>
    %594 = math.tanh %593 : vector<8x32xf32>
    %595 = arith.mulf %590, %594 : vector<8x32xf32>
    %c0_299 = arith.constant 0 : index
    %c0_300 = arith.constant 0 : index
    %c0_301 = arith.constant 0 : index
    %596 = vector.load %arg16[%c0_299, %c0_300, %c0_301] : memref<2x8x32xf32, #tpu.memory_space<vmem>>, vector<1x8x32xf32>
    %597 = vector.shape_cast %596 : vector<1x8x32xf32> to vector<8x32xf32>
    %598 = vector.shape_cast %595 : vector<8x32xf32> to vector<1x8x32xf32>
    tpu.vector_store %arg16[%c0_299, %c0_300, %c0_301], %598 {strides = array<i32>} : memref<2x8x32xf32, #tpu.memory_space<vmem>>, vector<1x8x32xf32>,
    %c0_302 = arith.constant 0 : index
    %c0_303 = arith.constant 0 : index
    %c0_304 = arith.constant 0 : index
    %599 = vector.load %arg17[%c0_302, %c0_303, %c0_304] : memref<2x8x32xf32, #tpu.memory_space<vmem>>, vector<1x8x32xf32>
    %600 = vector.shape_cast %599 : vector<1x8x32xf32> to vector<8x32xf32>
    %601 = vector.shape_cast %593 : vector<8x32xf32> to vector<1x8x32xf32>
    tpu.vector_store %arg17[%c0_302, %c0_303, %c0_304], %601 {strides = array<i32>} : memref<2x8x32xf32, #tpu.memory_space<vmem>>, vector<1x8x32xf32>,
    %602 = arith.truncf %595 : vector<8x32xf32> to vector<8x32xbf16>
    %c0_305 = arith.constant 0 : index
    %c0_306 = arith.constant 0 : index
    %603 = vector.load %arg9[%c0_305, %c0_306] : memref<32x128xbf16, #tpu.memory_space<vmem>>, vector<32x128xbf16>
    %cst_307 = arith.constant dense<0.000000e+00> : vector<8x128xf32>
    %604 = tpu.matmul %602, %603, %cst_307 {dimension_numbers = #tpu.dot_dimension_numbers<[1], [0], [0], [1], [0, 0, 1, 1], [], []>} : vector<8x32xbf16>, vector<32x128xbf16>, vector<8x128xf32> -> vector<8x128xf32>
    %605 = vector.extract_strided_slice %568 {offsets = [0, 128], sizes = [8, 128], strides = [1, 1]} : vector<8x256xf32> to vector<8x128xf32>
    %606 = arith.addf %604, %605 : vector<8x128xf32>
    %c0_308 = arith.constant 0 : index
    %c0_309 = arith.constant 0 : index
    %607 = vector.load %arg10[%c0_308, %c0_309] : memref<1x128xf32, #tpu.memory_space<vmem>>, vector<1x128xf32>
    %608 = vector.broadcast %607 : vector<1x128xf32> to vector<8x128xf32>
    %609 = arith.addf %606, %608 : vector<8x128xf32>
    %610 = vector.extract_strided_slice %609 {offsets = [0, 0], sizes = [8, 96], strides = [1, 1]} : vector<8x128xf32> to vector<8x96xf32>
    %611 = arith.negf %610 : vector<8x96xf32>
    %612 = math.exp %611 : vector<8x96xf32>
    %cst_310 = arith.constant 1.000000e+00 : f32
    %613 = vector.broadcast %cst_310 : f32 to vector<8x96xf32>
    %614 = arith.addf %613, %612 : vector<8x96xf32>
    %615 = arith.divf %613, %614 : vector<8x96xf32>
    %616 = vector.extract_strided_slice %609 {offsets = [0, 96], sizes = [8, 32], strides = [1, 1]} : vector<8x128xf32> to vector<8x32xf32>
    %617 = math.tanh %616 : vector<8x32xf32>
    %618 = vector.extract_strided_slice %615 {offsets = [0, 0], sizes = [8, 32], strides = [1, 1]} : vector<8x96xf32> to vector<8x32xf32>
    %619 = vector.extract_strided_slice %615 {offsets = [0, 32], sizes = [8, 32], strides = [1, 1]} : vector<8x96xf32> to vector<8x32xf32>
    %620 = vector.extract_strided_slice %615 {offsets = [0, 64], sizes = [8, 32], strides = [1, 1]} : vector<8x96xf32> to vector<8x32xf32>
    %621 = arith.mulf %619, %576 : vector<8x32xf32>
    %622 = arith.mulf %618, %617 : vector<8x32xf32>
    %623 = arith.addf %621, %622 : vector<8x32xf32>
    %624 = math.tanh %623 : vector<8x32xf32>
    %625 = arith.mulf %620, %624 : vector<8x32xf32>
    %c1_311 = arith.constant 1 : index
    %c0_312 = arith.constant 0 : index
    %c0_313 = arith.constant 0 : index
    %626 = vector.load %arg16[%c1_311, %c0_312, %c0_313] : memref<2x8x32xf32, #tpu.memory_space<vmem>>, vector<1x8x32xf32>
    %627 = vector.shape_cast %626 : vector<1x8x32xf32> to vector<8x32xf32>
    %628 = vector.shape_cast %625 : vector<8x32xf32> to vector<1x8x32xf32>
    tpu.vector_store %arg16[%c1_311, %c0_312, %c0_313], %628 {strides = array<i32>} : memref<2x8x32xf32, #tpu.memory_space<vmem>>, vector<1x8x32xf32>,
    %c1_314 = arith.constant 1 : index
    %c0_315 = arith.constant 0 : index
    %c0_316 = arith.constant 0 : index
    %629 = vector.load %arg17[%c1_314, %c0_315, %c0_316] : memref<2x8x32xf32, #tpu.memory_space<vmem>>, vector<1x8x32xf32>
    %630 = vector.shape_cast %629 : vector<1x8x32xf32> to vector<8x32xf32>
    %631 = vector.shape_cast %623 : vector<8x32xf32> to vector<1x8x32xf32>
    tpu.vector_store %arg17[%c1_314, %c0_315, %c0_316], %631 {strides = array<i32>} : memref<2x8x32xf32, #tpu.memory_space<vmem>>, vector<1x8x32xf32>,
    %c7_317 = arith.constant 7 : index
    %c0_318 = arith.constant 0 : index
    %c0_319 = arith.constant 0 : index
    %632 = vector.load %arg13[%c7_317, %c0_318, %c0_319] : memref<8x8x32xf32, #tpu.memory_space<vmem>>, vector<1x8x32xf32>
    %633 = vector.shape_cast %632 : vector<1x8x32xf32> to vector<8x32xf32>
    %634 = vector.shape_cast %625 : vector<8x32xf32> to vector<1x8x32xf32>
    tpu.vector_store %arg13[%c7_317, %c0_318, %c0_319], %634 {strides = array<i32>} : memref<8x8x32xf32, #tpu.memory_space<vmem>>, vector<1x8x32xf32>,
    %c0_320 = arith.constant 0 : index
    %c0_321 = arith.constant 0 : index
    %c0_322 = arith.constant 0 : index
    %635 = vector.load %arg13[%c0_320, %c0_321, %c0_322] : memref<8x8x32xf32, #tpu.memory_space<vmem>>, vector<8x8x32xf32>
    %cst_323 = arith.constant dense<0.000000e+00> : vector<8x8xf32>
    %636 = vector.multi_reduction <add>, %635, %cst_323 [2] : vector<8x8x32xf32> to vector<8x8xf32>
    %637 = vector.shape_cast %636 : vector<8x8xf32> to vector<8x8x1xf32>
    %cst_324 = arith.constant 3.200000e+01 : f32
    %638 = vector.broadcast %cst_324 : f32 to vector<8x8x1xf32>
    %639 = arith.divf %637, %638 : vector<8x8x1xf32>
    %640 = vector.broadcast %639 : vector<8x8x1xf32> to vector<8x8x32xf32>
    %641 = arith.subf %635, %640 : vector<8x8x32xf32>
    %642 = arith.mulf %641, %641 : vector<8x8x32xf32>
    %cst_325 = arith.constant dense<0.000000e+00> : vector<8x8xf32>
    %643 = vector.multi_reduction <add>, %642, %cst_325 [2] : vector<8x8x32xf32> to vector<8x8xf32>
    %644 = vector.shape_cast %643 : vector<8x8xf32> to vector<8x8x1xf32>
    %cst_326 = arith.constant 3.200000e+01 : f32
    %645 = vector.broadcast %cst_326 : f32 to vector<8x8x1xf32>
    %646 = arith.divf %644, %645 : vector<8x8x1xf32>
    %647 = vector.broadcast %639 : vector<8x8x1xf32> to vector<8x8x32xf32>
    %648 = arith.subf %635, %647 : vector<8x8x32xf32>
    %cst_327 = arith.constant 9.99999974E-6 : f32
    %649 = vector.broadcast %cst_327 : f32 to vector<8x8x1xf32>
    %650 = arith.addf %646, %649 : vector<8x8x1xf32>
    %651 = math.rsqrt %650 : vector<8x8x1xf32>
    %652 = vector.broadcast %651 : vector<8x8x1xf32> to vector<8x8x32xf32>
    %653 = arith.mulf %648, %652 : vector<8x8x32xf32>
    %c0_328 = arith.constant 0 : index
    %c0_329 = arith.constant 0 : index
    %654 = vector.load %arg11[%c0_328, %c0_329] : memref<1x32xf32, #tpu.memory_space<vmem>>, vector<1x32xf32>
    %655 = vector.shape_cast %654 : vector<1x32xf32> to vector<1x1x32xf32>
    %656 = vector.broadcast %655 : vector<1x1x32xf32> to vector<8x8x32xf32>
    %657 = arith.mulf %653, %656 : vector<8x8x32xf32>
    %c0_330 = arith.constant 0 : index
    %c0_331 = arith.constant 0 : index
    %658 = vector.load %arg12[%c0_330, %c0_331] : memref<1x32xf32, #tpu.memory_space<vmem>>, vector<1x32xf32>
    %659 = vector.shape_cast %658 : vector<1x32xf32> to vector<1x1x32xf32>
    %660 = vector.broadcast %659 : vector<1x1x32xf32> to vector<8x8x32xf32>
    %661 = arith.addf %657, %660 : vector<8x8x32xf32>
    %c0_332 = arith.constant 0 : index
    %c0_333 = arith.constant 0 : index
    %c0_334 = arith.constant 0 : index
    %662 = vector.load %arg13[%c0_332, %c0_333, %c0_334] : memref<8x8x32xf32, #tpu.memory_space<vmem>>, vector<8x8x32xf32>
    tpu.vector_store %arg13[%c0_332, %c0_333, %c0_334], %661 {strides = array<i32>} : memref<8x8x32xf32, #tpu.memory_space<vmem>>, vector<8x8x32xf32>,
    %c1_i32 = arith.constant 1 : i32
    %663 = arith.cmpi eq, %arg1, %c1_i32 : i32
    %664 = arith.extui %663 : i1 to i32
    %c0_i32_335 = arith.constant 0 : i32
    %665 = arith.cmpi ne, %664, %c0_i32_335 : i32
    scf.if %665 {
      %c0_336 = arith.constant 0 : index
      %c0_337 = arith.constant 0 : index
      %c0_338 = arith.constant 0 : index
      %666 = vector.load %arg16[%c0_336, %c0_337, %c0_338] : memref<2x8x32xf32, #tpu.memory_space<vmem>>, vector<2x8x32xf32>
      %c0_339 = arith.constant 0 : index
      %c0_340 = arith.constant 0 : index
      %c0_341 = arith.constant 0 : index
      %667 = vector.load %arg14[%c0_339, %c0_340, %c0_341] : memref<2x8x32xf32, #tpu.memory_space<vmem>>, vector<2x8x32xf32>
      tpu.vector_store %arg14[%c0_339, %c0_340, %c0_341], %666 {strides = array<i32>} : memref<2x8x32xf32, #tpu.memory_space<vmem>>, vector<2x8x32xf32>,
      %c0_342 = arith.constant 0 : index
      %c0_343 = arith.constant 0 : index
      %c0_344 = arith.constant 0 : index
      %668 = vector.load %arg17[%c0_342, %c0_343, %c0_344] : memref<2x8x32xf32, #tpu.memory_space<vmem>>, vector<2x8x32xf32>
      %c0_345 = arith.constant 0 : index
      %c0_346 = arith.constant 0 : index
      %c0_347 = arith.constant 0 : index
      %669 = vector.load %arg15[%c0_345, %c0_346, %c0_347] : memref<2x8x32xf32, #tpu.memory_space<vmem>>, vector<2x8x32xf32>
      tpu.vector_store %arg15[%c0_345, %c0_346, %c0_347], %668 {strides = array<i32>} : memref<2x8x32xf32, #tpu.memory_space<vmem>>, vector<2x8x32xf32>,
    } else {
    }
    return
  }
  func.func @transform_0(%arg0: i32, %arg1: i32) -> (i32, i32, i32) {
    %c0_i32 = arith.constant 0 : i32
    %c0_i32_0 = arith.constant 0 : i32
    return %arg1, %arg0, %c0_i32 : i32, i32, i32
  }
  func.func @transform_1(%arg0: i32, %arg1: i32) -> (i32, i32, i32) {
    %c0_i32 = arith.constant 0 : i32
    %c0_i32_0 = arith.constant 0 : i32
    return %arg1, %arg0, %c0_i32 : i32, i32, i32
  }
  func.func @transform_2(%arg0: i32, %arg1: i32) -> (i32, i32, i32) {
    %c0_i32 = arith.constant 0 : i32
    %c0_i32_0 = arith.constant 0 : i32
    %c0_i32_1 = arith.constant 0 : i32
    return %c0_i32, %arg0, %c0_i32_0 : i32, i32, i32
  }
  func.func @transform_3(%arg0: i32, %arg1: i32) -> (i32, i32, i32) {
    %c0_i32 = arith.constant 0 : i32
    %c0_i32_0 = arith.constant 0 : i32
    %c0_i32_1 = arith.constant 0 : i32
    return %c0_i32, %arg0, %c0_i32_0 : i32, i32, i32
  }
  func.func @transform_4(%arg0: i32, %arg1: i32) -> (i32, i32) {
    %c0_i32 = arith.constant 0 : i32
    %c0_i32_0 = arith.constant 0 : i32
    %c0_i32_1 = arith.constant 0 : i32
    return %c0_i32, %c0_i32_0 : i32, i32
  }
  func.func @transform_5(%arg0: i32, %arg1: i32) -> (i32, i32) {
    %c0_i32 = arith.constant 0 : i32
    %c0_i32_0 = arith.constant 0 : i32
    %c0_i32_1 = arith.constant 0 : i32
    return %c0_i32, %c0_i32_0 : i32, i32
  }
  func.func @transform_6(%arg0: i32, %arg1: i32) -> (i32, i32) {
    %c0_i32 = arith.constant 0 : i32
    %c0_i32_0 = arith.constant 0 : i32
    %c0_i32_1 = arith.constant 0 : i32
    return %c0_i32, %c0_i32_0 : i32, i32
  }
  func.func @transform_7(%arg0: i32, %arg1: i32) -> (i32, i32) {
    %c0_i32 = arith.constant 0 : i32
    %c0_i32_0 = arith.constant 0 : i32
    %c0_i32_1 = arith.constant 0 : i32
    return %c0_i32, %c0_i32_0 : i32, i32
  }
  func.func @transform_8(%arg0: i32, %arg1: i32) -> (i32, i32) {
    %c0_i32 = arith.constant 0 : i32
    %c0_i32_0 = arith.constant 0 : i32
    %c0_i32_1 = arith.constant 0 : i32
    return %c0_i32, %c0_i32_0 : i32, i32
  }
  func.func @transform_9(%arg0: i32, %arg1: i32) -> (i32, i32) {
    %c0_i32 = arith.constant 0 : i32
    %c0_i32_0 = arith.constant 0 : i32
    %c0_i32_1 = arith.constant 0 : i32
    return %c0_i32, %c0_i32_0 : i32, i32
  }
  func.func @transform_10(%arg0: i32, %arg1: i32) -> (i32, i32) {
    %c0_i32 = arith.constant 0 : i32
    %c0_i32_0 = arith.constant 0 : i32
    %c0_i32_1 = arith.constant 0 : i32
    return %c0_i32, %c0_i32_0 : i32, i32
  }
  func.func @transform_11(%arg0: i32, %arg1: i32) -> (i32, i32, i32) {
    %c0_i32 = arith.constant 0 : i32
    %c0_i32_0 = arith.constant 0 : i32
    return %arg1, %arg0, %c0_i32 : i32, i32, i32
  }
  func.func @transform_12(%arg0: i32, %arg1: i32) -> (i32, i32, i32) {
    %c0_i32 = arith.constant 0 : i32
    %c0_i32_0 = arith.constant 0 : i32
    %c0_i32_1 = arith.constant 0 : i32
    return %c0_i32, %arg0, %c0_i32_0 : i32, i32, i32
  }
  func.func @transform_13(%arg0: i32, %arg1: i32) -> (i32, i32, i32) {
    %c0_i32 = arith.constant 0 : i32
    %c0_i32_0 = arith.constant 0 : i32
    %c0_i32_1 = arith.constant 0 : i32
    return %c0_i32, %arg0, %c0_i32_0 : i32, i32, i32
  }
}

</mosaic_0001>

<llo_original>
// kernel: _lambda_.1
$region0: #{_lambda_.1}
  #allocation0 [shape = 'u32[]', space=smem, size = 0x4, offset = 0x4, fixed_abs, tag = 'smem constant byte address 0x4 - core index']
  #allocation1 [shape = 'u32[144,128]{1,0:T(1,128)}', space=vmem, size = 0x12000, scoped, tag = 'internal scratch']
  #allocation2 [shape = 'f32[2,8,32]{2,1,0:T(8,128)}', space=vmem, size = 0x2000, scoped, tag = 'scratch operand']
  #allocation3 [shape = 'f32[2,8,32]{2,1,0:T(8,128)}', space=vmem, size = 0x2000, scoped, tag = 'scratch operand']
  %s0 = inlined_call_operand.vmem [shape: f32[16,16,32], index: 0, kind: input, shape index: {}]
  %s1 = inlined_call_operand.vmem [shape: f32[16,16,1], index: 1, kind: input, shape index: {}]
  %s2 = inlined_call_operand.vmem [shape: f32[2,16,32], index: 2, kind: input, shape index: {}]
  %s3 = inlined_call_operand.vmem [shape: f32[2,16,32], index: 3, kind: input, shape index: {}]
  %s4 = inlined_call_operand.vmem [shape: bf16[32,128], index: 4, kind: input, shape index: {}]
  %s5 = inlined_call_operand.vmem [shape: f32[1,128], index: 5, kind: input, shape index: {}]
  %s6 = inlined_call_operand.vmem [shape: bf16[64,256], index: 6, kind: input, shape index: {}]
  %s7 = inlined_call_operand.vmem [shape: bf16[32,128], index: 7, kind: input, shape index: {}]
  %s8 = inlined_call_operand.vmem [shape: f32[1,128], index: 8, kind: input, shape index: {}]
  %s9 = inlined_call_operand.vmem [shape: f32[1,32], index: 9, kind: input, shape index: {}]
  %s10 = inlined_call_operand.vmem [shape: f32[1,32], index: 10, kind: input, shape index: {}]
  %s11 = inlined_call_operand.vmem [shape: f32[16,16,32], index: 11, kind: output, shape index: {0}]
  %s12 = inlined_call_operand.vmem [shape: f32[2,16,32], index: 12, kind: output, shape index: {1}]
  %s13 = inlined_call_operand.vmem [shape: f32[2,16,32], index: 13, kind: output, shape index: {2}]
  %14 = xla_tuple %s11, %s12, %s13
  %s15 = sld [smem:[#allocation0]]
  $region355: #{_lambda_.1} parent=0
    _
  %s17 = ssub.s32 1, %s15
  %s18 = scalar_select 0, %s17, %s15
  $region1: #{_lambda_.1} parent=0
    #allocation4 [shape = 'u8[65536]{0}', space=vmem, size = 0x10000, scoped, tag = 'input window, operand 0']
    #allocation5 [shape = 'u8[65536]{0}', space=vmem, size = 0x10000, scoped, tag = 'input window, operand 1']
    #allocation6 [shape = 'u8[16384]{0}', space=vmem, size = 0x4000, scoped, tag = 'input window, operand 2']
    #allocation7 [shape = 'u8[16384]{0}', space=vmem, size = 0x4000, scoped, tag = 'input window, operand 3']
    #allocation8 [shape = 'u8[65536]{0}', space=vmem, size = 0x10000, scoped, tag = 'output window, operand 0']
    #allocation9 [shape = 'u8[16384]{0}', space=vmem, size = 0x4000, scoped, tag = 'output window, operand 1']
    #allocation10 [shape = 'u8[16384]{0}', space=vmem, size = 0x4000, scoped, tag = 'output window, operand 2']
    loop: start=0, step=1, limit=6
    $region2: #{_lambda_.1} parent=1 // loop_pre_header
      _
    $region3: #{_lambda_.1} parent=1 // loop_header
      %s20 = sphi 0, %s24
      %p21 = scmp.ge.s32.totalorder %s20, 6
      %s27 = sphi 0, %s39
      %s28 = sphi 0, %s35
      %s29 = sphi 0, %s27
      %s30 = sphi 0, %s28
      %s31 = sphi 0, %s29
      %s32 = sphi 0, %s30
      %s44 = sphi 0, %s46
      %s47 = sphi 0, %s44
      %s48 = sphi 0, %s47
      %s64 = sphi 0, %s48
      %s72 = sphi 0, %s74
      %s75 = sphi 0, %s72
      %s76 = sphi 0, %s75
      %s92 = sphi 0, %s76
      %s98 = sphi 0, %s100
      %s101 = sphi 0, %s98
      %s102 = sphi 0, %s101
      %s118 = sphi 0, %s102
      %s124 = sphi 0, %s126
      %s127 = sphi 0, %s124
      %s128 = sphi 0, %s127
      %s144 = sphi 0, %s128
      %s148 = sphi 0, %s148
      %s150 = sphi 0, %s148
      %s151 = sphi 0, %s150
      %s165 = sphi 0, %s151
      %s169 = sphi 0, %s169
      %s171 = sphi 0, %s169
      %s172 = sphi 0, %s171
      %s186 = sphi 0, %s172
      %s190 = sphi 0, %s190
      %s192 = sphi 0, %s190
      %s193 = sphi 0, %s192
      %s207 = sphi 0, %s193
      %s211 = sphi 0, %s211
      %s213 = sphi 0, %s211
      %s214 = sphi 0, %s213
      %s228 = sphi 0, %s214
      %s232 = sphi 0, %s232
      %s234 = sphi 0, %s232
      %s235 = sphi 0, %s234
      %s249 = sphi 0, %s235
      %s253 = sphi 0, %s253
      %s255 = sphi 0, %s253
      %s256 = sphi 0, %s255
      %s270 = sphi 0, %s256
      %s274 = sphi 0, %s274
      %s276 = sphi 0, %s274
      %s277 = sphi 0, %s276
      %s291 = sphi 0, %s277
      %s299 = sphi 0, %s301
      %s302 = sphi 0, %s299
      %s303 = sphi 0, %s302
      %s319 = sphi 0, %s303
      %s325 = sphi 0, %s327
      %s328 = sphi 0, %s325
      %s329 = sphi 0, %s328
      %s345 = sphi 0, %s329
      %s351 = sphi 0, %s353
      %s354 = sphi 0, %s351
      %s355 = sphi 0, %s354
      %s371 = sphi 0, %s355
    $region4: #{_lambda_.1} parent=1 // loop_header_branch
      %23 = sbr.rel (%p21) target = $region8
    $region5: #{_lambda_.1} parent=1 // loop_body
      %s25 = ssub.s32 %s20, 1
      %s26 = ssub.s32 %s20, 2
      %s33 = sadd.s32 1, %s28
      %p34 = scmp.ge.s32.totalorder %s33, 2
      %s35 = scalar_select %p34, 0, %s33
      %s36 = sadd.s32 1, %s27
      %s37 = scalar_select %p34, %s36, %s27
      %p38 = scmp.ge.s32.totalorder %s37, 2
      %s39 = scalar_select %p38, 0, %s37
      %s40 = ssub.s32 %s28, %s35
      %s41 = ssub.s32 %s27, %s39
      %s42 = sor.u32 %s40, %s41
      %p43 = scmp.eq.s32.totalorder %s42, 0
      %s45 = sadd.s32 %s44, 1
      %s46 = scalar_select %p43, %s44, %s45
      %p49 = pneg %p43
      %p50 = scmp.eq.s32.totalorder %s20, 3
      %p51 = por %p49, %p50
      %p52 = scmp.ne.s32.totalorder %s44, %s47
      %p53 = scmp.eq.s32.totalorder %s20, 0
      %p54 = por %p52, %p53
      %p55 = scmp.ne.s32.totalorder %s44, %s47
      %p56 = scmp.eq.s32.totalorder %s25, 3
      %p57 = por %p55, %p56
      %p58 = scmp.ne.s32.totalorder %s47, %s48
      %p59 = scmp.eq.s32.totalorder %s25, 0
      %p60 = por %p58, %p59
      %p61 = scmp.ne.s32.totalorder %s47, %s48
      %p62 = scmp.eq.s32.totalorder %s26, 3
      %p63 = por %p61, %p62
      %p65 = scmp.ne.s32.totalorder %s48, %s64
      %p66 = scmp.eq.s32.totalorder %s26, 0
      %p67 = por %p65, %p66
      %s68 = ssub.s32 %s28, %s35
      %s69 = ssub.s32 %s27, %s39
      %s70 = sor.u32 %s68, %s69
      %p71 = scmp.eq.s32.totalorder %s70, 0
      %s73 = sadd.s32 %s72, 1
      %s74 = scalar_select %p71, %s72, %s73
      %p77 = pneg %p71
      %p78 = scmp.eq.s32.totalorder %s20, 3
      %p79 = por %p77, %p78
      %p80 = scmp.ne.s32.totalorder %s72, %s75
      %p81 = scmp.eq.s32.totalorder %s20, 0
      %p82 = por %p80, %p81
      %p83 = scmp.ne.s32.totalorder %s72, %s75
      %p84 = scmp.eq.s32.totalorder %s25, 3
      %p85 = por %p83, %p84
      %p86 = scmp.ne.s32.totalorder %s75, %s76
      %p87 = scmp.eq.s32.totalorder %s25, 0
      %p88 = por %p86, %p87
      %p89 = scmp.ne.s32.totalorder %s75, %s76
      %p90 = scmp.eq.s32.totalorder %s26, 3
      %p91 = por %p89, %p90
      %p93 = scmp.ne.s32.totalorder %s76, %s92
      %p94 = scmp.eq.s32.totalorder %s26, 0
      %p95 = por %p93, %p94
      %s96 = ssub.s32 %s27, %s39
      %p97 = scmp.eq.s32.totalorder %s96, 0
      %s99 = sadd.s32 %s98, 1
      %s100 = scalar_select %p97, %s98, %s99
      %p103 = pneg %p97
      %p104 = scmp.eq.s32.totalorder %s20, 3
      %p105 = por %p103, %p104
      %p106 = scmp.ne.s32.totalorder %s98, %s101
      %p107 = scmp.eq.s32.totalorder %s20, 0
      %p108 = por %p106, %p107
      %p109 = scmp.ne.s32.totalorder %s98, %s101
      %p110 = scmp.eq.s32.totalorder %s25, 3
      %p111 = por %p109, %p110
      %p112 = scmp.ne.s32.totalorder %s101, %s102
      %p113 = scmp.eq.s32.totalorder %s25, 0
      %p114 = por %p112, %p113
      %p115 = scmp.ne.s32.totalorder %s101, %s102
      %p116 = scmp.eq.s32.totalorder %s26, 3
      %p117 = por %p115, %p116
      %p119 = scmp.ne.s32.totalorder %s102, %s118
      %p120 = scmp.eq.s32.totalorder %s26, 0
      %p121 = por %p119, %p120
      %s122 = ssub.s32 %s27, %s39
      %p123 = scmp.eq.s32.totalorder %s122, 0
      %s125 = sadd.s32 %s124, 1
      %s126 = scalar_select %p123, %s124, %s125
      %p129 = pneg %p123
      %p130 = scmp.eq.s32.totalorder %s20, 3
      %p131 = por %p129, %p130
      %p132 = scmp.ne.s32.totalorder %s124, %s127
      %p133 = scmp.eq.s32.totalorder %s20, 0
      %p134 = por %p132, %p133
      %p135 = scmp.ne.s32.totalorder %s124, %s127
      %p136 = scmp.eq.s32.totalorder %s25, 3
      %p137 = por %p135, %p136
      %p138 = scmp.ne.s32.totalorder %s127, %s128
      %p139 = scmp.eq.s32.totalorder %s25, 0
      %p140 = por %p138, %p139
      %p141 = scmp.ne.s32.totalorder %s127, %s128
      %p142 = scmp.eq.s32.totalorder %s26, 3
      %p143 = por %p141, %p142
      %p145 = scmp.ne.s32.totalorder %s128, %s144
      %p146 = scmp.eq.s32.totalorder %s26, 0
      %p147 = por %p145, %p146
      %s149 = sadd.s32 %s148, 1
      %p152 = scmp.eq.s32.totalorder %s20, 3
      %p153 = scmp.ne.s32.totalorder %s148, %s150
      %p154 = scmp.eq.s32.totalorder %s20, 0
      %p155 = por %p153, %p154
      %p156 = scmp.ne.s32.totalorder %s148, %s150
      %p157 = scmp.eq.s32.totalorder %s25, 3
      %p158 = por %p156, %p157
      %p159 = scmp.ne.s32.totalorder %s150, %s151
      %p160 = scmp.eq.s32.totalorder %s25, 0
      %p161 = por %p159, %p160
      %p162 = scmp.ne.s32.totalorder %s150, %s151
      %p163 = scmp.eq.s32.totalorder %s26, 3
      %p164 = por %p162, %p163
      %p166 = scmp.ne.s32.totalorder %s151, %s165
      %p167 = scmp.eq.s32.totalorder %s26, 0
      %p168 = por %p166, %p167
      %s170 = sadd.s32 %s169, 1
      %p173 = scmp.eq.s32.totalorder %s20, 3
      %p174 = scmp.ne.s32.totalorder %s169, %s171
      %p175 = scmp.eq.s32.totalorder %s20, 0
      %p176 = por %p174, %p175
      %p177 = scmp.ne.s32.totalorder %s169, %s171
      %p178 = scmp.eq.s32.totalorder %s25, 3
      %p179 = por %p177, %p178
      %p180 = scmp.ne.s32.totalorder %s171, %s172
      %p181 = scmp.eq.s32.totalorder %s25, 0
      %p182 = por %p180, %p181
      %p183 = scmp.ne.s32.totalorder %s171, %s172
      %p184 = scmp.eq.s32.totalorder %s26, 3
      %p185 = por %p183, %p184
      %p187 = scmp.ne.s32.totalorder %s172, %s186
      %p188 = scmp.eq.s32.totalorder %s26, 0
      %p189 = por %p187, %p188
      %s191 = sadd.s32 %s190, 1
      %p194 = scmp.eq.s32.totalorder %s20, 3
      %p195 = scmp.ne.s32.totalorder %s190, %s192
      %p196 = scmp.eq.s32.totalorder %s20, 0
      %p197 = por %p195, %p196
      %p198 = scmp.ne.s32.totalorder %s190, %s192
      %p199 = scmp.eq.s32.totalorder %s25, 3
      %p200 = por %p198, %p199
      %p201 = scmp.ne.s32.totalorder %s192, %s193
      %p202 = scmp.eq.s32.totalorder %s25, 0
      %p203 = por %p201, %p202
      %p204 = scmp.ne.s32.totalorder %s192, %s193
      %p205 = scmp.eq.s32.totalorder %s26, 3
      %p206 = por %p204, %p205
      %p208 = scmp.ne.s32.totalorder %s193, %s207
      %p209 = scmp.eq.s32.totalorder %s26, 0
      %p210 = por %p208, %p209
      %s212 = sadd.s32 %s211, 1
      %p215 = scmp.eq.s32.totalorder %s20, 3
      %p216 = scmp.ne.s32.totalorder %s211, %s213
      %p217 = scmp.eq.s32.totalorder %s20, 0
      %p218 = por %p216, %p217
      %p219 = scmp.ne.s32.totalorder %s211, %s213
      %p220 = scmp.eq.s32.totalorder %s25, 3
      %p221 = por %p219, %p220
      %p222 = scmp.ne.s32.totalorder %s213, %s214
      %p223 = scmp.eq.s32.totalorder %s25, 0
      %p224 = por %p222, %p223
      %p225 = scmp.ne.s32.totalorder %s213, %s214
      %p226 = scmp.eq.s32.totalorder %s26, 3
      %p227 = por %p225, %p226
      %p229 = scmp.ne.s32.totalorder %s214, %s228
      %p230 = scmp.eq.s32.totalorder %s26, 0
      %p231 = por %p229, %p230
      %s233 = sadd.s32 %s232, 1
      %p236 = scmp.eq.s32.totalorder %s20, 3
      %p237 = scmp.ne.s32.totalorder %s232, %s234
      %p238 = scmp.eq.s32.totalorder %s20, 0
      %p239 = por %p237, %p238
      %p240 = scmp.ne.s32.totalorder %s232, %s234
      %p241 = scmp.eq.s32.totalorder %s25, 3
      %p242 = por %p240, %p241
      %p243 = scmp.ne.s32.totalorder %s234, %s235
      %p244 = scmp.eq.s32.totalorder %s25, 0
      %p245 = por %p243, %p244
      %p246 = scmp.ne.s32.totalorder %s234, %s235
      %p247 = scmp.eq.s32.totalorder %s26, 3
      %p248 = por %p246, %p247
      %p250 = scmp.ne.s32.totalorder %s235, %s249
      %p251 = scmp.eq.s32.totalorder %s26, 0
      %p252 = por %p250, %p251
      %s254 = sadd.s32 %s253, 1
      %p257 = scmp.eq.s32.totalorder %s20, 3
      %p258 = scmp.ne.s32.totalorder %s253, %s255
      %p259 = scmp.eq.s32.totalorder %s20, 0
      %p260 = por %p258, %p259
      %p261 = scmp.ne.s32.totalorder %s253, %s255
      %p262 = scmp.eq.s32.totalorder %s25, 3
      %p263 = por %p261, %p262
      %p264 = scmp.ne.s32.totalorder %s255, %s256
      %p265 = scmp.eq.s32.totalorder %s25, 0
      %p266 = por %p264, %p265
      %p267 = scmp.ne.s32.totalorder %s255, %s256
      %p268 = scmp.eq.s32.totalorder %s26, 3
      %p269 = por %p267, %p268
      %p271 = scmp.ne.s32.totalorder %s256, %s270
      %p272 = scmp.eq.s32.totalorder %s26, 0
      %p273 = por %p271, %p272
      %s275 = sadd.s32 %s274, 1
      %p278 = scmp.eq.s32.totalorder %s20, 3
      %p279 = scmp.ne.s32.totalorder %s274, %s276
      %p280 = scmp.eq.s32.totalorder %s20, 0
      %p281 = por %p279, %p280
      %p282 = scmp.ne.s32.totalorder %s274, %s276
      %p283 = scmp.eq.s32.totalorder %s25, 3
      %p284 = por %p282, %p283
      %p285 = scmp.ne.s32.totalorder %s276, %s277
      %p286 = scmp.eq.s32.totalorder %s25, 0
      %p287 = por %p285, %p286
      %p288 = scmp.ne.s32.totalorder %s276, %s277
      %p289 = scmp.eq.s32.totalorder %s26, 3
      %p290 = por %p288, %p289
      %p292 = scmp.ne.s32.totalorder %s277, %s291
      %p293 = scmp.eq.s32.totalorder %s26, 0
      %p294 = por %p292, %p293
      %s295 = ssub.s32 %s28, %s35
      %s296 = ssub.s32 %s27, %s39
      %s297 = sor.u32 %s295, %s296
      %p298 = scmp.eq.s32.totalorder %s297, 0
      %s300 = sadd.s32 %s299, 1
      %s301 = scalar_select %p298, %s299, %s300
      %p304 = pneg %p298
      %p305 = scmp.eq.s32.totalorder %s20, 3
      %p306 = por %p304, %p305
      %p307 = scmp.ne.s32.totalorder %s299, %s302
      %p308 = scmp.eq.s32.totalorder %s20, 0
      %p309 = por %p307, %p308
      %p310 = scmp.ne.s32.totalorder %s299, %s302
      %p311 = scmp.eq.s32.totalorder %s25, 3
      %p312 = por %p310, %p311
      %p313 = scmp.ne.s32.totalorder %s302, %s303
      %p314 = scmp.eq.s32.totalorder %s25, 0
      %p315 = por %p313, %p314
      %p316 = scmp.ne.s32.totalorder %s302, %s303
      %p317 = scmp.eq.s32.totalorder %s26, 3
      %p318 = por %p316, %p317
      %p320 = scmp.ne.s32.totalorder %s303, %s319
      %p321 = scmp.eq.s32.totalorder %s26, 0
      %p322 = por %p320, %p321
      %s323 = ssub.s32 %s27, %s39
      %p324 = scmp.eq.s32.totalorder %s323, 0
      %s326 = sadd.s32 %s325, 1
      %s327 = scalar_select %p324, %s325, %s326
      %p330 = pneg %p324
      %p331 = scmp.eq.s32.totalorder %s20, 3
      %p332 = por %p330, %p331
      %p333 = scmp.ne.s32.totalorder %s325, %s328
      %p334 = scmp.eq.s32.totalorder %s20, 0
      %p335 = por %p333, %p334
      %p336 = scmp.ne.s32.totalorder %s325, %s328
      %p337 = scmp.eq.s32.totalorder %s25, 3
      %p338 = por %p336, %p337
      %p339 = scmp.ne.s32.totalorder %s328, %s329
      %p340 = scmp.eq.s32.totalorder %s25, 0
      %p341 = por %p339, %p340
      %p342 = scmp.ne.s32.totalorder %s328, %s329
      %p343 = scmp.eq.s32.totalorder %s26, 3
      %p344 = por %p342, %p343
      %p346 = scmp.ne.s32.totalorder %s329, %s345
      %p347 = scmp.eq.s32.totalorder %s26, 0
      %p348 = por %p346, %p347
      %s349 = ssub.s32 %s27, %s39
      %p350 = scmp.eq.s32.totalorder %s349, 0
      %s352 = sadd.s32 %s351, 1
      %s353 = scalar_select %p350, %s351, %s352
      %p356 = pneg %p350
      %p357 = scmp.eq.s32.totalorder %s20, 3
      %p358 = por %p356, %p357
      %p359 = scmp.ne.s32.totalorder %s351, %s354
      %p360 = scmp.eq.s32.totalorder %s20, 0
      %p361 = por %p359, %p360
      %p362 = scmp.ne.s32.totalorder %s351, %s354
      %p363 = scmp.eq.s32.totalorder %s25, 3
      %p364 = por %p362, %p363
      %p365 = scmp.ne.s32.totalorder %s354, %s355
      %p366 = scmp.eq.s32.totalorder %s25, 0
      %p367 = por %p365, %p366
      %p368 = scmp.ne.s32.totalorder %s354, %s355
      %p369 = scmp.eq.s32.totalorder %s26, 3
      %p370 = por %p368, %p369
      %p372 = scmp.ne.s32.totalorder %s355, %s371
      %p373 = scmp.eq.s32.totalorder %s26, 0
      %p374 = por %p372, %p373
      %p375 = scmp.le.s32.totalorder 1, %s20
      %p376 = scmp.lt.s32.totalorder %s20, 5
      %p377 = pnand %p375, %p376
      %p378 = pneg %p377
      // Predicated region
      $region9: #{_lambda_.1} parent=5 // pred_check
        _
      $region10: #{_lambda_.1} parent=5 // pred_check_branch
        %380 = sbr.rel (%p377) target = $region12
      $region11: #{_lambda_.1} parent=5 // pred_region
        %s381 = ssub.s32 %s20, 1
        // Predicated region
        $region13: #{_lambda_.1} parent=11 // pred_check
          %p382 = pneg %p161
        $region14: #{_lambda_.1} parent=11 // pred_check_branch
          %384 = sbr.rel (%p382) target = $region16
        $region15: #{_lambda_.1} parent=11 // pred_region
          _
        $region16: #{_lambda_.1} parent=11 // pred_fallthru
          _
        // Predicated region
        $region17: #{_lambda_.1} parent=11 // pred_check
          %p385 = pneg %p182
        $region18: #{_lambda_.1} parent=11 // pred_check_branch
          %387 = sbr.rel (%p385) target = $region20
        $region19: #{_lambda_.1} parent=11 // pred_region
          _
        $region20: #{_lambda_.1} parent=11 // pred_fallthru
          _
        // Predicated region
        $region21: #{_lambda_.1} parent=11 // pred_check
          %p388 = pneg %p203
        $region22: #{_lambda_.1} parent=11 // pred_check_branch
          %390 = sbr.rel (%p388) target = $region24
        $region23: #{_lambda_.1} parent=11 // pred_region
          _
        $region24: #{_lambda_.1} parent=11 // pred_fallthru
          _
        // Predicated region
        $region25: #{_lambda_.1} parent=11 // pred_check
          %p391 = pneg %p224
        $region26: #{_lambda_.1} parent=11 // pred_check_branch
          %393 = sbr.rel (%p391) target = $region28
        $region27: #{_lambda_.1} parent=11 // pred_region
          _
        $region28: #{_lambda_.1} parent=11 // pred_fallthru
          _
        // Predicated region
        $region29: #{_lambda_.1} parent=11 // pred_check
          %p394 = pneg %p245
        $region30: #{_lambda_.1} parent=11 // pred_check_branch
          %396 = sbr.rel (%p394) target = $region32
        $region31: #{_lambda_.1} parent=11 // pred_region
          _
        $region32: #{_lambda_.1} parent=11 // pred_fallthru
          _
        // Predicated region
        $region33: #{_lambda_.1} parent=11 // pred_check
          %p397 = pneg %p266
        $region34: #{_lambda_.1} parent=11 // pred_check_branch
          %399 = sbr.rel (%p397) target = $region36
        $region35: #{_lambda_.1} parent=11 // pred_region
          _
        $region36: #{_lambda_.1} parent=11 // pred_fallthru
          _
        // Predicated region
        $region37: #{_lambda_.1} parent=11 // pred_check
          %p400 = pneg %p287
        $region38: #{_lambda_.1} parent=11 // pred_check_branch
          %402 = sbr.rel (%p400) target = $region40
        $region39: #{_lambda_.1} parent=11 // pred_region
          _
        $region40: #{_lambda_.1} parent=11 // pred_fallthru
          _
      $region12: #{_lambda_.1} parent=5 // pred_fallthru
        _
      %p403 = scmp.lt.s32.totalorder %s20, 4
      // Predicated region
      $region41: #{_lambda_.1} parent=5 // pred_check
        %p404 = pneg %p403
      $region42: #{_lambda_.1} parent=5 // pred_check_branch
        %406 = sbr.rel (%p404) target = $region44
      $region43: #{_lambda_.1} parent=5 // pred_region
        // Predicated region
        $region45: #{_lambda_.1} parent=43 // pred_check
          %p407 = pneg %p54
        $region46: #{_lambda_.1} parent=43 // pred_check_branch
          %409 = sbr.rel (%p407) target = $region48
        $region47: #{_lambda_.1} parent=43 // pred_region
          %s410 = sand.u32 %s44, 1
          %s411 = sand.u32 %s44, 1
          %s412 = smul.addr %s411, 64
          %s413 = scalar_lea.vmem [#allocation4], %s412
          %s414 = smul.u32 8, %s28
          %s415 = smul.addr %s414, 2
          %s416 = sadd.s32 %s27, %s415
          %s417 = smul.addr %s416, 8
          %s418 = scalar_lea.vmem %s0, %s417
          // Predicated region
          $region49: #{_lambda_.1} parent=47 // pred_check
            _
          $region50: #{_lambda_.1} parent=47 // pred_check_branch
            %420 = sbr.rel (0) target = $region52
          $region51: #{_lambda_.1} parent=47 // pred_region
            // Predicated region
            $region53: #{_lambda_.1} parent=51 // pred_check
              _
            $region54: #{_lambda_.1} parent=51 // pred_check_branch
              %422 = sbr.rel (0) target = $region56
            $region55: #{_lambda_.1} parent=51 // pred_region
              // Predicated region
              $region68: #{_lambda_.1} parent=55 // pred_check
                _
              $region69: #{_lambda_.1} parent=55 // pred_check_branch
                %451 = sbr.rel (0) target = $region71
              $region70: #{_lambda_.1} parent=55 // pred_region
                loop: start=0, step=1, limit=1
                $region72: #{_lambda_.1} parent=70 // loop_pre_header
                  _
                $region73: #{_lambda_.1} parent=70 // loop_header
                  %s453 = sphi 0, %s457
                  %p454 = scmp.ge.s32.totalorder %s453, 1
                  %s458 = sphi %s418, %s418
                  %s459 = sphi %s413, %s413
                $region74: #{_lambda_.1} parent=70 // loop_header_branch
                  %456 = sbr.rel (%p454) target = $region78
                $region75: #{_lambda_.1} parent=70 // loop_body
                  %v460 = vld [vmem:[%s458] sm:$0xff]
                  %461 = vst [vmem:[%s459] sm:$0xff] %v460
                  %v462 = vld [vmem:[%s458 + $0x10] sm:$0xff]
                  %463 = vst [vmem:[%s459 + $0x8] sm:$0xff] %v462
                  %v464 = vld [vmem:[%s458 + $0x20] sm:$0xff]
                  %465 = vst [vmem:[%s459 + $0x10] sm:$0xff] %v464
                  %v466 = vld [vmem:[%s458 + $0x30] sm:$0xff]
                  %467 = vst [vmem:[%s459 + $0x18] sm:$0xff] %v466
                  %v468 = vld [vmem:[%s458 + $0x40] sm:$0xff]
                  %469 = vst [vmem:[%s459 + $0x20] sm:$0xff] %v468
                  %v470 = vld [vmem:[%s458 + $0x50] sm:$0xff]
                  %471 = vst [vmem:[%s459 + $0x28] sm:$0xff] %v470
                  %v472 = vld [vmem:[%s458 + $0x60] sm:$0xff]
                  %473 = vst [vmem:[%s459 + $0x30] sm:$0xff] %v472
                  %v474 = vld [vmem:[%s458 + $0x70] sm:$0xff]
                  %475 = vst [vmem:[%s459 + $0x38] sm:$0xff] %v474
                $region76: #{_lambda_.1} parent=70 // loop_footer
                  %s457 = sadd.s32 1, %s453
                $region77: #{_lambda_.1} parent=70 // loop_footer_branch
                  %452 = sbr.rel target = $region73
                $region78: #{_lambda_.1} parent=70 // loop_exit
                  _
              $region71: #{_lambda_.1} parent=55 // pred_fallthru
                _
              // Predicated region
              $region79: #{_lambda_.1} parent=55 // pred_check
                _
              $region80: #{_lambda_.1} parent=55 // pred_check_branch
                %477 = sbr.rel target = $region82
              $region81: #{_lambda_.1} parent=55 // pred_region
                _
              $region82: #{_lambda_.1} parent=55 // pred_fallthru
                _
            $region56: #{_lambda_.1} parent=51 // pred_fallthru
              _
            // Predicated region
            $region57: #{_lambda_.1} parent=51 // pred_check
              _
            $region58: #{_lambda_.1} parent=51 // pred_check_branch
              %424 = sbr.rel target = $region60
            $region59: #{_lambda_.1} parent=51 // pred_region
              loop: start=0, step=1, limit=1
              $region61: #{_lambda_.1} parent=59 // loop_pre_header
                _
              $region62: #{_lambda_.1} parent=59 // loop_header
                %s427 = sphi 0, %s431
                %p428 = scmp.ge.s32.totalorder %s427, 1
                %s432 = sphi %s418, %s418
                %s433 = sphi %s413, %s413
              $region63: #{_lambda_.1} parent=59 // loop_header_branch
                %430 = sbr.rel (%p428) target = $region67
              $region64: #{_lambda_.1} parent=59 // loop_body
                %v434 = vld [vmem:[%s432] sm:$0xff]
                %435 = vst [vmem:[%s433] sm:$0xff] %v434
                %v436 = vld [vmem:[%s432 + $0x10] sm:$0xff]
                %437 = vst [vmem:[%s433 + $0x8] sm:$0xff] %v436
                %v438 = vld [vmem:[%s432 + $0x20] sm:$0xff]
                %439 = vst [vmem:[%s433 + $0x10] sm:$0xff] %v438
                %v440 = vld [vmem:[%s432 + $0x30] sm:$0xff]
                %441 = vst [vmem:[%s433 + $0x18] sm:$0xff] %v440
                %v442 = vld [vmem:[%s432 + $0x40] sm:$0xff]
                %443 = vst [vmem:[%s433 + $0x20] sm:$0xff] %v442
                %v444 = vld [vmem:[%s432 + $0x50] sm:$0xff]
                %445 = vst [vmem:[%s433 + $0x28] sm:$0xff] %v444
                %v446 = vld [vmem:[%s432 + $0x60] sm:$0xff]
                %447 = vst [vmem:[%s433 + $0x30] sm:$0xff] %v446
                %v448 = vld [vmem:[%s432 + $0x70] sm:$0xff]
                %449 = vst [vmem:[%s433 + $0x38] sm:$0xff] %v448
              $region65: #{_lambda_.1} parent=59 // loop_footer
                %s431 = sadd.s32 1, %s427
              $region66: #{_lambda_.1} parent=59 // loop_footer_branch
                %426 = sbr.rel target = $region62
              $region67: #{_lambda_.1} parent=59 // loop_exit
                _
            $region60: #{_lambda_.1} parent=51 // pred_fallthru
              _
          $region52: #{_lambda_.1} parent=47 // pred_fallthru
            _
          %478 = vnop
        $region48: #{_lambda_.1} parent=43 // pred_fallthru
          _
        // Predicated region
        $region83: #{_lambda_.1} parent=43 // pred_check
          %p479 = pneg %p82
        $region84: #{_lambda_.1} parent=43 // pred_check_branch
          %481 = sbr.rel (%p479) target = $region86
        $region85: #{_lambda_.1} parent=43 // pred_region
          %s482 = sand.u32 %s72, 1
          %s483 = sand.u32 %s72, 1
          %s484 = smul.addr %s483, 64
          %s485 = scalar_lea.vmem [#allocation5], %s484
          %s486 = smul.u32 8, %s28
          %s487 = smul.addr %s486, 2
          %s488 = sadd.s32 %s27, %s487
          %s489 = smul.addr %s488, 8
          %s490 = scalar_lea.vmem %s1, %s489
          // Predicated region
          $region87: #{_lambda_.1} parent=85 // pred_check
            _
          $region88: #{_lambda_.1} parent=85 // pred_check_branch
            %492 = sbr.rel (0) target = $region90
          $region89: #{_lambda_.1} parent=85 // pred_region
            // Predicated region
            $region91: #{_lambda_.1} parent=89 // pred_check
              _
            $region92: #{_lambda_.1} parent=89 // pred_check_branch
              %494 = sbr.rel (0) target = $region94
            $region93: #{_lambda_.1} parent=89 // pred_region
              // Predicated region
              $region106: #{_lambda_.1} parent=93 // pred_check
                _
              $region107: #{_lambda_.1} parent=93 // pred_check_branch
                %523 = sbr.rel (0) target = $region109
              $region108: #{_lambda_.1} parent=93 // pred_region
                loop: start=0, step=1, limit=1
                $region110: #{_lambda_.1} parent=108 // loop_pre_header
                  _
                $region111: #{_lambda_.1} parent=108 // loop_header
                  %s525 = sphi 0, %s529
                  %p526 = scmp.ge.s32.totalorder %s525, 1
                  %s530 = sphi %s490, %s490
                  %s531 = sphi %s485, %s485
                $region112: #{_lambda_.1} parent=108 // loop_header_branch
                  %528 = sbr.rel (%p526) target = $region116
                $region113: #{_lambda_.1} parent=108 // loop_body
                  %v532 = vld [vmem:[%s530] sm:$0xff]
                  %533 = vst [vmem:[%s531] sm:$0xff] %v532
                  %v534 = vld [vmem:[%s530 + $0x10] sm:$0xff]
                  %535 = vst [vmem:[%s531 + $0x8] sm:$0xff] %v534
                  %v536 = vld [vmem:[%s530 + $0x20] sm:$0xff]
                  %537 = vst [vmem:[%s531 + $0x10] sm:$0xff] %v536
                  %v538 = vld [vmem:[%s530 + $0x30] sm:$0xff]
                  %539 = vst [vmem:[%s531 + $0x18] sm:$0xff] %v538
                  %v540 = vld [vmem:[%s530 + $0x40] sm:$0xff]
                  %541 = vst [vmem:[%s531 + $0x20] sm:$0xff] %v540
                  %v542 = vld [vmem:[%s530 + $0x50] sm:$0xff]
                  %543 = vst [vmem:[%s531 + $0x28] sm:$0xff] %v542
                  %v544 = vld [vmem:[%s530 + $0x60] sm:$0xff]
                  %545 = vst [vmem:[%s531 + $0x30] sm:$0xff] %v544
                  %v546 = vld [vmem:[%s530 + $0x70] sm:$0xff]
                  %547 = vst [vmem:[%s531 + $0x38] sm:$0xff] %v546
                $region114: #{_lambda_.1} parent=108 // loop_footer
                  %s529 = sadd.s32 1, %s525
                $region115: #{_lambda_.1} parent=108 // loop_footer_branch
                  %524 = sbr.rel target = $region111
                $region116: #{_lambda_.1} parent=108 // loop_exit
                  _
              $region109: #{_lambda_.1} parent=93 // pred_fallthru
                _
              // Predicated region
              $region117: #{_lambda_.1} parent=93 // pred_check
                _
              $region118: #{_lambda_.1} parent=93 // pred_check_branch
                %549 = sbr.rel target = $region120
              $region119: #{_lambda_.1} parent=93 // pred_region
                _
              $region120: #{_lambda_.1} parent=93 // pred_fallthru
                _
            $region94: #{_lambda_.1} parent=89 // pred_fallthru
              _
            // Predicated region
            $region95: #{_lambda_.1} parent=89 // pred_check
              _
            $region96: #{_lambda_.1} parent=89 // pred_check_branch
              %496 = sbr.rel target = $region98
            $region97: #{_lambda_.1} parent=89 // pred_region
              loop: start=0, step=1, limit=1
              $region99: #{_lambda_.1} parent=97 // loop_pre_header
                _
              $region100: #{_lambda_.1} parent=97 // loop_header
                %s499 = sphi 0, %s503
                %p500 = scmp.ge.s32.totalorder %s499, 1
                %s504 = sphi %s490, %s490
                %s505 = sphi %s485, %s485
              $region101: #{_lambda_.1} parent=97 // loop_header_branch
                %502 = sbr.rel (%p500) target = $region105
              $region102: #{_lambda_.1} parent=97 // loop_body
                %v506 = vld [vmem:[%s504] sm:$0xff]
                %507 = vst [vmem:[%s505] sm:$0xff] %v506
                %v508 = vld [vmem:[%s504 + $0x10] sm:$0xff]
                %509 = vst [vmem:[%s505 + $0x8] sm:$0xff] %v508
                %v510 = vld [vmem:[%s504 + $0x20] sm:$0xff]
                %511 = vst [vmem:[%s505 + $0x10] sm:$0xff] %v510
                %v512 = vld [vmem:[%s504 + $0x30] sm:$0xff]
                %513 = vst [vmem:[%s505 + $0x18] sm:$0xff] %v512
                %v514 = vld [vmem:[%s504 + $0x40] sm:$0xff]
                %515 = vst [vmem:[%s505 + $0x20] sm:$0xff] %v514
                %v516 = vld [vmem:[%s504 + $0x50] sm:$0xff]
                %517 = vst [vmem:[%s505 + $0x28] sm:$0xff] %v516
                %v518 = vld [vmem:[%s504 + $0x60] sm:$0xff]
                %519 = vst [vmem:[%s505 + $0x30] sm:$0xff] %v518
                %v520 = vld [vmem:[%s504 + $0x70] sm:$0xff]
                %521 = vst [vmem:[%s505 + $0x38] sm:$0xff] %v520
              $region103: #{_lambda_.1} parent=97 // loop_footer
                %s503 = sadd.s32 1, %s499
              $region104: #{_lambda_.1} parent=97 // loop_footer_branch
                %498 = sbr.rel target = $region100
              $region105: #{_lambda_.1} parent=97 // loop_exit
                _
            $region98: #{_lambda_.1} parent=89 // pred_fallthru
              _
          $region90: #{_lambda_.1} parent=85 // pred_fallthru
            _
          %550 = vnop
        $region86: #{_lambda_.1} parent=43 // pred_fallthru
          _
        // Predicated region
        $region121: #{_lambda_.1} parent=43 // pred_check
          %p551 = pneg %p108
        $region122: #{_lambda_.1} parent=43 // pred_check_branch
          %553 = sbr.rel (%p551) target = $region124
        $region123: #{_lambda_.1} parent=43 // pred_region
          %s554 = sand.u32 %s98, 1
          %s555 = sand.u32 %s98, 1
          %s556 = smul.addr %s555, 16
          %s557 = scalar_lea.vmem [#allocation6], %s556
          %s558 = smul.addr %s27, 8
          %s559 = scalar_lea.vmem %s2, %s558
          // Predicated region
          $region125: #{_lambda_.1} parent=123 // pred_check
            _
          $region126: #{_lambda_.1} parent=123 // pred_check_branch
            %561 = sbr.rel (0) target = $region128
          $region127: #{_lambda_.1} parent=123 // pred_region
            // Predicated region
            $region129: #{_lambda_.1} parent=127 // pred_check
              _
            $region130: #{_lambda_.1} parent=127 // pred_check_branch
              %563 = sbr.rel (0) target = $region132
            $region131: #{_lambda_.1} parent=127 // pred_region
              // Predicated region
              $region144: #{_lambda_.1} parent=131 // pred_check
                _
              $region145: #{_lambda_.1} parent=131 // pred_check_branch
                %580 = sbr.rel (0) target = $region147
              $region146: #{_lambda_.1} parent=131 // pred_region
                loop: start=0, step=1, limit=1
                $region148: #{_lambda_.1} parent=146 // loop_pre_header
                  _
                $region149: #{_lambda_.1} parent=146 // loop_header
                  %s582 = sphi 0, %s586
                  %p583 = scmp.ge.s32.totalorder %s582, 1
                  %s587 = sphi %s559, %s559
                  %s588 = sphi %s557, %s557
                $region150: #{_lambda_.1} parent=146 // loop_header_branch
                  %585 = sbr.rel (%p583) target = $region154
                $region151: #{_lambda_.1} parent=146 // loop_body
                  %v589 = vld [vmem:[%s587] sm:$0xff]
                  %590 = vst [vmem:[%s588] sm:$0xff] %v589
                  %v591 = vld [vmem:[%s587 + $0x10] sm:$0xff]
                  %592 = vst [vmem:[%s588 + $0x8] sm:$0xff] %v591
                $region152: #{_lambda_.1} parent=146 // loop_footer
                  %s586 = sadd.s32 1, %s582
                $region153: #{_lambda_.1} parent=146 // loop_footer_branch
                  %581 = sbr.rel target = $region149
                $region154: #{_lambda_.1} parent=146 // loop_exit
                  _
              $region147: #{_lambda_.1} parent=131 // pred_fallthru
                _
              // Predicated region
              $region155: #{_lambda_.1} parent=131 // pred_check
                _
              $region156: #{_lambda_.1} parent=131 // pred_check_branch
                %594 = sbr.rel target = $region158
              $region157: #{_lambda_.1} parent=131 // pred_region
                _
              $region158: #{_lambda_.1} parent=131 // pred_fallthru
                _
            $region132: #{_lambda_.1} parent=127 // pred_fallthru
              _
            // Predicated region
            $region133: #{_lambda_.1} parent=127 // pred_check
              _
            $region134: #{_lambda_.1} parent=127 // pred_check_branch
              %565 = sbr.rel target = $region136
            $region135: #{_lambda_.1} parent=127 // pred_region
              loop: start=0, step=1, limit=1
              $region137: #{_lambda_.1} parent=135 // loop_pre_header
                _
              $region138: #{_lambda_.1} parent=135 // loop_header
                %s568 = sphi 0, %s572
                %p569 = scmp.ge.s32.totalorder %s568, 1
                %s573 = sphi %s559, %s559
                %s574 = sphi %s557, %s557
              $region139: #{_lambda_.1} parent=135 // loop_header_branch
                %571 = sbr.rel (%p569) target = $region143
              $region140: #{_lambda_.1} parent=135 // loop_body
                %v575 = vld [vmem:[%s573] sm:$0xff]
                %576 = vst [vmem:[%s574] sm:$0xff] %v575
                %v577 = vld [vmem:[%s573 + $0x10] sm:$0xff]
                %578 = vst [vmem:[%s574 + $0x8] sm:$0xff] %v577
              $region141: #{_lambda_.1} parent=135 // loop_footer
                %s572 = sadd.s32 1, %s568
              $region142: #{_lambda_.1} parent=135 // loop_footer_branch
                %567 = sbr.rel target = $region138
              $region143: #{_lambda_.1} parent=135 // loop_exit
                _
            $region136: #{_lambda_.1} parent=127 // pred_fallthru
              _
          $region128: #{_lambda_.1} parent=123 // pred_fallthru
            _
          %595 = vnop
        $region124: #{_lambda_.1} parent=43 // pred_fallthru
          _
        // Predicated region
        $region159: #{_lambda_.1} parent=43 // pred_check
          %p596 = pneg %p134
        $region160: #{_lambda_.1} parent=43 // pred_check_branch
          %598 = sbr.rel (%p596) target = $region162
        $region161: #{_lambda_.1} parent=43 // pred_region
          %s599 = sand.u32 %s124, 1
          %s600 = sand.u32 %s124, 1
          %s601 = smul.addr %s600, 16
          %s602 = scalar_lea.vmem [#allocation7], %s601
          %s603 = smul.addr %s27, 8
          %s604 = scalar_lea.vmem %s3, %s603
          // Predicated region
          $region163: #{_lambda_.1} parent=161 // pred_check
            _
          $region164: #{_lambda_.1} parent=161 // pred_check_branch
            %606 = sbr.rel (0) target = $region166
          $region165: #{_lambda_.1} parent=161 // pred_region
            // Predicated region
            $region167: #{_lambda_.1} parent=165 // pred_check
              _
            $region168: #{_lambda_.1} parent=165 // pred_check_branch
              %608 = sbr.rel (0) target = $region170
            $region169: #{_lambda_.1} parent=165 // pred_region
              // Predicated region
              $region182: #{_lambda_.1} parent=169 // pred_check
                _
              $region183: #{_lambda_.1} parent=169 // pred_check_branch
                %625 = sbr.rel (0) target = $region185
              $region184: #{_lambda_.1} parent=169 // pred_region
                loop: start=0, step=1, limit=1
                $region186: #{_lambda_.1} parent=184 // loop_pre_header
                  _
                $region187: #{_lambda_.1} parent=184 // loop_header
                  %s627 = sphi 0, %s631
                  %p628 = scmp.ge.s32.totalorder %s627, 1
                  %s632 = sphi %s604, %s604
                  %s633 = sphi %s602, %s602
                $region188: #{_lambda_.1} parent=184 // loop_header_branch
                  %630 = sbr.rel (%p628) target = $region192
                $region189: #{_lambda_.1} parent=184 // loop_body
                  %v634 = vld [vmem:[%s632] sm:$0xff]
                  %635 = vst [vmem:[%s633] sm:$0xff] %v634
                  %v636 = vld [vmem:[%s632 + $0x10] sm:$0xff]
                  %637 = vst [vmem:[%s633 + $0x8] sm:$0xff] %v636
                $region190: #{_lambda_.1} parent=184 // loop_footer
                  %s631 = sadd.s32 1, %s627
                $region191: #{_lambda_.1} parent=184 // loop_footer_branch
                  %626 = sbr.rel target = $region187
                $region192: #{_lambda_.1} parent=184 // loop_exit
                  _
              $region185: #{_lambda_.1} parent=169 // pred_fallthru
                _
              // Predicated region
              $region193: #{_lambda_.1} parent=169 // pred_check
                _
              $region194: #{_lambda_.1} parent=169 // pred_check_branch
                %639 = sbr.rel target = $region196
              $region195: #{_lambda_.1} parent=169 // pred_region
                _
              $region196: #{_lambda_.1} parent=169 // pred_fallthru
                _
            $region170: #{_lambda_.1} parent=165 // pred_fallthru
              _
            // Predicated region
            $region171: #{_lambda_.1} parent=165 // pred_check
              _
            $region172: #{_lambda_.1} parent=165 // pred_check_branch
              %610 = sbr.rel target = $region174
            $region173: #{_lambda_.1} parent=165 // pred_region
              loop: start=0, step=1, limit=1
              $region175: #{_lambda_.1} parent=173 // loop_pre_header
                _
              $region176: #{_lambda_.1} parent=173 // loop_header
                %s613 = sphi 0, %s617
                %p614 = scmp.ge.s32.totalorder %s613, 1
                %s618 = sphi %s604, %s604
                %s619 = sphi %s602, %s602
              $region177: #{_lambda_.1} parent=173 // loop_header_branch
                %616 = sbr.rel (%p614) target = $region181
              $region178: #{_lambda_.1} parent=173 // loop_body
                %v620 = vld [vmem:[%s618] sm:$0xff]
                %621 = vst [vmem:[%s619] sm:$0xff] %v620
                %v622 = vld [vmem:[%s618 + $0x10] sm:$0xff]
                %623 = vst [vmem:[%s619 + $0x8] sm:$0xff] %v622
              $region179: #{_lambda_.1} parent=173 // loop_footer
                %s617 = sadd.s32 1, %s613
              $region180: #{_lambda_.1} parent=173 // loop_footer_branch
                %612 = sbr.rel target = $region176
              $region181: #{_lambda_.1} parent=173 // loop_exit
                _
            $region174: #{_lambda_.1} parent=165 // pred_fallthru
              _
          $region166: #{_lambda_.1} parent=161 // pred_fallthru
            _
          %640 = vnop
        $region162: #{_lambda_.1} parent=43 // pred_fallthru
          _
      $region44: #{_lambda_.1} parent=5 // pred_fallthru
        _
      %p641 = scmp.le.s32.totalorder 1, %s20
      %p642 = scmp.lt.s32.totalorder %s20, 5
      %p643 = pnand %p641, %p642
      %p644 = pneg %p643
      // Predicated region
      $region197: #{_lambda_.1} parent=5 // pred_check
        _
      $region198: #{_lambda_.1} parent=5 // pred_check_branch
        %646 = sbr.rel (%p643) target = $region200
      $region199: #{_lambda_.1} parent=5 // pred_region
        %s647 = ssub.s32 %s20, 1
        %s648 = sand.u32 %s47, 1
        %s649 = sand.u32 %s47, 1
        %s650 = smul.addr %s649, 64
        %s651 = scalar_lea.vmem [#allocation4], %s650
        // Predicated region
        $region201: #{_lambda_.1} parent=199 // pred_check
          %p652 = pneg %p60
        $region202: #{_lambda_.1} parent=199 // pred_check_branch
          %654 = sbr.rel (%p652) target = $region204
        $region203: #{_lambda_.1} parent=199 // pred_region
          _
        $region204: #{_lambda_.1} parent=199 // pred_fallthru
          _
        %s655 = sand.u32 %s75, 1
        %s656 = sand.u32 %s75, 1
        %s657 = smul.addr %s656, 64
        %s658 = scalar_lea.vmem [#allocation5], %s657
        // Predicated region
        $region205: #{_lambda_.1} parent=199 // pred_check
          %p659 = pneg %p88
        $region206: #{_lambda_.1} parent=199 // pred_check_branch
          %661 = sbr.rel (%p659) target = $region208
        $region207: #{_lambda_.1} parent=199 // pred_region
          _
        $region208: #{_lambda_.1} parent=199 // pred_fallthru
          _
        %s662 = sand.u32 %s101, 1
        %s663 = sand.u32 %s101, 1
        %s664 = smul.addr %s663, 16
        %s665 = scalar_lea.vmem [#allocation6], %s664
        // Predicated region
        $region209: #{_lambda_.1} parent=199 // pred_check
          %p666 = pneg %p114
        $region210: #{_lambda_.1} parent=199 // pred_check_branch
          %668 = sbr.rel (%p666) target = $region212
        $region211: #{_lambda_.1} parent=199 // pred_region
          _
        $region212: #{_lambda_.1} parent=199 // pred_fallthru
          _
        %s669 = sand.u32 %s127, 1
        %s670 = sand.u32 %s127, 1
        %s671 = smul.addr %s670, 16
        %s672 = scalar_lea.vmem [#allocation7], %s671
        // Predicated region
        $region213: #{_lambda_.1} parent=199 // pred_check
          %p673 = pneg %p140
        $region214: #{_lambda_.1} parent=199 // pred_check_branch
          %675 = sbr.rel (%p673) target = $region216
        $region215: #{_lambda_.1} parent=199 // pred_region
          _
        $region216: #{_lambda_.1} parent=199 // pred_fallthru
          _
        %s676 = sand.u32 %s47, 1
        %s677 = sand.u32 %s47, 1
        %s678 = smul.addr %s677, 64
        %s679 = scalar_lea.vmem [#allocation4], %s678
        %p680 = pneg %p60
        %p681 = pneg %p57
        %s682 = sand.u32 %s75, 1
        %s683 = sand.u32 %s75, 1
        %s684 = smul.addr %s683, 64
        %s685 = scalar_lea.vmem [#allocation5], %s684
        %p686 = pneg %p88
        %p687 = pneg %p85
        %s688 = sand.u32 %s101, 1
        %s689 = sand.u32 %s101, 1
        %s690 = smul.addr %s689, 16
        %s691 = scalar_lea.vmem [#allocation6], %s690
        %p692 = pneg %p114
        %p693 = pneg %p111
        %s694 = sand.u32 %s127, 1
        %s695 = sand.u32 %s127, 1
        %s696 = smul.addr %s695, 16
        %s697 = scalar_lea.vmem [#allocation7], %s696
        %p698 = pneg %p140
        %p699 = pneg %p137
        %p700 = pneg %p161
        %p701 = pneg %p158
        %p702 = pneg %p182
        %p703 = pneg %p179
        %p704 = pneg %p203
        %p705 = pneg %p200
        %p706 = pneg %p224
        %p707 = pneg %p221
        %p708 = pneg %p245
        %p709 = pneg %p242
        %p710 = pneg %p266
        %p711 = pneg %p263
        %p712 = pneg %p287
        %p713 = pneg %p284
        %p714 = pneg %p315
        %p715 = pneg %p312
        %s716 = sand.u32 %s302, 1
        %s717 = sand.u32 %s302, 1
        %s718 = smul.addr %s717, 64
        %s719 = scalar_lea.vmem [#allocation8], %s718
        %p720 = pneg %p341
        %p721 = pneg %p338
        %s722 = sand.u32 %s328, 1
        %s723 = sand.u32 %s328, 1
        %s724 = smul.addr %s723, 16
        %s725 = scalar_lea.vmem [#allocation9], %s724
        %p726 = pneg %p367
        %p727 = pneg %p364
        %s728 = sand.u32 %s354, 1
        %s729 = sand.u32 %s354, 1
        %s730 = smul.addr %s729, 16
        %s731 = scalar_lea.vmem [#allocation10], %s730
        %s732 = smul.u32 8, %s30
        %s733 = smul.u32 8, %s30
        %s734 = smul.u32 8, %s30
        %p736 = scmp.eq.s32.totalorder %s30, 0
        // Predicated region
        $region217: #{_lambda_.1} parent=199 // pred_check
          %p737 = pneg %p736
        $region218: #{_lambda_.1} parent=199 // pred_check_branch
          %739 = sbr.rel (%p737) target = $region220
        $region219: #{_lambda_.1} parent=199 // pred_region
          %v740 = vld [vmem:[%s665] sm:$0xff]
          %v741 = vld [vmem:[%s665 + $0x8] sm:$0xff]
          %vm742 = vcmask 261120
          %743 = vst.msk [vmem:[#allocation2] sm:$0xff] %vm742, %v740
          %744 = vst.msk [vmem:[#allocation2 + $0x8] sm:$0xff] %vm742, %v741
          %v745 = vld [vmem:[%s672] sm:$0xff]
          %v746 = vld [vmem:[%s672 + $0x8] sm:$0xff]
          %747 = vst.msk [vmem:[#allocation3] sm:$0xff] %vm742, %v745
          %748 = vst.msk [vmem:[#allocation3 + $0x8] sm:$0xff] %vm742, %v746
        $region220: #{_lambda_.1} parent=199 // pred_fallthru
          _
        %v749 = vld [vmem:[%s651] sm:$0xff]
        %v750 = vld [vmem:[%s651 + $0x8] sm:$0xff]
        %v751 = vld [vmem:[%s651 + $0x10] sm:$0xff]
        %v752 = vld [vmem:[%s651 + $0x18] sm:$0xff]
        %v753 = vld [vmem:[%s651 + $0x20] sm:$0xff]
        %v754 = vld [vmem:[%s651 + $0x28] sm:$0xff]
        %v755 = vld [vmem:[%s651 + $0x30] sm:$0xff]
        %v756 = vld [vmem:[%s651 + $0x38] sm:$0xff]
        %v757 = vpack.c.bf16 %v750, %v749
        %v758 = vpack.c.bf16 %v752, %v751
        %v759 = vpack.c.bf16 %v754, %v753
        %v760 = vpack.c.bf16 %v756, %v755
        %v761 = vld [vmem:[%s4] sm:$0xf]
        %v762 = vld [vmem:[%s4 + $0x4] sm:$0xf]
        %v763 = vld [vmem:[%s4 + $0x8] sm:$0xf]
        %v764 = vld [vmem:[%s4 + $0xc] sm:$0xf]
        %v765 = vld [vmem:[%s5] sm:$0x1]
        %v767 = vlaneseq
        %v768 = vshrl.u32 %v767, 7
        %v769 = vsub.s32 0, %v768
        %v770 = vrot.slane %v765, %v769
        %v776 = vunpack.c.l.b16 %v761
        %v777 = vunpack.c.l.b16 %v762
        %v778 = vunpack.c.l.b16 %v763
        %v779 = vunpack.c.l.b16 %v764
        %v780 = vpack.c.b16 %v777, %v776
        %v781 = vpack.c.b16 %v779, %v778
        %vm784 = vcmask 261120
        %v786 = vsel %vm784, %v757, 0
        %v789 = vsel %vm784, %v758, 0
        %v792 = vsel %vm784, %v759, 0
        %v795 = vsel %vm784, %v760, 0
        %797 = vmatprep.subr.bf16.mxu0 0
        %798 = vmatpush1.bf16.msra.mxu0 %v780
        %799 = vmatprep.subr.bf16.mxu0 0
        %800 = vmatpush1.bf16.msra.mxu0 %v781
        %801 = vmatprep.subr.bf16.mxu0 0
        %802 = vmatpush1.bf16.msra.mxu0 0
        %803 = vmatprep.subr.bf16.mxu0 0
        %804 = vmatpush1.bf16.msra.mxu0 0
        %805 = vmatprep.subr.bf16.mxu0 0
        %806 = vmatpush1.bf16.msra.mxu0 0
        %807 = vmatprep.subr.bf16.mxu0 0
        %808 = vmatpush1.bf16.msra.mxu0 0
        %809 = vmatprep.subr.bf16.mxu0 0
        %810 = vmatpush1.bf16.msra.mxu0 0
        %811 = vmatprep.subr.bf16.mxu0 0
        %812 = vmatpush1.bf16.msra.mxu0 0
        %813 = vmatprep.subr.bf16.mxu0 0
        %814 = vmatpush1.bf16.msra.mxu0 0
        %815 = vmatprep.subr.bf16.mxu0 0
        %816 = vmatpush1.bf16.msra.mxu0 0
        %817 = vmatprep.subr.bf16.mxu0 0
        %818 = vmatpush1.bf16.msra.mxu0 0
        %819 = vmatprep.subr.bf16.mxu0 0
        %820 = vmatpush1.bf16.msra.mxu0 0
        %821 = vmatprep.subr.bf16.mxu0 0
        %822 = vmatpush1.bf16.msra.mxu0 0
        %823 = vmatprep.subr.bf16.mxu0 0
        %824 = vmatpush1.bf16.msra.mxu0 0
        %825 = vmatprep.subr.bf16.mxu0 0
        %826 = vmatpush1.bf16.msra.mxu0 0
        %827 = vmatprep.subr.bf16.mxu0 0
        %828 = vmatpush1.bf16.msra.mxu0 0
        %829 = vmatprep.mubr.bf16.mxu0 0
        %830 = vmatmul.mubr.bf16.gmra.mrb[0].mxu0 %v786
        %v831 = vpop.f32.mrb[0].mxu0
        %v832 = vadd.f32 %v770, %v831
        %v833 = vpop.f32.mrb[0].mxu0
        %v834 = vpop.f32.mrb[0].mxu0
        %v835 = vadd.f32 %v770, %v834
        %v836 = vpop.f32.mrb[0].mxu0
        %837 = vmatprep.mubr.bf16.mxu0 0
        %838 = vmatmul.mubr.bf16.gmra.mrb[0].mxu0 %v789
        %v839 = vpop.f32.mrb[0].mxu0
        %v840 = vadd.f32 %v770, %v839
        %v841 = vpop.f32.mrb[0].mxu0
        %v842 = vpop.f32.mrb[0].mxu0
        %v843 = vadd.f32 %v770, %v842
        %v844 = vpop.f32.mrb[0].mxu0
        %845 = vmatprep.mubr.bf16.mxu0 0
        %846 = vmatmul.mubr.bf16.gmra.mrb[0].mxu0 %v792
        %v847 = vpop.f32.mrb[0].mxu0
        %v848 = vadd.f32 %v770, %v847
        %v849 = vpop.f32.mrb[0].mxu0
        %v850 = vpop.f32.mrb[0].mxu0
        %v851 = vadd.f32 %v770, %v850
        %v852 = vpop.f32.mrb[0].mxu0
        %853 = vmatprep.mubr.bf16.mxu0 0
        %854 = vmatmul.mubr.bf16.gmra.mrb[0].mxu0 %v795
        %v855 = vpop.f32.mrb[0].mxu0
        %v856 = vadd.f32 %v770, %v855
        %v857 = vpop.f32.mrb[0].mxu0
        %v858 = vpop.f32.mrb[0].mxu0
        %v859 = vadd.f32 %v770, %v858
        %v860 = vpop.f32.mrb[0].mxu0
        %861 = vdwg.mxu0
        %v862 = vld [vmem:[%s658] sm:$0xff]
        %v863 = vld [vmem:[#allocation2] sm:$0xff]
        %s864 = scalar_lea.vmem [#allocation2], 8
        %v865 = vld [vmem:[%s864] sm:$0xff]
        %867 = vrot.lane.b32.xlu0 %v865, 32
        %v868 = vpop.permute.xlu0 %867
        %v870 = vsel %vm784, %v863, %v868
        %872 = vset.pattern.permute.xlu0 0
        %873 = vperm.xlu0 %872, %v862
        %v874 = vpop.permute.xlu0 %873
        %v876 = vmul.f32 %v870, %v874
        %v877 = vpack.c.bf16 %v876, %v876
        %v878 = vld [vmem:[%s6] sm:$0xff]
        %v879 = vld [vmem:[%s6 + $0x8] sm:$0xff]
        %v880 = vld [vmem:[%s6 + $0x10] sm:$0xff]
        %v881 = vld [vmem:[%s6 + $0x18] sm:$0xff]
        %v882 = vld [vmem:[%s6 + $0x20] sm:$0xff]
        %v883 = vld [vmem:[%s6 + $0x28] sm:$0xff]
        %v884 = vld [vmem:[%s6 + $0x30] sm:$0xff]
        %v885 = vld [vmem:[%s6 + $0x38] sm:$0xff]
        %v894 = vunpack.c.l.b16 %v878
        %v895 = vunpack.c.h.b16 %v878
        %v896 = vunpack.c.l.b16 %v879
        %v897 = vunpack.c.h.b16 %v879
        %v898 = vunpack.c.l.b16 %v880
        %v899 = vunpack.c.h.b16 %v880
        %v900 = vunpack.c.l.b16 %v881
        %v901 = vunpack.c.h.b16 %v881
        %v902 = vunpack.c.l.b16 %v882
        %v903 = vunpack.c.h.b16 %v882
        %v904 = vunpack.c.l.b16 %v883
        %v905 = vunpack.c.h.b16 %v883
        %v906 = vunpack.c.l.b16 %v884
        %v907 = vunpack.c.h.b16 %v884
        %v908 = vunpack.c.l.b16 %v885
        %v909 = vunpack.c.h.b16 %v885
        %v910 = vpack.c.b16 %v896, %v894
        %v911 = vpack.c.b16 %v897, %v895
        %v912 = vpack.c.b16 %v900, %v898
        %v913 = vpack.c.b16 %v901, %v899
        %v914 = vpack.c.b16 %v904, %v902
        %v915 = vpack.c.b16 %v905, %v903
        %v916 = vpack.c.b16 %v908, %v906
        %v917 = vpack.c.b16 %v909, %v907
        %vm926 = vcmask 523264
        %v928 = vsel %vm926, %v877, 0
        %930 = vmatprep.subr.bf16.mxu0 %v911
        %931 = vmatpush1.bf16.msra.mxu0 %v910
        %932 = vmatprep.subr.bf16.mxu0 %v913
        %933 = vmatpush1.bf16.msra.mxu0 %v912
        %934 = vmatprep.subr.bf16.mxu0 %v915
        %935 = vmatpush1.bf16.msra.mxu0 %v914
        %936 = vmatprep.subr.bf16.mxu0 %v917
        %937 = vmatpush1.bf16.msra.mxu0 %v916
        %938 = vmatprep.subr.bf16.mxu0 0
        %939 = vmatpush1.bf16.msra.mxu0 0
        %940 = vmatprep.subr.bf16.mxu0 0
        %941 = vmatpush1.bf16.msra.mxu0 0
        %942 = vmatprep.subr.bf16.mxu0 0
        %943 = vmatpush1.bf16.msra.mxu0 0
        %944 = vmatprep.subr.bf16.mxu0 0
        %945 = vmatpush1.bf16.msra.mxu0 0
        %946 = vmatprep.subr.bf16.mxu0 0
        %947 = vmatpush1.bf16.msra.mxu0 0
        %948 = vmatprep.subr.bf16.mxu0 0
        %949 = vmatpush1.bf16.msra.mxu0 0
        %950 = vmatprep.subr.bf16.mxu0 0
        %951 = vmatpush1.bf16.msra.mxu0 0
        %952 = vmatprep.subr.bf16.mxu0 0
        %953 = vmatpush1.bf16.msra.mxu0 0
        %954 = vmatprep.subr.bf16.mxu0 0
        %955 = vmatpush1.bf16.msra.mxu0 0
        %956 = vmatprep.subr.bf16.mxu0 0
        %957 = vmatpush1.bf16.msra.mxu0 0
        %958 = vmatprep.subr.bf16.mxu0 0
        %959 = vmatpush1.bf16.msra.mxu0 0
        %960 = vmatprep.subr.bf16.mxu0 0
        %961 = vmatpush1.bf16.msra.mxu0 0
        %962 = vmatprep.mubr.bf16.mxu0 0
        %963 = vmatmul.mubr.bf16.gmra.mrb[0].mxu0 %v928
        %v964 = vpop.f32.mrb[0].mxu0
        %v965 = vadd.f32 0.0, %v964
        %v966 = vpop.f32.mrb[0].mxu0
        %v967 = vadd.f32 0.0, %v966
        %v968 = vpop.f32.mrb[0].mxu0
        %v969 = vpop.f32.mrb[0].mxu0
        %970 = vdwg.mxu0
        %v971 = vld [vmem:[#allocation3] sm:$0xff]
        %v972 = vmul.f32 %v971, %v874
        %s973 = scalar_lea.vmem [#allocation3], 8
        %v974 = vld [vmem:[%s973] sm:$0xff]
        %v975 = vmul.f32 %v974, %v874
        %v976 = vadd.f32 %v832, %v965
        %v977 = vxor.u32 %v976, 2147483648
        %v978 = vmul.f32 %v977, 1.442695
        %v979 = vpow.pop %v978
        %v980 = vadd.f32 %v979, 1.0
        %v981 = vrcp.pop %v980
        %v982 = vmul.f32 1.0, %v981
        %v983 = vtanh.pop %v976
        %985 = vrot.lane.b32.xlu0 %v972, 32
        %v986 = vpop.permute.xlu0 %985
        %v988 = vmul.f32 %v982, %v986
        %990 = vrot.lane.b32.xlu0 %v983, 32
        %v991 = vpop.permute.xlu0 %990
        %v993 = vmul.f32 %v982, %v991
        %995 = vrot.lane.b32.xlu0 %v993, 32
        %v996 = vpop.permute.xlu0 %995
        %v998 = vadd.f32 %v988, %v996
        %v999 = vtanh.pop %v998
        %1001 = vrot.lane.b32.xlu0 %v999, 32
        %v1002 = vpop.permute.xlu0 %1001
        %v1004 = vmul.f32 %v982, %v1002
        %1006 = vrot.lane.b32.xlu0 %v1004, 64
        %v1007 = vpop.permute.xlu0 %1006
        %1009 = vst.msk [vmem:[#allocation2] sm:$0xff] %vm784, %v1007
        %1011 = vrot.lane.b32.xlu0 %v998, 96
        %v1012 = vpop.permute.xlu0 %1011
        %1014 = vst.msk [vmem:[#allocation3] sm:$0xff] %vm784, %v1012
        %v1015 = vpack.c.bf16 %v1004, %v1004
        %v1016 = vld [vmem:[%s7] sm:$0xf]
        %v1017 = vld [vmem:[%s7 + $0x4] sm:$0xf]
        %v1018 = vld [vmem:[%s7 + $0x8] sm:$0xf]
        %v1019 = vld [vmem:[%s7 + $0xc] sm:$0xf]
        %1021 = vrot.lane.b32.xlu0 %v1015, 64
        %v1022 = vpop.permute.xlu0 %1021
        %v1027 = vunpack.c.l.b16 %v1016
        %v1028 = vunpack.c.l.b16 %v1017
        %v1029 = vunpack.c.l.b16 %v1018
        %v1030 = vunpack.c.l.b16 %v1019
        %v1031 = vpack.c.b16 %v1028, %v1027
        %v1032 = vpack.c.b16 %v1030, %v1029
        %v1036 = vsel %vm784, %v1022, 0
        %1038 = vmatprep.subr.bf16.mxu0 0
        %1039 = vmatpush1.bf16.msra.mxu0 %v1031
        %1040 = vmatprep.subr.bf16.mxu0 0
        %1041 = vmatpush1.bf16.msra.mxu0 %v1032
        %1042 = vmatprep.subr.bf16.mxu0 0
        %1043 = vmatpush1.bf16.msra.mxu0 0
        %1044 = vmatprep.subr.bf16.mxu0 0
        %1045 = vmatpush1.bf16.msra.mxu0 0
        %1046 = vmatprep.subr.bf16.mxu0 0
        %1047 = vmatpush1.bf16.msra.mxu0 0
        %1048 = vmatprep.subr.bf16.mxu0 0
        %1049 = vmatpush1.bf16.msra.mxu0 0
        %1050 = vmatprep.subr.bf16.mxu0 0
        %1051 = vmatpush1.bf16.msra.mxu0 0
        %1052 = vmatprep.subr.bf16.mxu0 0
        %1053 = vmatpush1.bf16.msra.mxu0 0
        %1054 = vmatprep.subr.bf16.mxu0 0
        %1055 = vmatpush1.bf16.msra.mxu0 0
        %1056 = vmatprep.subr.bf16.mxu0 0
        %1057 = vmatpush1.bf16.msra.mxu0 0
        %1058 = vmatprep.subr.bf16.mxu0 0
        %1059 = vmatpush1.bf16.msra.mxu0 0
        %1060 = vmatprep.subr.bf16.mxu0 0
        %1061 = vmatpush1.bf16.msra.mxu0 0
        %1062 = vmatprep.subr.bf16.mxu0 0
        %1063 = vmatpush1.bf16.msra.mxu0 0
        %1064 = vmatprep.subr.bf16.mxu0 0
        %1065 = vmatpush1.bf16.msra.mxu0 0
        %1066 = vmatprep.subr.bf16.mxu0 0
        %1067 = vmatpush1.bf16.msra.mxu0 0
        %1068 = vmatprep.subr.bf16.mxu0 0
        %1069 = vmatpush1.bf16.msra.mxu0 0
        %1070 = vmatprep.mubr.bf16.mxu0 0
        %1071 = vmatmul.mubr.bf16.gmra.mrb[0].mxu0 %v1036
        %v1072 = vpop.f32.mrb[0].mxu0
        %v1073 = vadd.f32 %v967, %v1072
        %v1074 = vpop.f32.mrb[0].mxu0
        %v1075 = vpop.f32.mrb[0].mxu0
        %v1076 = vpop.f32.mrb[0].mxu0
        %1077 = vdwg.mxu0
        %v1078 = vld [vmem:[%s8] sm:$0x1]
        %v1080 = vlaneseq
        %v1081 = vshrl.u32 %v1080, 7
        %v1082 = vsub.s32 0, %v1081
        %v1083 = vrot.slane %v1078, %v1082
        %v1085 = vadd.f32 %v1073, %v1083
        %v1086 = vxor.u32 %v1085, 2147483648
        %v1087 = vmul.f32 %v1086, 1.442695
        %v1088 = vpow.pop %v1087
        %v1089 = vadd.f32 %v1088, 1.0
        %v1090 = vrcp.pop %v1089
        %v1091 = vmul.f32 1.0, %v1090
        %v1092 = vtanh.pop %v1085
        %1094 = vrot.lane.b32.xlu0 %v975, 32
        %v1095 = vpop.permute.xlu0 %1094
        %v1097 = vmul.f32 %v1091, %v1095
        %1099 = vrot.lane.b32.xlu0 %v1092, 32
        %v1100 = vpop.permute.xlu0 %1099
        %v1102 = vmul.f32 %v1091, %v1100
        %1104 = vrot.lane.b32.xlu0 %v1102, 32
        %v1105 = vpop.permute.xlu0 %1104
        %v1107 = vadd.f32 %v1097, %v1105
        %v1108 = vtanh.pop %v1107
        %1110 = vrot.lane.b32.xlu0 %v1108, 32
        %v1111 = vpop.permute.xlu0 %1110
        %v1113 = vmul.f32 %v1091, %v1111
        %1115 = vrot.lane.b32.xlu0 %v1113, 64
        %v1116 = vpop.permute.xlu0 %1115
        %1118 = vst.msk [vmem:[%s864] sm:$0xff] %vm784, %v1116
        %1120 = vrot.lane.b32.xlu0 %v1107, 96
        %v1121 = vpop.permute.xlu0 %1120
        %1123 = vst.msk [vmem:[%s973] sm:$0xff] %vm784, %v1121
        %1124 = vst.msk [vmem:[%s719] sm:$0xff] %vm784, %v1116
        %s1125 = scalar_lea.vmem %s658, 8 [#allocation5]
        %v1126 = vld [vmem:[%s1125] sm:$0xff]
        %v1127 = vld [vmem:[#allocation2] sm:$0xff]
        %v1128 = vld [vmem:[%s864] sm:$0xff]
        %1130 = vrot.lane.b32.xlu0 %v1128, 32
        %v1131 = vpop.permute.xlu0 %1130
        %v1133 = vsel %vm784, %v1127, %v1131
        %1135 = vset.pattern.permute.xlu0 0
        %1136 = vperm.xlu0 %1135, %v1126
        %v1137 = vpop.permute.xlu0 %1136
        %v1139 = vmul.f32 %v1133, %v1137
        %v1140 = vpack.c.bf16 %v1139, %v1139
        %v1141 = vld [vmem:[%s6] sm:$0xff]
        %v1142 = vld [vmem:[%s6 + $0x8] sm:$0xff]
        %v1143 = vld [vmem:[%s6 + $0x10] sm:$0xff]
        %v1144 = vld [vmem:[%s6 + $0x18] sm:$0xff]
        %v1145 = vld [vmem:[%s6 + $0x20] sm:$0xff]
        %v1146 = vld [vmem:[%s6 + $0x28] sm:$0xff]
        %v1147 = vld [vmem:[%s6 + $0x30] sm:$0xff]
        %v1148 = vld [vmem:[%s6 + $0x38] sm:$0xff]
        %v1157 = vunpack.c.l.b16 %v1141
        %v1158 = vunpack.c.h.b16 %v1141
        %v1159 = vunpack.c.l.b16 %v1142
        %v1160 = vunpack.c.h.b16 %v1142
        %v1161 = vunpack.c.l.b16 %v1143
        %v1162 = vunpack.c.h.b16 %v1143
        %v1163 = vunpack.c.l.b16 %v1144
        %v1164 = vunpack.c.h.b16 %v1144
        %v1165 = vunpack.c.l.b16 %v1145
        %v1166 = vunpack.c.h.b16 %v1145
        %v1167 = vunpack.c.l.b16 %v1146
        %v1168 = vunpack.c.h.b16 %v1146
        %v1169 = vunpack.c.l.b16 %v1147
        %v1170 = vunpack.c.h.b16 %v1147
        %v1171 = vunpack.c.l.b16 %v1148
        %v1172 = vunpack.c.h.b16 %v1148
        %v1173 = vpack.c.b16 %v1159, %v1157
        %v1174 = vpack.c.b16 %v1160, %v1158
        %v1175 = vpack.c.b16 %v1163, %v1161
        %v1176 = vpack.c.b16 %v1164, %v1162
        %v1177 = vpack.c.b16 %v1167, %v1165
        %v1178 = vpack.c.b16 %v1168, %v1166
        %v1179 = vpack.c.b16 %v1171, %v1169
        %v1180 = vpack.c.b16 %v1172, %v1170
        %v1190 = vsel %vm926, %v1140, 0
        %1192 = vmatprep.subr.bf16.mxu0 %v1174
        %1193 = vmatpush1.bf16.msra.mxu0 %v1173
        %1194 = vmatprep.subr.bf16.mxu0 %v1176
        %1195 = vmatpush1.bf16.msra.mxu0 %v1175
        %1196 = vmatprep.subr.bf16.mxu0 %v1178
        %1197 = vmatpush1.bf16.msra.mxu0 %v1177
        %1198 = vmatprep.subr.bf16.mxu0 %v1180
        %1199 = vmatpush1.bf16.msra.mxu0 %v1179
        %1200 = vmatprep.subr.bf16.mxu0 0
        %1201 = vmatpush1.bf16.msra.mxu0 0
        %1202 = vmatprep.subr.bf16.mxu0 0
        %1203 = vmatpush1.bf16.msra.mxu0 0
        %1204 = vmatprep.subr.bf16.mxu0 0
        %1205 = vmatpush1.bf16.msra.mxu0 0
        %1206 = vmatprep.subr.bf16.mxu0 0
        %1207 = vmatpush1.bf16.msra.mxu0 0
        %1208 = vmatprep.subr.bf16.mxu0 0
        %1209 = vmatpush1.bf16.msra.mxu0 0
        %1210 = vmatprep.subr.bf16.mxu0 0
        %1211 = vmatpush1.bf16.msra.mxu0 0
        %1212 = vmatprep.subr.bf16.mxu0 0
        %1213 = vmatpush1.bf16.msra.mxu0 0
        %1214 = vmatprep.subr.bf16.mxu0 0
        %1215 = vmatpush1.bf16.msra.mxu0 0
        %1216 = vmatprep.subr.bf16.mxu0 0
        %1217 = vmatpush1.bf16.msra.mxu0 0
        %1218 = vmatprep.subr.bf16.mxu0 0
        %1219 = vmatpush1.bf16.msra.mxu0 0
        %1220 = vmatprep.subr.bf16.mxu0 0
        %1221 = vmatpush1.bf16.msra.mxu0 0
        %1222 = vmatprep.subr.bf16.mxu0 0
        %1223 = vmatpush1.bf16.msra.mxu0 0
        %1224 = vmatprep.mubr.bf16.mxu0 0
        %1225 = vmatmul.mubr.bf16.gmra.mrb[0].mxu0 %v1190
        %v1226 = vpop.f32.mrb[0].mxu0
        %v1227 = vadd.f32 0.0, %v1226
        %v1228 = vpop.f32.mrb[0].mxu0
        %v1229 = vadd.f32 0.0, %v1228
        %v1230 = vpop.f32.mrb[0].mxu0
        %v1231 = vpop.f32.mrb[0].mxu0
        %1232 = vdwg.mxu0
        %v1233 = vld [vmem:[#allocation3] sm:$0xff]
        %v1234 = vmul.f32 %v1233, %v1137
        %v1235 = vld [vmem:[%s973] sm:$0xff]
        %v1236 = vmul.f32 %v1235, %v1137
        %v1237 = vadd.f32 %v835, %v1227
        %v1238 = vxor.u32 %v1237, 2147483648
        %v1239 = vmul.f32 %v1238, 1.442695
        %v1240 = vpow.pop %v1239
        %v1241 = vadd.f32 %v1240, 1.0
        %v1242 = vrcp.pop %v1241
        %v1243 = vmul.f32 1.0, %v1242
        %v1244 = vtanh.pop %v1237
        %1246 = vrot.lane.b32.xlu0 %v1234, 32
        %v1247 = vpop.permute.xlu0 %1246
        %v1249 = vmul.f32 %v1243, %v1247
        %1251 = vrot.lane.b32.xlu0 %v1244, 32
        %v1252 = vpop.permute.xlu0 %1251
        %v1254 = vmul.f32 %v1243, %v1252
        %1256 = vrot.lane.b32.xlu0 %v1254, 32
        %v1257 = vpop.permute.xlu0 %1256
        %v1259 = vadd.f32 %v1249, %v1257
        %v1260 = vtanh.pop %v1259
        %1262 = vrot.lane.b32.xlu0 %v1260, 32
        %v1263 = vpop.permute.xlu0 %1262
        %v1265 = vmul.f32 %v1243, %v1263
        %1267 = vrot.lane.b32.xlu0 %v1265, 64
        %v1268 = vpop.permute.xlu0 %1267
        %1270 = vst.msk [vmem:[#allocation2] sm:$0xff] %vm784, %v1268
        %1272 = vrot.lane.b32.xlu0 %v1259, 96
        %v1273 = vpop.permute.xlu0 %1272
        %1275 = vst.msk [vmem:[#allocation3] sm:$0xff] %vm784, %v1273
        %v1276 = vpack.c.bf16 %v1265, %v1265
        %v1277 = vld [vmem:[%s7] sm:$0xf]
        %v1278 = vld [vmem:[%s7 + $0x4] sm:$0xf]
        %v1279 = vld [vmem:[%s7 + $0x8] sm:$0xf]
        %v1280 = vld [vmem:[%s7 + $0xc] sm:$0xf]
        %1282 = vrot.lane.b32.xlu0 %v1276, 64
        %v1283 = vpop.permute.xlu0 %1282
        %v1288 = vunpack.c.l.b16 %v1277
        %v1289 = vunpack.c.l.b16 %v1278
        %v1290 = vunpack.c.l.b16 %v1279
        %v1291 = vunpack.c.l.b16 %v1280
        %v1292 = vpack.c.b16 %v1289, %v1288
        %v1293 = vpack.c.b16 %v1291, %v1290
        %v1297 = vsel %vm784, %v1283, 0
        %1299 = vmatprep.subr.bf16.mxu0 0
        %1300 = vmatpush1.bf16.msra.mxu0 %v1292
        %1301 = vmatprep.subr.bf16.mxu0 0
        %1302 = vmatpush1.bf16.msra.mxu0 %v1293
        %1303 = vmatprep.subr.bf16.mxu0 0
        %1304 = vmatpush1.bf16.msra.mxu0 0
        %1305 = vmatprep.subr.bf16.mxu0 0
        %1306 = vmatpush1.bf16.msra.mxu0 0
        %1307 = vmatprep.subr.bf16.mxu0 0
        %1308 = vmatpush1.bf16.msra.mxu0 0
        %1309 = vmatprep.subr.bf16.mxu0 0
        %1310 = vmatpush1.bf16.msra.mxu0 0
        %1311 = vmatprep.subr.bf16.mxu0 0
        %1312 = vmatpush1.bf16.msra.mxu0 0
        %1313 = vmatprep.subr.bf16.mxu0 0
        %1314 = vmatpush1.bf16.msra.mxu0 0
        %1315 = vmatprep.subr.bf16.mxu0 0
        %1316 = vmatpush1.bf16.msra.mxu0 0
        %1317 = vmatprep.subr.bf16.mxu0 0
        %1318 = vmatpush1.bf16.msra.mxu0 0
        %1319 = vmatprep.subr.bf16.mxu0 0
        %1320 = vmatpush1.bf16.msra.mxu0 0
        %1321 = vmatprep.subr.bf16.mxu0 0
        %1322 = vmatpush1.bf16.msra.mxu0 0
        %1323 = vmatprep.subr.bf16.mxu0 0
        %1324 = vmatpush1.bf16.msra.mxu0 0
        %1325 = vmatprep.subr.bf16.mxu0 0
        %1326 = vmatpush1.bf16.msra.mxu0 0
        %1327 = vmatprep.subr.bf16.mxu0 0
        %1328 = vmatpush1.bf16.msra.mxu0 0
        %1329 = vmatprep.subr.bf16.mxu0 0
        %1330 = vmatpush1.bf16.msra.mxu0 0
        %1331 = vmatprep.mubr.bf16.mxu0 0
        %1332 = vmatmul.mubr.bf16.gmra.mrb[0].mxu0 %v1297
        %v1333 = vpop.f32.mrb[0].mxu0
        %v1334 = vadd.f32 %v1229, %v1333
        %v1335 = vpop.f32.mrb[0].mxu0
        %v1336 = vpop.f32.mrb[0].mxu0
        %v1337 = vpop.f32.mrb[0].mxu0
        %1338 = vdwg.mxu0
        %v1339 = vld [vmem:[%s8] sm:$0x1]
        %v1341 = vlaneseq
        %v1342 = vshrl.u32 %v1341, 7
        %v1343 = vsub.s32 0, %v1342
        %v1344 = vrot.slane %v1339, %v1343
        %v1346 = vadd.f32 %v1334, %v1344
        %v1347 = vxor.u32 %v1346, 2147483648
        %v1348 = vmul.f32 %v1347, 1.442695
        %v1349 = vpow.pop %v1348
        %v1350 = vadd.f32 %v1349, 1.0
        %v1351 = vrcp.pop %v1350
        %v1352 = vmul.f32 1.0, %v1351
        %v1353 = vtanh.pop %v1346
        %1355 = vrot.lane.b32.xlu0 %v1236, 32
        %v1356 = vpop.permute.xlu0 %1355
        %v1358 = vmul.f32 %v1352, %v1356
        %1360 = vrot.lane.b32.xlu0 %v1353, 32
        %v1361 = vpop.permute.xlu0 %1360
        %v1363 = vmul.f32 %v1352, %v1361
        %1365 = vrot.lane.b32.xlu0 %v1363, 32
        %v1366 = vpop.permute.xlu0 %1365
        %v1368 = vadd.f32 %v1358, %v1366
        %v1369 = vtanh.pop %v1368
        %1371 = vrot.lane.b32.xlu0 %v1369, 32
        %v1372 = vpop.permute.xlu0 %1371
        %v1374 = vmul.f32 %v1352, %v1372
        %1376 = vrot.lane.b32.xlu0 %v1374, 64
        %v1377 = vpop.permute.xlu0 %1376
        %1379 = vst.msk [vmem:[%s864] sm:$0xff] %vm784, %v1377
        %1381 = vrot.lane.b32.xlu0 %v1368, 96
        %v1382 = vpop.permute.xlu0 %1381
        %1384 = vst.msk [vmem:[%s973] sm:$0xff] %vm784, %v1382
        %s1385 = scalar_lea.vmem %s719, 8 [#allocation8]
        %1386 = vst.msk [vmem:[%s1385] sm:$0xff] %vm784, %v1377
        %s1387 = scalar_lea.vmem %s658, 16 [#allocation5]
        %v1388 = vld [vmem:[%s1387] sm:$0xff]
        %v1389 = vld [vmem:[#allocation2] sm:$0xff]
        %v1390 = vld [vmem:[%s864] sm:$0xff]
        %1392 = vrot.lane.b32.xlu0 %v1390, 32
        %v1393 = vpop.permute.xlu0 %1392
        %v1395 = vsel %vm784, %v1389, %v1393
        %1397 = vset.pattern.permute.xlu0 0
        %1398 = vperm.xlu0 %1397, %v1388
        %v1399 = vpop.permute.xlu0 %1398
        %v1401 = vmul.f32 %v1395, %v1399
        %v1402 = vpack.c.bf16 %v1401, %v1401
        %v1403 = vld [vmem:[%s6] sm:$0xff]
        %v1404 = vld [vmem:[%s6 + $0x8] sm:$0xff]
        %v1405 = vld [vmem:[%s6 + $0x10] sm:$0xff]
        %v1406 = vld [vmem:[%s6 + $0x18] sm:$0xff]
        %v1407 = vld [vmem:[%s6 + $0x20] sm:$0xff]
        %v1408 = vld [vmem:[%s6 + $0x28] sm:$0xff]
        %v1409 = vld [vmem:[%s6 + $0x30] sm:$0xff]
        %v1410 = vld [vmem:[%s6 + $0x38] sm:$0xff]
        %v1419 = vunpack.c.l.b16 %v1403
        %v1420 = vunpack.c.h.b16 %v1403
        %v1421 = vunpack.c.l.b16 %v1404
        %v1422 = vunpack.c.h.b16 %v1404
        %v1423 = vunpack.c.l.b16 %v1405
        %v1424 = vunpack.c.h.b16 %v1405
        %v1425 = vunpack.c.l.b16 %v1406
        %v1426 = vunpack.c.h.b16 %v1406
        %v1427 = vunpack.c.l.b16 %v1407
        %v1428 = vunpack.c.h.b16 %v1407
        %v1429 = vunpack.c.l.b16 %v1408
        %v1430 = vunpack.c.h.b16 %v1408
        %v1431 = vunpack.c.l.b16 %v1409
        %v1432 = vunpack.c.h.b16 %v1409
        %v1433 = vunpack.c.l.b16 %v1410
        %v1434 = vunpack.c.h.b16 %v1410
        %v1435 = vpack.c.b16 %v1421, %v1419
        %v1436 = vpack.c.b16 %v1422, %v1420
        %v1437 = vpack.c.b16 %v1425, %v1423
        %v1438 = vpack.c.b16 %v1426, %v1424
        %v1439 = vpack.c.b16 %v1429, %v1427
        %v1440 = vpack.c.b16 %v1430, %v1428
        %v1441 = vpack.c.b16 %v1433, %v1431
        %v1442 = vpack.c.b16 %v1434, %v1432
        %v1452 = vsel %vm926, %v1402, 0
        %1454 = vmatprep.subr.bf16.mxu0 %v1436
        %1455 = vmatpush1.bf16.msra.mxu0 %v1435
        %1456 = vmatprep.subr.bf16.mxu0 %v1438
        %1457 = vmatpush1.bf16.msra.mxu0 %v1437
        %1458 = vmatprep.subr.bf16.mxu0 %v1440
        %1459 = vmatpush1.bf16.msra.mxu0 %v1439
        %1460 = vmatprep.subr.bf16.mxu0 %v1442
        %1461 = vmatpush1.bf16.msra.mxu0 %v1441
        %1462 = vmatprep.subr.bf16.mxu0 0
        %1463 = vmatpush1.bf16.msra.mxu0 0
        %1464 = vmatprep.subr.bf16.mxu0 0
        %1465 = vmatpush1.bf16.msra.mxu0 0
        %1466 = vmatprep.subr.bf16.mxu0 0
        %1467 = vmatpush1.bf16.msra.mxu0 0
        %1468 = vmatprep.subr.bf16.mxu0 0
        %1469 = vmatpush1.bf16.msra.mxu0 0
        %1470 = vmatprep.subr.bf16.mxu0 0
        %1471 = vmatpush1.bf16.msra.mxu0 0
        %1472 = vmatprep.subr.bf16.mxu0 0
        %1473 = vmatpush1.bf16.msra.mxu0 0
        %1474 = vmatprep.subr.bf16.mxu0 0
        %1475 = vmatpush1.bf16.msra.mxu0 0
        %1476 = vmatprep.subr.bf16.mxu0 0
        %1477 = vmatpush1.bf16.msra.mxu0 0
        %1478 = vmatprep.subr.bf16.mxu0 0
        %1479 = vmatpush1.bf16.msra.mxu0 0
        %1480 = vmatprep.subr.bf16.mxu0 0
        %1481 = vmatpush1.bf16.msra.mxu0 0
        %1482 = vmatprep.subr.bf16.mxu0 0
        %1483 = vmatpush1.bf16.msra.mxu0 0
        %1484 = vmatprep.subr.bf16.mxu0 0
        %1485 = vmatpush1.bf16.msra.mxu0 0
        %1486 = vmatprep.mubr.bf16.mxu0 0
        %1487 = vmatmul.mubr.bf16.gmra.mrb[0].mxu0 %v1452
        %v1488 = vpop.f32.mrb[0].mxu0
        %v1489 = vadd.f32 0.0, %v1488
        %v1490 = vpop.f32.mrb[0].mxu0
        %v1491 = vadd.f32 0.0, %v1490
        %v1492 = vpop.f32.mrb[0].mxu0
        %v1493 = vpop.f32.mrb[0].mxu0
        %1494 = vdwg.mxu0
        %v1495 = vld [vmem:[#allocation3] sm:$0xff]
        %v1496 = vmul.f32 %v1495, %v1399
        %v1497 = vld [vmem:[%s973] sm:$0xff]
        %v1498 = vmul.f32 %v1497, %v1399
        %v1499 = vadd.f32 %v840, %v1489
        %v1500 = vxor.u32 %v1499, 2147483648
        %v1501 = vmul.f32 %v1500, 1.442695
        %v1502 = vpow.pop %v1501
        %v1503 = vadd.f32 %v1502, 1.0
        %v1504 = vrcp.pop %v1503
        %v1505 = vmul.f32 1.0, %v1504
        %v1506 = vtanh.pop %v1499
        %1508 = vrot.lane.b32.xlu0 %v1496, 32
        %v1509 = vpop.permute.xlu0 %1508
        %v1511 = vmul.f32 %v1505, %v1509
        %1513 = vrot.lane.b32.xlu0 %v1506, 32
        %v1514 = vpop.permute.xlu0 %1513
        %v1516 = vmul.f32 %v1505, %v1514
        %1518 = vrot.lane.b32.xlu0 %v1516, 32
        %v1519 = vpop.permute.xlu0 %1518
        %v1521 = vadd.f32 %v1511, %v1519
        %v1522 = vtanh.pop %v1521
        %1524 = vrot.lane.b32.xlu0 %v1522, 32
        %v1525 = vpop.permute.xlu0 %1524
        %v1527 = vmul.f32 %v1505, %v1525
        %1529 = vrot.lane.b32.xlu0 %v1527, 64
        %v1530 = vpop.permute.xlu0 %1529
        %1532 = vst.msk [vmem:[#allocation2] sm:$0xff] %vm784, %v1530
        %1534 = vrot.lane.b32.xlu0 %v1521, 96
        %v1535 = vpop.permute.xlu0 %1534
        %1537 = vst.msk [vmem:[#allocation3] sm:$0xff] %vm784, %v1535
        %v1538 = vpack.c.bf16 %v1527, %v1527
        %v1539 = vld [vmem:[%s7] sm:$0xf]
        %v1540 = vld [vmem:[%s7 + $0x4] sm:$0xf]
        %v1541 = vld [vmem:[%s7 + $0x8] sm:$0xf]
        %v1542 = vld [vmem:[%s7 + $0xc] sm:$0xf]
        %1544 = vrot.lane.b32.xlu0 %v1538, 64
        %v1545 = vpop.permute.xlu0 %1544
        %v1550 = vunpack.c.l.b16 %v1539
        %v1551 = vunpack.c.l.b16 %v1540
        %v1552 = vunpack.c.l.b16 %v1541
        %v1553 = vunpack.c.l.b16 %v1542
        %v1554 = vpack.c.b16 %v1551, %v1550
        %v1555 = vpack.c.b16 %v1553, %v1552
        %v1559 = vsel %vm784, %v1545, 0
        %1561 = vmatprep.subr.bf16.mxu0 0
        %1562 = vmatpush1.bf16.msra.mxu0 %v1554
        %1563 = vmatprep.subr.bf16.mxu0 0
        %1564 = vmatpush1.bf16.msra.mxu0 %v1555
        %1565 = vmatprep.subr.bf16.mxu0 0
        %1566 = vmatpush1.bf16.msra.mxu0 0
        %1567 = vmatprep.subr.bf16.mxu0 0
        %1568 = vmatpush1.bf16.msra.mxu0 0
        %1569 = vmatprep.subr.bf16.mxu0 0
        %1570 = vmatpush1.bf16.msra.mxu0 0
        %1571 = vmatprep.subr.bf16.mxu0 0
        %1572 = vmatpush1.bf16.msra.mxu0 0
        %1573 = vmatprep.subr.bf16.mxu0 0
        %1574 = vmatpush1.bf16.msra.mxu0 0
        %1575 = vmatprep.subr.bf16.mxu0 0
        %1576 = vmatpush1.bf16.msra.mxu0 0
        %1577 = vmatprep.subr.bf16.mxu0 0
        %1578 = vmatpush1.bf16.msra.mxu0 0
        %1579 = vmatprep.subr.bf16.mxu0 0
        %1580 = vmatpush1.bf16.msra.mxu0 0
        %1581 = vmatprep.subr.bf16.mxu0 0
        %1582 = vmatpush1.bf16.msra.mxu0 0
        %1583 = vmatprep.subr.bf16.mxu0 0
        %1584 = vmatpush1.bf16.msra.mxu0 0
        %1585 = vmatprep.subr.bf16.mxu0 0
        %1586 = vmatpush1.bf16.msra.mxu0 0
        %1587 = vmatprep.subr.bf16.mxu0 0
        %1588 = vmatpush1.bf16.msra.mxu0 0
        %1589 = vmatprep.subr.bf16.mxu0 0
        %1590 = vmatpush1.bf16.msra.mxu0 0
        %1591 = vmatprep.subr.bf16.mxu0 0
        %1592 = vmatpush1.bf16.msra.mxu0 0
        %1593 = vmatprep.mubr.bf16.mxu0 0
        %1594 = vmatmul.mubr.bf16.gmra.mrb[0].mxu0 %v1559
        %v1595 = vpop.f32.mrb[0].mxu0
        %v1596 = vadd.f32 %v1491, %v1595
        %v1597 = vpop.f32.mrb[0].mxu0
        %v1598 = vpop.f32.mrb[0].mxu0
        %v1599 = vpop.f32.mrb[0].mxu0
        %1600 = vdwg.mxu0
        %v1601 = vld [vmem:[%s8] sm:$0x1]
        %v1603 = vlaneseq
        %v1604 = vshrl.u32 %v1603, 7
        %v1605 = vsub.s32 0, %v1604
        %v1606 = vrot.slane %v1601, %v1605
        %v1608 = vadd.f32 %v1596, %v1606
        %v1609 = vxor.u32 %v1608, 2147483648
        %v1610 = vmul.f32 %v1609, 1.442695
        %v1611 = vpow.pop %v1610
        %v1612 = vadd.f32 %v1611, 1.0
        %v1613 = vrcp.pop %v1612
        %v1614 = vmul.f32 1.0, %v1613
        %v1615 = vtanh.pop %v1608
        %1617 = vrot.lane.b32.xlu0 %v1498, 32
        %v1618 = vpop.permute.xlu0 %1617
        %v1620 = vmul.f32 %v1614, %v1618
        %1622 = vrot.lane.b32.xlu0 %v1615, 32
        %v1623 = vpop.permute.xlu0 %1622
        %v1625 = vmul.f32 %v1614, %v1623
        %1627 = vrot.lane.b32.xlu0 %v1625, 32
        %v1628 = vpop.permute.xlu0 %1627
        %v1630 = vadd.f32 %v1620, %v1628
        %v1631 = vtanh.pop %v1630
        %1633 = vrot.lane.b32.xlu0 %v1631, 32
        %v1634 = vpop.permute.xlu0 %1633
        %v1636 = vmul.f32 %v1614, %v1634
        %1638 = vrot.lane.b32.xlu0 %v1636, 64
        %v1639 = vpop.permute.xlu0 %1638
        %1641 = vst.msk [vmem:[%s864] sm:$0xff] %vm784, %v1639
        %1643 = vrot.lane.b32.xlu0 %v1630, 96
        %v1644 = vpop.permute.xlu0 %1643
        %1646 = vst.msk [vmem:[%s973] sm:$0xff] %vm784, %v1644
        %s1647 = scalar_lea.vmem %s719, 16 [#allocation8]
        %1648 = vst.msk [vmem:[%s1647] sm:$0xff] %vm784, %v1639
        %s1649 = scalar_lea.vmem %s658, 24 [#allocation5]
        %v1650 = vld [vmem:[%s1649] sm:$0xff]
        %v1651 = vld [vmem:[#allocation2] sm:$0xff]
        %v1652 = vld [vmem:[%s864] sm:$0xff]
        %1654 = vrot.lane.b32.xlu0 %v1652, 32
        %v1655 = vpop.permute.xlu0 %1654
        %v1657 = vsel %vm784, %v1651, %v1655
        %1659 = vset.pattern.permute.xlu0 0
        %1660 = vperm.xlu0 %1659, %v1650
        %v1661 = vpop.permute.xlu0 %1660
        %v1663 = vmul.f32 %v1657, %v1661
        %v1664 = vpack.c.bf16 %v1663, %v1663
        %v1665 = vld [vmem:[%s6] sm:$0xff]
        %v1666 = vld [vmem:[%s6 + $0x8] sm:$0xff]
        %v1667 = vld [vmem:[%s6 + $0x10] sm:$0xff]
        %v1668 = vld [vmem:[%s6 + $0x18] sm:$0xff]
        %v1669 = vld [vmem:[%s6 + $0x20] sm:$0xff]
        %v1670 = vld [vmem:[%s6 + $0x28] sm:$0xff]
        %v1671 = vld [vmem:[%s6 + $0x30] sm:$0xff]
        %v1672 = vld [vmem:[%s6 + $0x38] sm:$0xff]
        %v1681 = vunpack.c.l.b16 %v1665
        %v1682 = vunpack.c.h.b16 %v1665
        %v1683 = vunpack.c.l.b16 %v1666
        %v1684 = vunpack.c.h.b16 %v1666
        %v1685 = vunpack.c.l.b16 %v1667
        %v1686 = vunpack.c.h.b16 %v1667
        %v1687 = vunpack.c.l.b16 %v1668
        %v1688 = vunpack.c.h.b16 %v1668
        %v1689 = vunpack.c.l.b16 %v1669
        %v1690 = vunpack.c.h.b16 %v1669
        %v1691 = vunpack.c.l.b16 %v1670
        %v1692 = vunpack.c.h.b16 %v1670
        %v1693 = vunpack.c.l.b16 %v1671
        %v1694 = vunpack.c.h.b16 %v1671
        %v1695 = vunpack.c.l.b16 %v1672
        %v1696 = vunpack.c.h.b16 %v1672
        %v1697 = vpack.c.b16 %v1683, %v1681
        %v1698 = vpack.c.b16 %v1684, %v1682
        %v1699 = vpack.c.b16 %v1687, %v1685
        %v1700 = vpack.c.b16 %v1688, %v1686
        %v1701 = vpack.c.b16 %v1691, %v1689
        %v1702 = vpack.c.b16 %v1692, %v1690
        %v1703 = vpack.c.b16 %v1695, %v1693
        %v1704 = vpack.c.b16 %v1696, %v1694
        %v1714 = vsel %vm926, %v1664, 0
        %1716 = vmatprep.subr.bf16.mxu0 %v1698
        %1717 = vmatpush1.bf16.msra.mxu0 %v1697
        %1718 = vmatprep.subr.bf16.mxu0 %v1700
        %1719 = vmatpush1.bf16.msra.mxu0 %v1699
        %1720 = vmatprep.subr.bf16.mxu0 %v1702
        %1721 = vmatpush1.bf16.msra.mxu0 %v1701
        %1722 = vmatprep.subr.bf16.mxu0 %v1704
        %1723 = vmatpush1.bf16.msra.mxu0 %v1703
        %1724 = vmatprep.subr.bf16.mxu0 0
        %1725 = vmatpush1.bf16.msra.mxu0 0
        %1726 = vmatprep.subr.bf16.mxu0 0
        %1727 = vmatpush1.bf16.msra.mxu0 0
        %1728 = vmatprep.subr.bf16.mxu0 0
        %1729 = vmatpush1.bf16.msra.mxu0 0
        %1730 = vmatprep.subr.bf16.mxu0 0
        %1731 = vmatpush1.bf16.msra.mxu0 0
        %1732 = vmatprep.subr.bf16.mxu0 0
        %1733 = vmatpush1.bf16.msra.mxu0 0
        %1734 = vmatprep.subr.bf16.mxu0 0
        %1735 = vmatpush1.bf16.msra.mxu0 0
        %1736 = vmatprep.subr.bf16.mxu0 0
        %1737 = vmatpush1.bf16.msra.mxu0 0
        %1738 = vmatprep.subr.bf16.mxu0 0
        %1739 = vmatpush1.bf16.msra.mxu0 0
        %1740 = vmatprep.subr.bf16.mxu0 0
        %1741 = vmatpush1.bf16.msra.mxu0 0
        %1742 = vmatprep.subr.bf16.mxu0 0
        %1743 = vmatpush1.bf16.msra.mxu0 0
        %1744 = vmatprep.subr.bf16.mxu0 0
        %1745 = vmatpush1.bf16.msra.mxu0 0
        %1746 = vmatprep.subr.bf16.mxu0 0
        %1747 = vmatpush1.bf16.msra.mxu0 0
        %1748 = vmatprep.mubr.bf16.mxu0 0
        %1749 = vmatmul.mubr.bf16.gmra.mrb[0].mxu0 %v1714
        %v1750 = vpop.f32.mrb[0].mxu0
        %v1751 = vadd.f32 0.0, %v1750
        %v1752 = vpop.f32.mrb[0].mxu0
        %v1753 = vadd.f32 0.0, %v1752
        %v1754 = vpop.f32.mrb[0].mxu0
        %v1755 = vpop.f32.mrb[0].mxu0
        %1756 = vdwg.mxu0
        %v1757 = vld [vmem:[#allocation3] sm:$0xff]
        %v1758 = vmul.f32 %v1757, %v1661
        %v1759 = vld [vmem:[%s973] sm:$0xff]
        %v1760 = vmul.f32 %v1759, %v1661
        %v1761 = vadd.f32 %v843, %v1751
        %v1762 = vxor.u32 %v1761, 2147483648
        %v1763 = vmul.f32 %v1762, 1.442695
        %v1764 = vpow.pop %v1763
        %v1765 = vadd.f32 %v1764, 1.0
        %v1766 = vrcp.pop %v1765
        %v1767 = vmul.f32 1.0, %v1766
        %v1768 = vtanh.pop %v1761
        %1770 = vrot.lane.b32.xlu0 %v1758, 32
        %v1771 = vpop.permute.xlu0 %1770
        %v1773 = vmul.f32 %v1767, %v1771
        %1775 = vrot.lane.b32.xlu0 %v1768, 32
        %v1776 = vpop.permute.xlu0 %1775
        %v1778 = vmul.f32 %v1767, %v1776
        %1780 = vrot.lane.b32.xlu0 %v1778, 32
        %v1781 = vpop.permute.xlu0 %1780
        %v1783 = vadd.f32 %v1773, %v1781
        %v1784 = vtanh.pop %v1783
        %1786 = vrot.lane.b32.xlu0 %v1784, 32
        %v1787 = vpop.permute.xlu0 %1786
        %v1789 = vmul.f32 %v1767, %v1787
        %1791 = vrot.lane.b32.xlu0 %v1789, 64
        %v1792 = vpop.permute.xlu0 %1791
        %1794 = vst.msk [vmem:[#allocation2] sm:$0xff] %vm784, %v1792
        %1796 = vrot.lane.b32.xlu0 %v1783, 96
        %v1797 = vpop.permute.xlu0 %1796
        %1799 = vst.msk [vmem:[#allocation3] sm:$0xff] %vm784, %v1797
        %v1800 = vpack.c.bf16 %v1789, %v1789
        %v1801 = vld [vmem:[%s7] sm:$0xf]
        %v1802 = vld [vmem:[%s7 + $0x4] sm:$0xf]
        %v1803 = vld [vmem:[%s7 + $0x8] sm:$0xf]
        %v1804 = vld [vmem:[%s7 + $0xc] sm:$0xf]
        %1806 = vrot.lane.b32.xlu0 %v1800, 64
        %v1807 = vpop.permute.xlu0 %1806
        %v1812 = vunpack.c.l.b16 %v1801
        %v1813 = vunpack.c.l.b16 %v1802
        %v1814 = vunpack.c.l.b16 %v1803
        %v1815 = vunpack.c.l.b16 %v1804
        %v1816 = vpack.c.b16 %v1813, %v1812
        %v1817 = vpack.c.b16 %v1815, %v1814
        %v1821 = vsel %vm784, %v1807, 0
        %1823 = vmatprep.subr.bf16.mxu0 0
        %1824 = vmatpush1.bf16.msra.mxu0 %v1816
        %1825 = vmatprep.subr.bf16.mxu0 0
        %1826 = vmatpush1.bf16.msra.mxu0 %v1817
        %1827 = vmatprep.subr.bf16.mxu0 0
        %1828 = vmatpush1.bf16.msra.mxu0 0
        %1829 = vmatprep.subr.bf16.mxu0 0
        %1830 = vmatpush1.bf16.msra.mxu0 0
        %1831 = vmatprep.subr.bf16.mxu0 0
        %1832 = vmatpush1.bf16.msra.mxu0 0
        %1833 = vmatprep.subr.bf16.mxu0 0
        %1834 = vmatpush1.bf16.msra.mxu0 0
        %1835 = vmatprep.subr.bf16.mxu0 0
        %1836 = vmatpush1.bf16.msra.mxu0 0
        %1837 = vmatprep.subr.bf16.mxu0 0
        %1838 = vmatpush1.bf16.msra.mxu0 0
        %1839 = vmatprep.subr.bf16.mxu0 0
        %1840 = vmatpush1.bf16.msra.mxu0 0
        %1841 = vmatprep.subr.bf16.mxu0 0
        %1842 = vmatpush1.bf16.msra.mxu0 0
        %1843 = vmatprep.subr.bf16.mxu0 0
        %1844 = vmatpush1.bf16.msra.mxu0 0
        %1845 = vmatprep.subr.bf16.mxu0 0
        %1846 = vmatpush1.bf16.msra.mxu0 0
        %1847 = vmatprep.subr.bf16.mxu0 0
        %1848 = vmatpush1.bf16.msra.mxu0 0
        %1849 = vmatprep.subr.bf16.mxu0 0
        %1850 = vmatpush1.bf16.msra.mxu0 0
        %1851 = vmatprep.subr.bf16.mxu0 0
        %1852 = vmatpush1.bf16.msra.mxu0 0
        %1853 = vmatprep.subr.bf16.mxu0 0
        %1854 = vmatpush1.bf16.msra.mxu0 0
        %1855 = vmatprep.mubr.bf16.mxu0 0
        %1856 = vmatmul.mubr.bf16.gmra.mrb[0].mxu0 %v1821
        %v1857 = vpop.f32.mrb[0].mxu0
        %v1858 = vadd.f32 %v1753, %v1857
        %v1859 = vpop.f32.mrb[0].mxu0
        %v1860 = vpop.f32.mrb[0].mxu0
        %v1861 = vpop.f32.mrb[0].mxu0
        %1862 = vdwg.mxu0
        %v1863 = vld [vmem:[%s8] sm:$0x1]
        %v1865 = vlaneseq
        %v1866 = vshrl.u32 %v1865, 7
        %v1867 = vsub.s32 0, %v1866
        %v1868 = vrot.slane %v1863, %v1867
        %v1870 = vadd.f32 %v1858, %v1868
        %v1871 = vxor.u32 %v1870, 2147483648
        %v1872 = vmul.f32 %v1871, 1.442695
        %v1873 = vpow.pop %v1872
        %v1874 = vadd.f32 %v1873, 1.0
        %v1875 = vrcp.pop %v1874
        %v1876 = vmul.f32 1.0, %v1875
        %v1877 = vtanh.pop %v1870
        %1879 = vrot.lane.b32.xlu0 %v1760, 32
        %v1880 = vpop.permute.xlu0 %1879
        %v1882 = vmul.f32 %v1876, %v1880
        %1884 = vrot.lane.b32.xlu0 %v1877, 32
        %v1885 = vpop.permute.xlu0 %1884
        %v1887 = vmul.f32 %v1876, %v1885
        %1889 = vrot.lane.b32.xlu0 %v1887, 32
        %v1890 = vpop.permute.xlu0 %1889
        %v1892 = vadd.f32 %v1882, %v1890
        %v1893 = vtanh.pop %v1892
        %1895 = vrot.lane.b32.xlu0 %v1893, 32
        %v1896 = vpop.permute.xlu0 %1895
        %v1898 = vmul.f32 %v1876, %v1896
        %1900 = vrot.lane.b32.xlu0 %v1898, 64
        %v1901 = vpop.permute.xlu0 %1900
        %1903 = vst.msk [vmem:[%s864] sm:$0xff] %vm784, %v1901
        %1905 = vrot.lane.b32.xlu0 %v1892, 96
        %v1906 = vpop.permute.xlu0 %1905
        %1908 = vst.msk [vmem:[%s973] sm:$0xff] %vm784, %v1906
        %s1909 = scalar_lea.vmem %s719, 24 [#allocation8]
        %1910 = vst.msk [vmem:[%s1909] sm:$0xff] %vm784, %v1901
        %s1911 = scalar_lea.vmem %s658, 32 [#allocation5]
        %v1912 = vld [vmem:[%s1911] sm:$0xff]
        %v1913 = vld [vmem:[#allocation2] sm:$0xff]
        %v1914 = vld [vmem:[%s864] sm:$0xff]
        %1916 = vrot.lane.b32.xlu0 %v1914, 32
        %v1917 = vpop.permute.xlu0 %1916
        %v1919 = vsel %vm784, %v1913, %v1917
        %1921 = vset.pattern.permute.xlu0 0
        %1922 = vperm.xlu0 %1921, %v1912
        %v1923 = vpop.permute.xlu0 %1922
        %v1925 = vmul.f32 %v1919, %v1923
        %v1926 = vpack.c.bf16 %v1925, %v1925
        %v1927 = vld [vmem:[%s6] sm:$0xff]
        %v1928 = vld [vmem:[%s6 + $0x8] sm:$0xff]
        %v1929 = vld [vmem:[%s6 + $0x10] sm:$0xff]
        %v1930 = vld [vmem:[%s6 + $0x18] sm:$0xff]
        %v1931 = vld [vmem:[%s6 + $0x20] sm:$0xff]
        %v1932 = vld [vmem:[%s6 + $0x28] sm:$0xff]
        %v1933 = vld [vmem:[%s6 + $0x30] sm:$0xff]
        %v1934 = vld [vmem:[%s6 + $0x38] sm:$0xff]
        %v1943 = vunpack.c.l.b16 %v1927
        %v1944 = vunpack.c.h.b16 %v1927
        %v1945 = vunpack.c.l.b16 %v1928
        %v1946 = vunpack.c.h.b16 %v1928
        %v1947 = vunpack.c.l.b16 %v1929
        %v1948 = vunpack.c.h.b16 %v1929
        %v1949 = vunpack.c.l.b16 %v1930
        %v1950 = vunpack.c.h.b16 %v1930
        %v1951 = vunpack.c.l.b16 %v1931
        %v1952 = vunpack.c.h.b16 %v1931
        %v1953 = vunpack.c.l.b16 %v1932
        %v1954 = vunpack.c.h.b16 %v1932
        %v1955 = vunpack.c.l.b16 %v1933
        %v1956 = vunpack.c.h.b16 %v1933
        %v1957 = vunpack.c.l.b16 %v1934
        %v1958 = vunpack.c.h.b16 %v1934
        %v1959 = vpack.c.b16 %v1945, %v1943
        %v1960 = vpack.c.b16 %v1946, %v1944
        %v1961 = vpack.c.b16 %v1949, %v1947
        %v1962 = vpack.c.b16 %v1950, %v1948
        %v1963 = vpack.c.b16 %v1953, %v1951
        %v1964 = vpack.c.b16 %v1954, %v1952
        %v1965 = vpack.c.b16 %v1957, %v1955
        %v1966 = vpack.c.b16 %v1958, %v1956
        %v1976 = vsel %vm926, %v1926, 0
        %1978 = vmatprep.subr.bf16.mxu0 %v1960
        %1979 = vmatpush1.bf16.msra.mxu0 %v1959
        %1980 = vmatprep.subr.bf16.mxu0 %v1962
        %1981 = vmatpush1.bf16.msra.mxu0 %v1961
        %1982 = vmatprep.subr.bf16.mxu0 %v1964
        %1983 = vmatpush1.bf16.msra.mxu0 %v1963
        %1984 = vmatprep.subr.bf16.mxu0 %v1966
        %1985 = vmatpush1.bf16.msra.mxu0 %v1965
        %1986 = vmatprep.subr.bf16.mxu0 0
        %1987 = vmatpush1.bf16.msra.mxu0 0
        %1988 = vmatprep.subr.bf16.mxu0 0
        %1989 = vmatpush1.bf16.msra.mxu0 0
        %1990 = vmatprep.subr.bf16.mxu0 0
        %1991 = vmatpush1.bf16.msra.mxu0 0
        %1992 = vmatprep.subr.bf16.mxu0 0
        %1993 = vmatpush1.bf16.msra.mxu0 0
        %1994 = vmatprep.subr.bf16.mxu0 0
        %1995 = vmatpush1.bf16.msra.mxu0 0
        %1996 = vmatprep.subr.bf16.mxu0 0
        %1997 = vmatpush1.bf16.msra.mxu0 0
        %1998 = vmatprep.subr.bf16.mxu0 0
        %1999 = vmatpush1.bf16.msra.mxu0 0
        %2000 = vmatprep.subr.bf16.mxu0 0
        %2001 = vmatpush1.bf16.msra.mxu0 0
        %2002 = vmatprep.subr.bf16.mxu0 0
        %2003 = vmatpush1.bf16.msra.mxu0 0
        %2004 = vmatprep.subr.bf16.mxu0 0
        %2005 = vmatpush1.bf16.msra.mxu0 0
        %2006 = vmatprep.subr.bf16.mxu0 0
        %2007 = vmatpush1.bf16.msra.mxu0 0
        %2008 = vmatprep.subr.bf16.mxu0 0
        %2009 = vmatpush1.bf16.msra.mxu0 0
        %2010 = vmatprep.mubr.bf16.mxu0 0
        %2011 = vmatmul.mubr.bf16.gmra.mrb[0].mxu0 %v1976
        %v2012 = vpop.f32.mrb[0].mxu0
        %v2013 = vadd.f32 0.0, %v2012
        %v2014 = vpop.f32.mrb[0].mxu0
        %v2015 = vadd.f32 0.0, %v2014
        %v2016 = vpop.f32.mrb[0].mxu0
        %v2017 = vpop.f32.mrb[0].mxu0
        %2018 = vdwg.mxu0
        %v2019 = vld [vmem:[#allocation3] sm:$0xff]
        %v2020 = vmul.f32 %v2019, %v1923
        %v2021 = vld [vmem:[%s973] sm:$0xff]
        %v2022 = vmul.f32 %v2021, %v1923
        %v2023 = vadd.f32 %v848, %v2013
        %v2024 = vxor.u32 %v2023, 2147483648
        %v2025 = vmul.f32 %v2024, 1.442695
        %v2026 = vpow.pop %v2025
        %v2027 = vadd.f32 %v2026, 1.0
        %v2028 = vrcp.pop %v2027
        %v2029 = vmul.f32 1.0, %v2028
        %v2030 = vtanh.pop %v2023
        %2032 = vrot.lane.b32.xlu0 %v2020, 32
        %v2033 = vpop.permute.xlu0 %2032
        %v2035 = vmul.f32 %v2029, %v2033
        %2037 = vrot.lane.b32.xlu0 %v2030, 32
        %v2038 = vpop.permute.xlu0 %2037
        %v2040 = vmul.f32 %v2029, %v2038
        %2042 = vrot.lane.b32.xlu0 %v2040, 32
        %v2043 = vpop.permute.xlu0 %2042
        %v2045 = vadd.f32 %v2035, %v2043
        %v2046 = vtanh.pop %v2045
        %2048 = vrot.lane.b32.xlu0 %v2046, 32
        %v2049 = vpop.permute.xlu0 %2048
        %v2051 = vmul.f32 %v2029, %v2049
        %2053 = vrot.lane.b32.xlu0 %v2051, 64
        %v2054 = vpop.permute.xlu0 %2053
        %2056 = vst.msk [vmem:[#allocation2] sm:$0xff] %vm784, %v2054
        %2058 = vrot.lane.b32.xlu0 %v2045, 96
        %v2059 = vpop.permute.xlu0 %2058
        %2061 = vst.msk [vmem:[#allocation3] sm:$0xff] %vm784, %v2059
        %v2062 = vpack.c.bf16 %v2051, %v2051
        %v2063 = vld [vmem:[%s7] sm:$0xf]
        %v2064 = vld [vmem:[%s7 + $0x4] sm:$0xf]
        %v2065 = vld [vmem:[%s7 + $0x8] sm:$0xf]
        %v2066 = vld [vmem:[%s7 + $0xc] sm:$0xf]
        %2068 = vrot.lane.b32.xlu0 %v2062, 64
        %v2069 = vpop.permute.xlu0 %2068
        %v2074 = vunpack.c.l.b16 %v2063
        %v2075 = vunpack.c.l.b16 %v2064
        %v2076 = vunpack.c.l.b16 %v2065
        %v2077 = vunpack.c.l.b16 %v2066
        %v2078 = vpack.c.b16 %v2075, %v2074
        %v2079 = vpack.c.b16 %v2077, %v2076
        %v2083 = vsel %vm784, %v2069, 0
        %2085 = vmatprep.subr.bf16.mxu0 0
        %2086 = vmatpush1.bf16.msra.mxu0 %v2078
        %2087 = vmatprep.subr.bf16.mxu0 0
        %2088 = vmatpush1.bf16.msra.mxu0 %v2079
        %2089 = vmatprep.subr.bf16.mxu0 0
        %2090 = vmatpush1.bf16.msra.mxu0 0
        %2091 = vmatprep.subr.bf16.mxu0 0
        %2092 = vmatpush1.bf16.msra.mxu0 0
        %2093 = vmatprep.subr.bf16.mxu0 0
        %2094 = vmatpush1.bf16.msra.mxu0 0
        %2095 = vmatprep.subr.bf16.mxu0 0
        %2096 = vmatpush1.bf16.msra.mxu0 0
        %2097 = vmatprep.subr.bf16.mxu0 0
        %2098 = vmatpush1.bf16.msra.mxu0 0
        %2099 = vmatprep.subr.bf16.mxu0 0
        %2100 = vmatpush1.bf16.msra.mxu0 0
        %2101 = vmatprep.subr.bf16.mxu0 0
        %2102 = vmatpush1.bf16.msra.mxu0 0
        %2103 = vmatprep.subr.bf16.mxu0 0
        %2104 = vmatpush1.bf16.msra.mxu0 0
        %2105 = vmatprep.subr.bf16.mxu0 0
        %2106 = vmatpush1.bf16.msra.mxu0 0
        %2107 = vmatprep.subr.bf16.mxu0 0
        %2108 = vmatpush1.bf16.msra.mxu0 0
        %2109 = vmatprep.subr.bf16.mxu0 0
        %2110 = vmatpush1.bf16.msra.mxu0 0
        %2111 = vmatprep.subr.bf16.mxu0 0
        %2112 = vmatpush1.bf16.msra.mxu0 0
        %2113 = vmatprep.subr.bf16.mxu0 0
        %2114 = vmatpush1.bf16.msra.mxu0 0
        %2115 = vmatprep.subr.bf16.mxu0 0
        %2116 = vmatpush1.bf16.msra.mxu0 0
        %2117 = vmatprep.mubr.bf16.mxu0 0
        %2118 = vmatmul.mubr.bf16.gmra.mrb[0].mxu0 %v2083
        %v2119 = vpop.f32.mrb[0].mxu0
        %v2120 = vadd.f32 %v2015, %v2119
        %v2121 = vpop.f32.mrb[0].mxu0
        %v2122 = vpop.f32.mrb[0].mxu0
        %v2123 = vpop.f32.mrb[0].mxu0
        %2124 = vdwg.mxu0
        %v2125 = vld [vmem:[%s8] sm:$0x1]
        %v2127 = vlaneseq
        %v2128 = vshrl.u32 %v2127, 7
        %v2129 = vsub.s32 0, %v2128
        %v2130 = vrot.slane %v2125, %v2129
        %v2132 = vadd.f32 %v2120, %v2130
        %v2133 = vxor.u32 %v2132, 2147483648
        %v2134 = vmul.f32 %v2133, 1.442695
        %v2135 = vpow.pop %v2134
        %v2136 = vadd.f32 %v2135, 1.0
        %v2137 = vrcp.pop %v2136
        %v2138 = vmul.f32 1.0, %v2137
        %v2139 = vtanh.pop %v2132
        %2141 = vrot.lane.b32.xlu0 %v2022, 32
        %v2142 = vpop.permute.xlu0 %2141
        %v2144 = vmul.f32 %v2138, %v2142
        %2146 = vrot.lane.b32.xlu0 %v2139, 32
        %v2147 = vpop.permute.xlu0 %2146
        %v2149 = vmul.f32 %v2138, %v2147
        %2151 = vrot.lane.b32.xlu0 %v2149, 32
        %v2152 = vpop.permute.xlu0 %2151
        %v2154 = vadd.f32 %v2144, %v2152
        %v2155 = vtanh.pop %v2154
        %2157 = vrot.lane.b32.xlu0 %v2155, 32
        %v2158 = vpop.permute.xlu0 %2157
        %v2160 = vmul.f32 %v2138, %v2158
        %2162 = vrot.lane.b32.xlu0 %v2160, 64
        %v2163 = vpop.permute.xlu0 %2162
        %2165 = vst.msk [vmem:[%s864] sm:$0xff] %vm784, %v2163
        %2167 = vrot.lane.b32.xlu0 %v2154, 96
        %v2168 = vpop.permute.xlu0 %2167
        %2170 = vst.msk [vmem:[%s973] sm:$0xff] %vm784, %v2168
        %s2171 = scalar_lea.vmem %s719, 32 [#allocation8]
        %2172 = vst.msk [vmem:[%s2171] sm:$0xff] %vm784, %v2163
        %s2173 = scalar_lea.vmem %s658, 40 [#allocation5]
        %v2174 = vld [vmem:[%s2173] sm:$0xff]
        %v2175 = vld [vmem:[#allocation2] sm:$0xff]
        %v2176 = vld [vmem:[%s864] sm:$0xff]
        %2178 = vrot.lane.b32.xlu0 %v2176, 32
        %v2179 = vpop.permute.xlu0 %2178
        %v2181 = vsel %vm784, %v2175, %v2179
        %2183 = vset.pattern.permute.xlu0 0
        %2184 = vperm.xlu0 %2183, %v2174
        %v2185 = vpop.permute.xlu0 %2184
        %v2187 = vmul.f32 %v2181, %v2185
        %v2188 = vpack.c.bf16 %v2187, %v2187
        %v2189 = vld [vmem:[%s6] sm:$0xff]
        %v2190 = vld [vmem:[%s6 + $0x8] sm:$0xff]
        %v2191 = vld [vmem:[%s6 + $0x10] sm:$0xff]
        %v2192 = vld [vmem:[%s6 + $0x18] sm:$0xff]
        %v2193 = vld [vmem:[%s6 + $0x20] sm:$0xff]
        %v2194 = vld [vmem:[%s6 + $0x28] sm:$0xff]
        %v2195 = vld [vmem:[%s6 + $0x30] sm:$0xff]
        %v2196 = vld [vmem:[%s6 + $0x38] sm:$0xff]
        %v2205 = vunpack.c.l.b16 %v2189
        %v2206 = vunpack.c.h.b16 %v2189
        %v2207 = vunpack.c.l.b16 %v2190
        %v2208 = vunpack.c.h.b16 %v2190
        %v2209 = vunpack.c.l.b16 %v2191
        %v2210 = vunpack.c.h.b16 %v2191
        %v2211 = vunpack.c.l.b16 %v2192
        %v2212 = vunpack.c.h.b16 %v2192
        %v2213 = vunpack.c.l.b16 %v2193
        %v2214 = vunpack.c.h.b16 %v2193
        %v2215 = vunpack.c.l.b16 %v2194
        %v2216 = vunpack.c.h.b16 %v2194
        %v2217 = vunpack.c.l.b16 %v2195
        %v2218 = vunpack.c.h.b16 %v2195
        %v2219 = vunpack.c.l.b16 %v2196
        %v2220 = vunpack.c.h.b16 %v2196
        %v2221 = vpack.c.b16 %v2207, %v2205
        %v2222 = vpack.c.b16 %v2208, %v2206
        %v2223 = vpack.c.b16 %v2211, %v2209
        %v2224 = vpack.c.b16 %v2212, %v2210
        %v2225 = vpack.c.b16 %v2215, %v2213
        %v2226 = vpack.c.b16 %v2216, %v2214
        %v2227 = vpack.c.b16 %v2219, %v2217
        %v2228 = vpack.c.b16 %v2220, %v2218
        %v2238 = vsel %vm926, %v2188, 0
        %2240 = vmatprep.subr.bf16.mxu0 %v2222
        %2241 = vmatpush1.bf16.msra.mxu0 %v2221
        %2242 = vmatprep.subr.bf16.mxu0 %v2224
        %2243 = vmatpush1.bf16.msra.mxu0 %v2223
        %2244 = vmatprep.subr.bf16.mxu0 %v2226
        %2245 = vmatpush1.bf16.msra.mxu0 %v2225
        %2246 = vmatprep.subr.bf16.mxu0 %v2228
        %2247 = vmatpush1.bf16.msra.mxu0 %v2227
        %2248 = vmatprep.subr.bf16.mxu0 0
        %2249 = vmatpush1.bf16.msra.mxu0 0
        %2250 = vmatprep.subr.bf16.mxu0 0
        %2251 = vmatpush1.bf16.msra.mxu0 0
        %2252 = vmatprep.subr.bf16.mxu0 0
        %2253 = vmatpush1.bf16.msra.mxu0 0
        %2254 = vmatprep.subr.bf16.mxu0 0
        %2255 = vmatpush1.bf16.msra.mxu0 0
        %2256 = vmatprep.subr.bf16.mxu0 0
        %2257 = vmatpush1.bf16.msra.mxu0 0
        %2258 = vmatprep.subr.bf16.mxu0 0
        %2259 = vmatpush1.bf16.msra.mxu0 0
        %2260 = vmatprep.subr.bf16.mxu0 0
        %2261 = vmatpush1.bf16.msra.mxu0 0
        %2262 = vmatprep.subr.bf16.mxu0 0
        %2263 = vmatpush1.bf16.msra.mxu0 0
        %2264 = vmatprep.subr.bf16.mxu0 0
        %2265 = vmatpush1.bf16.msra.mxu0 0
        %2266 = vmatprep.subr.bf16.mxu0 0
        %2267 = vmatpush1.bf16.msra.mxu0 0
        %2268 = vmatprep.subr.bf16.mxu0 0
        %2269 = vmatpush1.bf16.msra.mxu0 0
        %2270 = vmatprep.subr.bf16.mxu0 0
        %2271 = vmatpush1.bf16.msra.mxu0 0
        %2272 = vmatprep.mubr.bf16.mxu0 0
        %2273 = vmatmul.mubr.bf16.gmra.mrb[0].mxu0 %v2238
        %v2274 = vpop.f32.mrb[0].mxu0
        %v2275 = vadd.f32 0.0, %v2274
        %v2276 = vpop.f32.mrb[0].mxu0
        %v2277 = vadd.f32 0.0, %v2276
        %v2278 = vpop.f32.mrb[0].mxu0
        %v2279 = vpop.f32.mrb[0].mxu0
        %2280 = vdwg.mxu0
        %v2281 = vld [vmem:[#allocation3] sm:$0xff]
        %v2282 = vmul.f32 %v2281, %v2185
        %v2283 = vld [vmem:[%s973] sm:$0xff]
        %v2284 = vmul.f32 %v2283, %v2185
        %v2285 = vadd.f32 %v851, %v2275
        %v2286 = vxor.u32 %v2285, 2147483648
        %v2287 = vmul.f32 %v2286, 1.442695
        %v2288 = vpow.pop %v2287
        %v2289 = vadd.f32 %v2288, 1.0
        %v2290 = vrcp.pop %v2289
        %v2291 = vmul.f32 1.0, %v2290
        %v2292 = vtanh.pop %v2285
        %2294 = vrot.lane.b32.xlu0 %v2282, 32
        %v2295 = vpop.permute.xlu0 %2294
        %v2297 = vmul.f32 %v2291, %v2295
        %2299 = vrot.lane.b32.xlu0 %v2292, 32
        %v2300 = vpop.permute.xlu0 %2299
        %v2302 = vmul.f32 %v2291, %v2300
        %2304 = vrot.lane.b32.xlu0 %v2302, 32
        %v2305 = vpop.permute.xlu0 %2304
        %v2307 = vadd.f32 %v2297, %v2305
        %v2308 = vtanh.pop %v2307
        %2310 = vrot.lane.b32.xlu0 %v2308, 32
        %v2311 = vpop.permute.xlu0 %2310
        %v2313 = vmul.f32 %v2291, %v2311
        %2315 = vrot.lane.b32.xlu0 %v2313, 64
        %v2316 = vpop.permute.xlu0 %2315
        %2318 = vst.msk [vmem:[#allocation2] sm:$0xff] %vm784, %v2316
        %2320 = vrot.lane.b32.xlu0 %v2307, 96
        %v2321 = vpop.permute.xlu0 %2320
        %2323 = vst.msk [vmem:[#allocation3] sm:$0xff] %vm784, %v2321
        %v2324 = vpack.c.bf16 %v2313, %v2313
        %v2325 = vld [vmem:[%s7] sm:$0xf]
        %v2326 = vld [vmem:[%s7 + $0x4] sm:$0xf]
        %v2327 = vld [vmem:[%s7 + $0x8] sm:$0xf]
        %v2328 = vld [vmem:[%s7 + $0xc] sm:$0xf]
        %2330 = vrot.lane.b32.xlu0 %v2324, 64
        %v2331 = vpop.permute.xlu0 %2330
        %v2336 = vunpack.c.l.b16 %v2325
        %v2337 = vunpack.c.l.b16 %v2326
        %v2338 = vunpack.c.l.b16 %v2327
        %v2339 = vunpack.c.l.b16 %v2328
        %v2340 = vpack.c.b16 %v2337, %v2336
        %v2341 = vpack.c.b16 %v2339, %v2338
        %v2345 = vsel %vm784, %v2331, 0
        %2347 = vmatprep.subr.bf16.mxu0 0
        %2348 = vmatpush1.bf16.msra.mxu0 %v2340
        %2349 = vmatprep.subr.bf16.mxu0 0
        %2350 = vmatpush1.bf16.msra.mxu0 %v2341
        %2351 = vmatprep.subr.bf16.mxu0 0
        %2352 = vmatpush1.bf16.msra.mxu0 0
        %2353 = vmatprep.subr.bf16.mxu0 0
        %2354 = vmatpush1.bf16.msra.mxu0 0
        %2355 = vmatprep.subr.bf16.mxu0 0
        %2356 = vmatpush1.bf16.msra.mxu0 0
        %2357 = vmatprep.subr.bf16.mxu0 0
        %2358 = vmatpush1.bf16.msra.mxu0 0
        %2359 = vmatprep.subr.bf16.mxu0 0
        %2360 = vmatpush1.bf16.msra.mxu0 0
        %2361 = vmatprep.subr.bf16.mxu0 0
        %2362 = vmatpush1.bf16.msra.mxu0 0
        %2363 = vmatprep.subr.bf16.mxu0 0
        %2364 = vmatpush1.bf16.msra.mxu0 0
        %2365 = vmatprep.subr.bf16.mxu0 0
        %2366 = vmatpush1.bf16.msra.mxu0 0
        %2367 = vmatprep.subr.bf16.mxu0 0
        %2368 = vmatpush1.bf16.msra.mxu0 0
        %2369 = vmatprep.subr.bf16.mxu0 0
        %2370 = vmatpush1.bf16.msra.mxu0 0
        %2371 = vmatprep.subr.bf16.mxu0 0
        %2372 = vmatpush1.bf16.msra.mxu0 0
        %2373 = vmatprep.subr.bf16.mxu0 0
        %2374 = vmatpush1.bf16.msra.mxu0 0
        %2375 = vmatprep.subr.bf16.mxu0 0
        %2376 = vmatpush1.bf16.msra.mxu0 0
        %2377 = vmatprep.subr.bf16.mxu0 0
        %2378 = vmatpush1.bf16.msra.mxu0 0
        %2379 = vmatprep.mubr.bf16.mxu0 0
        %2380 = vmatmul.mubr.bf16.gmra.mrb[0].mxu0 %v2345
        %v2381 = vpop.f32.mrb[0].mxu0
        %v2382 = vadd.f32 %v2277, %v2381
        %v2383 = vpop.f32.mrb[0].mxu0
        %v2384 = vpop.f32.mrb[0].mxu0
        %v2385 = vpop.f32.mrb[0].mxu0
        %2386 = vdwg.mxu0
        %v2387 = vld [vmem:[%s8] sm:$0x1]
        %v2389 = vlaneseq
        %v2390 = vshrl.u32 %v2389, 7
        %v2391 = vsub.s32 0, %v2390
        %v2392 = vrot.slane %v2387, %v2391
        %v2394 = vadd.f32 %v2382, %v2392
        %v2395 = vxor.u32 %v2394, 2147483648
        %v2396 = vmul.f32 %v2395, 1.442695
        %v2397 = vpow.pop %v2396
        %v2398 = vadd.f32 %v2397, 1.0
        %v2399 = vrcp.pop %v2398
        %v2400 = vmul.f32 1.0, %v2399
        %v2401 = vtanh.pop %v2394
        %2403 = vrot.lane.b32.xlu0 %v2284, 32
        %v2404 = vpop.permute.xlu0 %2403
        %v2406 = vmul.f32 %v2400, %v2404
        %2408 = vrot.lane.b32.xlu0 %v2401, 32
        %v2409 = vpop.permute.xlu0 %2408
        %v2411 = vmul.f32 %v2400, %v2409
        %2413 = vrot.lane.b32.xlu0 %v2411, 32
        %v2414 = vpop.permute.xlu0 %2413
        %v2416 = vadd.f32 %v2406, %v2414
        %v2417 = vtanh.pop %v2416
        %2419 = vrot.lane.b32.xlu0 %v2417, 32
        %v2420 = vpop.permute.xlu0 %2419
        %v2422 = vmul.f32 %v2400, %v2420
        %2424 = vrot.lane.b32.xlu0 %v2422, 64
        %v2425 = vpop.permute.xlu0 %2424
        %2427 = vst.msk [vmem:[%s864] sm:$0xff] %vm784, %v2425
        %2429 = vrot.lane.b32.xlu0 %v2416, 96
        %v2430 = vpop.permute.xlu0 %2429
        %2432 = vst.msk [vmem:[%s973] sm:$0xff] %vm784, %v2430
        %s2433 = scalar_lea.vmem %s719, 40 [#allocation8]
        %2434 = vst.msk [vmem:[%s2433] sm:$0xff] %vm784, %v2425
        %s2435 = scalar_lea.vmem %s658, 48 [#allocation5]
        %v2436 = vld [vmem:[%s2435] sm:$0xff]
        %v2437 = vld [vmem:[#allocation2] sm:$0xff]
        %v2438 = vld [vmem:[%s864] sm:$0xff]
        %2440 = vrot.lane.b32.xlu0 %v2438, 32
        %v2441 = vpop.permute.xlu0 %2440
        %v2443 = vsel %vm784, %v2437, %v2441
        %2445 = vset.pattern.permute.xlu0 0
        %2446 = vperm.xlu0 %2445, %v2436
        %v2447 = vpop.permute.xlu0 %2446
        %v2449 = vmul.f32 %v2443, %v2447
        %v2450 = vpack.c.bf16 %v2449, %v2449
        %v2451 = vld [vmem:[%s6] sm:$0xff]
        %v2452 = vld [vmem:[%s6 + $0x8] sm:$0xff]
        %v2453 = vld [vmem:[%s6 + $0x10] sm:$0xff]
        %v2454 = vld [vmem:[%s6 + $0x18] sm:$0xff]
        %v2455 = vld [vmem:[%s6 + $0x20] sm:$0xff]
        %v2456 = vld [vmem:[%s6 + $0x28] sm:$0xff]
        %v2457 = vld [vmem:[%s6 + $0x30] sm:$0xff]
        %v2458 = vld [vmem:[%s6 + $0x38] sm:$0xff]
        %v2467 = vunpack.c.l.b16 %v2451
        %v2468 = vunpack.c.h.b16 %v2451
        %v2469 = vunpack.c.l.b16 %v2452
        %v2470 = vunpack.c.h.b16 %v2452
        %v2471 = vunpack.c.l.b16 %v2453
        %v2472 = vunpack.c.h.b16 %v2453
        %v2473 = vunpack.c.l.b16 %v2454
        %v2474 = vunpack.c.h.b16 %v2454
        %v2475 = vunpack.c.l.b16 %v2455
        %v2476 = vunpack.c.h.b16 %v2455
        %v2477 = vunpack.c.l.b16 %v2456
        %v2478 = vunpack.c.h.b16 %v2456
        %v2479 = vunpack.c.l.b16 %v2457
        %v2480 = vunpack.c.h.b16 %v2457
        %v2481 = vunpack.c.l.b16 %v2458
        %v2482 = vunpack.c.h.b16 %v2458
        %v2483 = vpack.c.b16 %v2469, %v2467
        %v2484 = vpack.c.b16 %v2470, %v2468
        %v2485 = vpack.c.b16 %v2473, %v2471
        %v2486 = vpack.c.b16 %v2474, %v2472
        %v2487 = vpack.c.b16 %v2477, %v2475
        %v2488 = vpack.c.b16 %v2478, %v2476
        %v2489 = vpack.c.b16 %v2481, %v2479
        %v2490 = vpack.c.b16 %v2482, %v2480
        %v2500 = vsel %vm926, %v2450, 0
        %2502 = vmatprep.subr.bf16.mxu0 %v2484
        %2503 = vmatpush1.bf16.msra.mxu0 %v2483
        %2504 = vmatprep.subr.bf16.mxu0 %v2486
        %2505 = vmatpush1.bf16.msra.mxu0 %v2485
        %2506 = vmatprep.subr.bf16.mxu0 %v2488
        %2507 = vmatpush1.bf16.msra.mxu0 %v2487
        %2508 = vmatprep.subr.bf16.mxu0 %v2490
        %2509 = vmatpush1.bf16.msra.mxu0 %v2489
        %2510 = vmatprep.subr.bf16.mxu0 0
        %2511 = vmatpush1.bf16.msra.mxu0 0
        %2512 = vmatprep.subr.bf16.mxu0 0
        %2513 = vmatpush1.bf16.msra.mxu0 0
        %2514 = vmatprep.subr.bf16.mxu0 0
        %2515 = vmatpush1.bf16.msra.mxu0 0
        %2516 = vmatprep.subr.bf16.mxu0 0
        %2517 = vmatpush1.bf16.msra.mxu0 0
        %2518 = vmatprep.subr.bf16.mxu0 0
        %2519 = vmatpush1.bf16.msra.mxu0 0
        %2520 = vmatprep.subr.bf16.mxu0 0
        %2521 = vmatpush1.bf16.msra.mxu0 0
        %2522 = vmatprep.subr.bf16.mxu0 0
        %2523 = vmatpush1.bf16.msra.mxu0 0
        %2524 = vmatprep.subr.bf16.mxu0 0
        %2525 = vmatpush1.bf16.msra.mxu0 0
        %2526 = vmatprep.subr.bf16.mxu0 0
        %2527 = vmatpush1.bf16.msra.mxu0 0
        %2528 = vmatprep.subr.bf16.mxu0 0
        %2529 = vmatpush1.bf16.msra.mxu0 0
        %2530 = vmatprep.subr.bf16.mxu0 0
        %2531 = vmatpush1.bf16.msra.mxu0 0
        %2532 = vmatprep.subr.bf16.mxu0 0
        %2533 = vmatpush1.bf16.msra.mxu0 0
        %2534 = vmatprep.mubr.bf16.mxu0 0
        %2535 = vmatmul.mubr.bf16.gmra.mrb[0].mxu0 %v2500
        %v2536 = vpop.f32.mrb[0].mxu0
        %v2537 = vadd.f32 0.0, %v2536
        %v2538 = vpop.f32.mrb[0].mxu0
        %v2539 = vadd.f32 0.0, %v2538
        %v2540 = vpop.f32.mrb[0].mxu0
        %v2541 = vpop.f32.mrb[0].mxu0
        %2542 = vdwg.mxu0
        %v2543 = vld [vmem:[#allocation3] sm:$0xff]
        %v2544 = vmul.f32 %v2543, %v2447
        %v2545 = vld [vmem:[%s973] sm:$0xff]
        %v2546 = vmul.f32 %v2545, %v2447
        %v2547 = vadd.f32 %v856, %v2537
        %v2548 = vxor.u32 %v2547, 2147483648
        %v2549 = vmul.f32 %v2548, 1.442695
        %v2550 = vpow.pop %v2549
        %v2551 = vadd.f32 %v2550, 1.0
        %v2552 = vrcp.pop %v2551
        %v2553 = vmul.f32 1.0, %v2552
        %v2554 = vtanh.pop %v2547
        %2556 = vrot.lane.b32.xlu0 %v2544, 32
        %v2557 = vpop.permute.xlu0 %2556
        %v2559 = vmul.f32 %v2553, %v2557
        %2561 = vrot.lane.b32.xlu0 %v2554, 32
        %v2562 = vpop.permute.xlu0 %2561
        %v2564 = vmul.f32 %v2553, %v2562
        %2566 = vrot.lane.b32.xlu0 %v2564, 32
        %v2567 = vpop.permute.xlu0 %2566
        %v2569 = vadd.f32 %v2559, %v2567
        %v2570 = vtanh.pop %v2569
        %2572 = vrot.lane.b32.xlu0 %v2570, 32
        %v2573 = vpop.permute.xlu0 %2572
        %v2575 = vmul.f32 %v2553, %v2573
        %2577 = vrot.lane.b32.xlu0 %v2575, 64
        %v2578 = vpop.permute.xlu0 %2577
        %2580 = vst.msk [vmem:[#allocation2] sm:$0xff] %vm784, %v2578
        %2582 = vrot.lane.b32.xlu0 %v2569, 96
        %v2583 = vpop.permute.xlu0 %2582
        %2585 = vst.msk [vmem:[#allocation3] sm:$0xff] %vm784, %v2583
        %v2586 = vpack.c.bf16 %v2575, %v2575
        %v2587 = vld [vmem:[%s7] sm:$0xf]
        %v2588 = vld [vmem:[%s7 + $0x4] sm:$0xf]
        %v2589 = vld [vmem:[%s7 + $0x8] sm:$0xf]
        %v2590 = vld [vmem:[%s7 + $0xc] sm:$0xf]
        %2592 = vrot.lane.b32.xlu0 %v2586, 64
        %v2593 = vpop.permute.xlu0 %2592
        %v2598 = vunpack.c.l.b16 %v2587
        %v2599 = vunpack.c.l.b16 %v2588
        %v2600 = vunpack.c.l.b16 %v2589
        %v2601 = vunpack.c.l.b16 %v2590
        %v2602 = vpack.c.b16 %v2599, %v2598
        %v2603 = vpack.c.b16 %v2601, %v2600
        %v2607 = vsel %vm784, %v2593, 0
        %2609 = vmatprep.subr.bf16.mxu0 0
        %2610 = vmatpush1.bf16.msra.mxu0 %v2602
        %2611 = vmatprep.subr.bf16.mxu0 0
        %2612 = vmatpush1.bf16.msra.mxu0 %v2603
        %2613 = vmatprep.subr.bf16.mxu0 0
        %2614 = vmatpush1.bf16.msra.mxu0 0
        %2615 = vmatprep.subr.bf16.mxu0 0
        %2616 = vmatpush1.bf16.msra.mxu0 0
        %2617 = vmatprep.subr.bf16.mxu0 0
        %2618 = vmatpush1.bf16.msra.mxu0 0
        %2619 = vmatprep.subr.bf16.mxu0 0
        %2620 = vmatpush1.bf16.msra.mxu0 0
        %2621 = vmatprep.subr.bf16.mxu0 0
        %2622 = vmatpush1.bf16.msra.mxu0 0
        %2623 = vmatprep.subr.bf16.mxu0 0
        %2624 = vmatpush1.bf16.msra.mxu0 0
        %2625 = vmatprep.subr.bf16.mxu0 0
        %2626 = vmatpush1.bf16.msra.mxu0 0
        %2627 = vmatprep.subr.bf16.mxu0 0
        %2628 = vmatpush1.bf16.msra.mxu0 0
        %2629 = vmatprep.subr.bf16.mxu0 0
        %2630 = vmatpush1.bf16.msra.mxu0 0
        %2631 = vmatprep.subr.bf16.mxu0 0
        %2632 = vmatpush1.bf16.msra.mxu0 0
        %2633 = vmatprep.subr.bf16.mxu0 0
        %2634 = vmatpush1.bf16.msra.mxu0 0
        %2635 = vmatprep.subr.bf16.mxu0 0
        %2636 = vmatpush1.bf16.msra.mxu0 0
        %2637 = vmatprep.subr.bf16.mxu0 0
        %2638 = vmatpush1.bf16.msra.mxu0 0
        %2639 = vmatprep.subr.bf16.mxu0 0
        %2640 = vmatpush1.bf16.msra.mxu0 0
        %2641 = vmatprep.mubr.bf16.mxu0 0
        %2642 = vmatmul.mubr.bf16.gmra.mrb[0].mxu0 %v2607
        %v2643 = vpop.f32.mrb[0].mxu0
        %v2644 = vadd.f32 %v2539, %v2643
        %v2645 = vpop.f32.mrb[0].mxu0
        %v2646 = vpop.f32.mrb[0].mxu0
        %v2647 = vpop.f32.mrb[0].mxu0
        %2648 = vdwg.mxu0
        %v2649 = vld [vmem:[%s8] sm:$0x1]
        %v2651 = vlaneseq
        %v2652 = vshrl.u32 %v2651, 7
        %v2653 = vsub.s32 0, %v2652
        %v2654 = vrot.slane %v2649, %v2653
        %v2656 = vadd.f32 %v2644, %v2654
        %v2657 = vxor.u32 %v2656, 2147483648
        %v2658 = vmul.f32 %v2657, 1.442695
        %v2659 = vpow.pop %v2658
        %v2660 = vadd.f32 %v2659, 1.0
        %v2661 = vrcp.pop %v2660
        %v2662 = vmul.f32 1.0, %v2661
        %v2663 = vtanh.pop %v2656
        %2665 = vrot.lane.b32.xlu0 %v2546, 32
        %v2666 = vpop.permute.xlu0 %2665
        %v2668 = vmul.f32 %v2662, %v2666
        %2670 = vrot.lane.b32.xlu0 %v2663, 32
        %v2671 = vpop.permute.xlu0 %2670
        %v2673 = vmul.f32 %v2662, %v2671
        %2675 = vrot.lane.b32.xlu0 %v2673, 32
        %v2676 = vpop.permute.xlu0 %2675
        %v2678 = vadd.f32 %v2668, %v2676
        %v2679 = vtanh.pop %v2678
        %2681 = vrot.lane.b32.xlu0 %v2679, 32
        %v2682 = vpop.permute.xlu0 %2681
        %v2684 = vmul.f32 %v2662, %v2682
        %2686 = vrot.lane.b32.xlu0 %v2684, 64
        %v2687 = vpop.permute.xlu0 %2686
        %2689 = vst.msk [vmem:[%s864] sm:$0xff] %vm784, %v2687
        %2691 = vrot.lane.b32.xlu0 %v2678, 96
        %v2692 = vpop.permute.xlu0 %2691
        %2694 = vst.msk [vmem:[%s973] sm:$0xff] %vm784, %v2692
        %s2695 = scalar_lea.vmem %s719, 48 [#allocation8]
        %2696 = vst.msk [vmem:[%s2695] sm:$0xff] %vm784, %v2687
        %s2697 = scalar_lea.vmem %s658, 56 [#allocation5]
        %v2698 = vld [vmem:[%s2697] sm:$0xff]
        %v2699 = vld [vmem:[#allocation2] sm:$0xff]
        %v2700 = vld [vmem:[%s864] sm:$0xff]
        %2702 = vrot.lane.b32.xlu0 %v2700, 32
        %v2703 = vpop.permute.xlu0 %2702
        %v2705 = vsel %vm784, %v2699, %v2703
        %2707 = vset.pattern.permute.xlu0 0
        %2708 = vperm.xlu0 %2707, %v2698
        %v2709 = vpop.permute.xlu0 %2708
        %v2711 = vmul.f32 %v2705, %v2709
        %v2712 = vpack.c.bf16 %v2711, %v2711
        %v2713 = vld [vmem:[%s6] sm:$0xff]
        %v2714 = vld [vmem:[%s6 + $0x8] sm:$0xff]
        %v2715 = vld [vmem:[%s6 + $0x10] sm:$0xff]
        %v2716 = vld [vmem:[%s6 + $0x18] sm:$0xff]
        %v2717 = vld [vmem:[%s6 + $0x20] sm:$0xff]
        %v2718 = vld [vmem:[%s6 + $0x28] sm:$0xff]
        %v2719 = vld [vmem:[%s6 + $0x30] sm:$0xff]
        %v2720 = vld [vmem:[%s6 + $0x38] sm:$0xff]
        %v2729 = vunpack.c.l.b16 %v2713
        %v2730 = vunpack.c.h.b16 %v2713
        %v2731 = vunpack.c.l.b16 %v2714
        %v2732 = vunpack.c.h.b16 %v2714
        %v2733 = vunpack.c.l.b16 %v2715
        %v2734 = vunpack.c.h.b16 %v2715
        %v2735 = vunpack.c.l.b16 %v2716
        %v2736 = vunpack.c.h.b16 %v2716
        %v2737 = vunpack.c.l.b16 %v2717
        %v2738 = vunpack.c.h.b16 %v2717
        %v2739 = vunpack.c.l.b16 %v2718
        %v2740 = vunpack.c.h.b16 %v2718
        %v2741 = vunpack.c.l.b16 %v2719
        %v2742 = vunpack.c.h.b16 %v2719
        %v2743 = vunpack.c.l.b16 %v2720
        %v2744 = vunpack.c.h.b16 %v2720
        %v2745 = vpack.c.b16 %v2731, %v2729
        %v2746 = vpack.c.b16 %v2732, %v2730
        %v2747 = vpack.c.b16 %v2735, %v2733
        %v2748 = vpack.c.b16 %v2736, %v2734
        %v2749 = vpack.c.b16 %v2739, %v2737
        %v2750 = vpack.c.b16 %v2740, %v2738
        %v2751 = vpack.c.b16 %v2743, %v2741
        %v2752 = vpack.c.b16 %v2744, %v2742
        %v2762 = vsel %vm926, %v2712, 0
        %2764 = vmatprep.subr.bf16.mxu0 %v2746
        %2765 = vmatpush1.bf16.msra.mxu0 %v2745
        %2766 = vmatprep.subr.bf16.mxu0 %v2748
        %2767 = vmatpush1.bf16.msra.mxu0 %v2747
        %2768 = vmatprep.subr.bf16.mxu0 %v2750
        %2769 = vmatpush1.bf16.msra.mxu0 %v2749
        %2770 = vmatprep.subr.bf16.mxu0 %v2752
        %2771 = vmatpush1.bf16.msra.mxu0 %v2751
        %2772 = vmatprep.subr.bf16.mxu0 0
        %2773 = vmatpush1.bf16.msra.mxu0 0
        %2774 = vmatprep.subr.bf16.mxu0 0
        %2775 = vmatpush1.bf16.msra.mxu0 0
        %2776 = vmatprep.subr.bf16.mxu0 0
        %2777 = vmatpush1.bf16.msra.mxu0 0
        %2778 = vmatprep.subr.bf16.mxu0 0
        %2779 = vmatpush1.bf16.msra.mxu0 0
        %2780 = vmatprep.subr.bf16.mxu0 0
        %2781 = vmatpush1.bf16.msra.mxu0 0
        %2782 = vmatprep.subr.bf16.mxu0 0
        %2783 = vmatpush1.bf16.msra.mxu0 0
        %2784 = vmatprep.subr.bf16.mxu0 0
        %2785 = vmatpush1.bf16.msra.mxu0 0
        %2786 = vmatprep.subr.bf16.mxu0 0
        %2787 = vmatpush1.bf16.msra.mxu0 0
        %2788 = vmatprep.subr.bf16.mxu0 0
        %2789 = vmatpush1.bf16.msra.mxu0 0
        %2790 = vmatprep.subr.bf16.mxu0 0
        %2791 = vmatpush1.bf16.msra.mxu0 0
        %2792 = vmatprep.subr.bf16.mxu0 0
        %2793 = vmatpush1.bf16.msra.mxu0 0
        %2794 = vmatprep.subr.bf16.mxu0 0
        %2795 = vmatpush1.bf16.msra.mxu0 0
        %2796 = vmatprep.mubr.bf16.mxu0 0
        %2797 = vmatmul.mubr.bf16.gmra.mrb[0].mxu0 %v2762
        %v2798 = vpop.f32.mrb[0].mxu0
        %v2799 = vadd.f32 0.0, %v2798
        %v2800 = vpop.f32.mrb[0].mxu0
        %v2801 = vadd.f32 0.0, %v2800
        %v2802 = vpop.f32.mrb[0].mxu0
        %v2803 = vpop.f32.mrb[0].mxu0
        %2804 = vdwg.mxu0
        %v2805 = vld [vmem:[#allocation3] sm:$0xff]
        %v2806 = vmul.f32 %v2805, %v2709
        %v2807 = vld [vmem:[%s973] sm:$0xff]
        %v2808 = vmul.f32 %v2807, %v2709
        %v2809 = vadd.f32 %v859, %v2799
        %v2810 = vxor.u32 %v2809, 2147483648
        %v2811 = vmul.f32 %v2810, 1.442695
        %v2812 = vpow.pop %v2811
        %v2813 = vadd.f32 %v2812, 1.0
        %v2814 = vrcp.pop %v2813
        %v2815 = vmul.f32 1.0, %v2814
        %v2816 = vtanh.pop %v2809
        %2818 = vrot.lane.b32.xlu0 %v2806, 32
        %v2819 = vpop.permute.xlu0 %2818
        %v2821 = vmul.f32 %v2815, %v2819
        %2823 = vrot.lane.b32.xlu0 %v2816, 32
        %v2824 = vpop.permute.xlu0 %2823
        %v2826 = vmul.f32 %v2815, %v2824
        %2828 = vrot.lane.b32.xlu0 %v2826, 32
        %v2829 = vpop.permute.xlu0 %2828
        %v2831 = vadd.f32 %v2821, %v2829
        %v2832 = vtanh.pop %v2831
        %2834 = vrot.lane.b32.xlu0 %v2832, 32
        %v2835 = vpop.permute.xlu0 %2834
        %v2837 = vmul.f32 %v2815, %v2835
        %2839 = vrot.lane.b32.xlu0 %v2837, 64
        %v2840 = vpop.permute.xlu0 %2839
        %2842 = vst.msk [vmem:[#allocation2] sm:$0xff] %vm784, %v2840
        %2844 = vrot.lane.b32.xlu0 %v2831, 96
        %v2845 = vpop.permute.xlu0 %2844
        %2847 = vst.msk [vmem:[#allocation3] sm:$0xff] %vm784, %v2845
        %v2848 = vpack.c.bf16 %v2837, %v2837
        %v2849 = vld [vmem:[%s7] sm:$0xf]
        %v2850 = vld [vmem:[%s7 + $0x4] sm:$0xf]
        %v2851 = vld [vmem:[%s7 + $0x8] sm:$0xf]
        %v2852 = vld [vmem:[%s7 + $0xc] sm:$0xf]
        %2854 = vrot.lane.b32.xlu0 %v2848, 64
        %v2855 = vpop.permute.xlu0 %2854
        %v2860 = vunpack.c.l.b16 %v2849
        %v2861 = vunpack.c.l.b16 %v2850
        %v2862 = vunpack.c.l.b16 %v2851
        %v2863 = vunpack.c.l.b16 %v2852
        %v2864 = vpack.c.b16 %v2861, %v2860
        %v2865 = vpack.c.b16 %v2863, %v2862
        %v2869 = vsel %vm784, %v2855, 0
        %2871 = vmatprep.subr.bf16.mxu0 0
        %2872 = vmatpush1.bf16.msra.mxu0 %v2864
        %2873 = vmatprep.subr.bf16.mxu0 0
        %2874 = vmatpush1.bf16.msra.mxu0 %v2865
        %2875 = vmatprep.subr.bf16.mxu0 0
        %2876 = vmatpush1.bf16.msra.mxu0 0
        %2877 = vmatprep.subr.bf16.mxu0 0
        %2878 = vmatpush1.bf16.msra.mxu0 0
        %2879 = vmatprep.subr.bf16.mxu0 0
        %2880 = vmatpush1.bf16.msra.mxu0 0
        %2881 = vmatprep.subr.bf16.mxu0 0
        %2882 = vmatpush1.bf16.msra.mxu0 0
        %2883 = vmatprep.subr.bf16.mxu0 0
        %2884 = vmatpush1.bf16.msra.mxu0 0
        %2885 = vmatprep.subr.bf16.mxu0 0
        %2886 = vmatpush1.bf16.msra.mxu0 0
        %2887 = vmatprep.subr.bf16.mxu0 0
        %2888 = vmatpush1.bf16.msra.mxu0 0
        %2889 = vmatprep.subr.bf16.mxu0 0
        %2890 = vmatpush1.bf16.msra.mxu0 0
        %2891 = vmatprep.subr.bf16.mxu0 0
        %2892 = vmatpush1.bf16.msra.mxu0 0
        %2893 = vmatprep.subr.bf16.mxu0 0
        %2894 = vmatpush1.bf16.msra.mxu0 0
        %2895 = vmatprep.subr.bf16.mxu0 0
        %2896 = vmatpush1.bf16.msra.mxu0 0
        %2897 = vmatprep.subr.bf16.mxu0 0
        %2898 = vmatpush1.bf16.msra.mxu0 0
        %2899 = vmatprep.subr.bf16.mxu0 0
        %2900 = vmatpush1.bf16.msra.mxu0 0
        %2901 = vmatprep.subr.bf16.mxu0 0
        %2902 = vmatpush1.bf16.msra.mxu0 0
        %2903 = vmatprep.mubr.bf16.mxu0 0
        %2904 = vmatmul.mubr.bf16.gmra.mrb[0].mxu0 %v2869
        %v2905 = vpop.f32.mrb[0].mxu0
        %v2906 = vadd.f32 %v2801, %v2905
        %v2907 = vpop.f32.mrb[0].mxu0
        %v2908 = vpop.f32.mrb[0].mxu0
        %v2909 = vpop.f32.mrb[0].mxu0
        %2910 = vdwg.mxu0
        %v2911 = vld [vmem:[%s8] sm:$0x1]
        %v2913 = vlaneseq
        %v2914 = vshrl.u32 %v2913, 7
        %v2915 = vsub.s32 0, %v2914
        %v2916 = vrot.slane %v2911, %v2915
        %v2918 = vadd.f32 %v2906, %v2916
        %v2919 = vxor.u32 %v2918, 2147483648
        %v2920 = vmul.f32 %v2919, 1.442695
        %v2921 = vpow.pop %v2920
        %v2922 = vadd.f32 %v2921, 1.0
        %v2923 = vrcp.pop %v2922
        %v2924 = vmul.f32 1.0, %v2923
        %v2925 = vtanh.pop %v2918
        %2927 = vrot.lane.b32.xlu0 %v2808, 32
        %v2928 = vpop.permute.xlu0 %2927
        %v2930 = vmul.f32 %v2924, %v2928
        %2932 = vrot.lane.b32.xlu0 %v2925, 32
        %v2933 = vpop.permute.xlu0 %2932
        %v2935 = vmul.f32 %v2924, %v2933
        %2937 = vrot.lane.b32.xlu0 %v2935, 32
        %v2938 = vpop.permute.xlu0 %2937
        %v2940 = vadd.f32 %v2930, %v2938
        %v2941 = vtanh.pop %v2940
        %2943 = vrot.lane.b32.xlu0 %v2941, 32
        %v2944 = vpop.permute.xlu0 %2943
        %v2946 = vmul.f32 %v2924, %v2944
        %2948 = vrot.lane.b32.xlu0 %v2946, 64
        %v2949 = vpop.permute.xlu0 %2948
        %2951 = vst.msk [vmem:[%s864] sm:$0xff] %vm784, %v2949
        %2953 = vrot.lane.b32.xlu0 %v2940, 96
        %v2954 = vpop.permute.xlu0 %2953
        %2956 = vst.msk [vmem:[%s973] sm:$0xff] %vm784, %v2954
        %s2957 = scalar_lea.vmem %s719, 56 [#allocation8]
        %2958 = vst.msk [vmem:[%s2957] sm:$0xff] %vm784, %v2949
        %v2959 = vld [vmem:[%s719] sm:$0xff]
        %v2960 = vld [vmem:[%s719 + $0x8] sm:$0xff]
        %v2961 = vld [vmem:[%s719 + $0x10] sm:$0xff]
        %v2962 = vld [vmem:[%s719 + $0x18] sm:$0xff]
        %v2963 = vld [vmem:[%s719 + $0x20] sm:$0xff]
        %v2964 = vld [vmem:[%s719 + $0x28] sm:$0xff]
        %v2965 = vld [vmem:[%s719 + $0x30] sm:$0xff]
        %v2966 = vld [vmem:[%s719 + $0x38] sm:$0xff]
        %v2967 = vsel %vm784, %v2959, 0.0
        %2968 = vadd.xlane.f32.xlu0 %v2967
        %v2969 = vpop.xlane.xlu0 %2968
        %v2970 = vsel %vm784, %v2960, 0.0
        %2971 = vadd.xlane.f32.xlu0 %v2970
        %v2972 = vpop.xlane.xlu0 %2971
        %v2973 = vsel %vm784, %v2961, 0.0
        %2974 = vadd.xlane.f32.xlu0 %v2973
        %v2975 = vpop.xlane.xlu0 %2974
        %v2976 = vsel %vm784, %v2962, 0.0
        %2977 = vadd.xlane.f32.xlu0 %v2976
        %v2978 = vpop.xlane.xlu0 %2977
        %v2979 = vsel %vm784, %v2963, 0.0
        %2980 = vadd.xlane.f32.xlu0 %v2979
        %v2981 = vpop.xlane.xlu0 %2980
        %v2982 = vsel %vm784, %v2964, 0.0
        %2983 = vadd.xlane.f32.xlu0 %v2982
        %v2984 = vpop.xlane.xlu0 %2983
        %v2985 = vsel %vm784, %v2965, 0.0
        %2986 = vadd.xlane.f32.xlu0 %v2985
        %v2987 = vpop.xlane.xlu0 %2986
        %v2988 = vsel %vm784, %v2966, 0.0
        %2989 = vadd.xlane.f32.xlu0 %v2988
        %v2990 = vpop.xlane.xlu0 %2989
        %v2991 = vrcp.pop 32.0
        %v2992 = vmul.f32 %v2969, %v2991
        %v2993 = vmul.f32 %v2972, %v2991
        %v2994 = vmul.f32 %v2975, %v2991
        %v2995 = vmul.f32 %v2978, %v2991
        %v2996 = vmul.f32 %v2981, %v2991
        %v2997 = vmul.f32 %v2984, %v2991
        %v2998 = vmul.f32 %v2987, %v2991
        %v2999 = vmul.f32 %v2990, %v2991
        %v3000 = vsub.f32 %v2959, %v2992
        %v3001 = vsub.f32 %v2960, %v2993
        %v3002 = vsub.f32 %v2961, %v2994
        %v3003 = vsub.f32 %v2962, %v2995
        %v3004 = vsub.f32 %v2963, %v2996
        %v3005 = vsub.f32 %v2964, %v2997
        %v3006 = vsub.f32 %v2965, %v2998
        %v3007 = vsub.f32 %v2966, %v2999
        %v3008 = vmul.f32 %v3000, %v3000
        %v3009 = vmul.f32 %v3001, %v3001
        %v3010 = vmul.f32 %v3002, %v3002
        %v3011 = vmul.f32 %v3003, %v3003
        %v3012 = vmul.f32 %v3004, %v3004
        %v3013 = vmul.f32 %v3005, %v3005
        %v3014 = vmul.f32 %v3006, %v3006
        %v3015 = vmul.f32 %v3007, %v3007
        %v3016 = vsel %vm784, %v3008, 0.0
        %3017 = vadd.xlane.f32.xlu0 %v3016
        %v3018 = vpop.xlane.xlu0 %3017
        %v3019 = vsel %vm784, %v3009, 0.0
        %3020 = vadd.xlane.f32.xlu0 %v3019
        %v3021 = vpop.xlane.xlu0 %3020
        %v3022 = vsel %vm784, %v3010, 0.0
        %3023 = vadd.xlane.f32.xlu0 %v3022
        %v3024 = vpop.xlane.xlu0 %3023
        %v3025 = vsel %vm784, %v3011, 0.0
        %3026 = vadd.xlane.f32.xlu0 %v3025
        %v3027 = vpop.xlane.xlu0 %3026
        %v3028 = vsel %vm784, %v3012, 0.0
        %3029 = vadd.xlane.f32.xlu0 %v3028
        %v3030 = vpop.xlane.xlu0 %3029
        %v3031 = vsel %vm784, %v3013, 0.0
        %3032 = vadd.xlane.f32.xlu0 %v3031
        %v3033 = vpop.xlane.xlu0 %3032
        %v3034 = vsel %vm784, %v3014, 0.0
        %3035 = vadd.xlane.f32.xlu0 %v3034
        %v3036 = vpop.xlane.xlu0 %3035
        %v3037 = vsel %vm784, %v3015, 0.0
        %3038 = vadd.xlane.f32.xlu0 %v3037
        %v3039 = vpop.xlane.xlu0 %3038
        %v3040 = vmul.f32 %v3018, %v2991
        %v3041 = vmul.f32 %v3021, %v2991
        %v3042 = vmul.f32 %v3024, %v2991
        %v3043 = vmul.f32 %v3027, %v2991
        %v3044 = vmul.f32 %v3030, %v2991
        %v3045 = vmul.f32 %v3033, %v2991
        %v3046 = vmul.f32 %v3036, %v2991
        %v3047 = vmul.f32 %v3039, %v2991
        %v3048 = vadd.f32 %v3040, 1e-05
        %v3049 = vadd.f32 %v3041, 1e-05
        %v3050 = vadd.f32 %v3042, 1e-05
        %v3051 = vadd.f32 %v3043, 1e-05
        %v3052 = vadd.f32 %v3044, 1e-05
        %v3053 = vadd.f32 %v3045, 1e-05
        %v3054 = vadd.f32 %v3046, 1e-05
        %v3055 = vadd.f32 %v3047, 1e-05
        %v3056 = vrsqrt.pop %v3048
        %v3057 = vrsqrt.pop %v3049
        %v3058 = vrsqrt.pop %v3050
        %v3059 = vrsqrt.pop %v3051
        %v3060 = vrsqrt.pop %v3052
        %v3061 = vrsqrt.pop %v3053
        %v3062 = vrsqrt.pop %v3054
        %v3063 = vrsqrt.pop %v3055
        %v3064 = vmul.f32 %v3000, %v3056
        %v3065 = vmul.f32 %v3001, %v3057
        %v3066 = vmul.f32 %v3002, %v3058
        %v3067 = vmul.f32 %v3003, %v3059
        %v3068 = vmul.f32 %v3004, %v3060
        %v3069 = vmul.f32 %v3005, %v3061
        %v3070 = vmul.f32 %v3006, %v3062
        %v3071 = vmul.f32 %v3007, %v3063
        %v3072 = vld [vmem:[%s9] sm:$0x1]
        %v3074 = vlaneseq
        %v3075 = vshrl.u32 %v3074, 7
        %v3076 = vsub.s32 0, %v3075
        %v3077 = vrot.slane %v3072, %v3076
        %v3079 = vmul.f32 %v3064, %v3077
        %v3080 = vmul.f32 %v3065, %v3077
        %v3081 = vmul.f32 %v3066, %v3077
        %v3082 = vmul.f32 %v3067, %v3077
        %v3083 = vmul.f32 %v3068, %v3077
        %v3084 = vmul.f32 %v3069, %v3077
        %v3085 = vmul.f32 %v3070, %v3077
        %v3086 = vmul.f32 %v3071, %v3077
        %v3087 = vld [vmem:[%s10] sm:$0x1]
        %v3089 = vlaneseq
        %v3090 = vshrl.u32 %v3089, 7
        %v3091 = vsub.s32 0, %v3090
        %v3092 = vrot.slane %v3087, %v3091
        %v3094 = vadd.f32 %v3079, %v3092
        %v3095 = vadd.f32 %v3080, %v3092
        %v3096 = vadd.f32 %v3081, %v3092
        %v3097 = vadd.f32 %v3082, %v3092
        %v3098 = vadd.f32 %v3083, %v3092
        %v3099 = vadd.f32 %v3084, %v3092
        %v3100 = vadd.f32 %v3085, %v3092
        %v3101 = vadd.f32 %v3086, %v3092
        %3102 = vst.msk [vmem:[%s719] sm:$0xff] %vm784, %v3094
        %3103 = vst.msk [vmem:[%s719 + $0x8] sm:$0xff] %vm784, %v3095
        %3104 = vst.msk [vmem:[%s719 + $0x10] sm:$0xff] %vm784, %v3096
        %3105 = vst.msk [vmem:[%s719 + $0x18] sm:$0xff] %vm784, %v3097
        %3106 = vst.msk [vmem:[%s719 + $0x20] sm:$0xff] %vm784, %v3098
        %3107 = vst.msk [vmem:[%s719 + $0x28] sm:$0xff] %vm784, %v3099
        %3108 = vst.msk [vmem:[%s719 + $0x30] sm:$0xff] %vm784, %v3100
        %3109 = vst.msk [vmem:[%s719 + $0x38] sm:$0xff] %vm784, %v3101
        %p3110 = scmp.eq.s32.totalorder %s30, 1
        // Predicated region
        $region221: #{_lambda_.1} parent=199 // pred_check
          %p3111 = pneg %p3110
        $region222: #{_lambda_.1} parent=199 // pred_check_branch
          %3113 = sbr.rel (%p3111) target = $region224
        $region223: #{_lambda_.1} parent=199 // pred_region
          %v3114 = vld [vmem:[#allocation2] sm:$0xff]
          %v3115 = vld [vmem:[#allocation2 + $0x8] sm:$0xff]
          %3116 = vst.msk [vmem:[%s725] sm:$0xff] %vm784, %v3114
          %3117 = vst.msk [vmem:[%s725 + $0x8] sm:$0xff] %vm784, %v3115
          %v3118 = vld [vmem:[#allocation3] sm:$0xff]
          %v3119 = vld [vmem:[#allocation3 + $0x8] sm:$0xff]
          %3120 = vst.msk [vmem:[%s731] sm:$0xff] %vm784, %v3118
          %3121 = vst.msk [vmem:[%s731 + $0x8] sm:$0xff] %vm784, %v3119
        $region224: #{_lambda_.1} parent=199 // pred_fallthru
          _
        %s3122 = sand.u32 %s302, 1
        %s3123 = sand.u32 %s302, 1
        %s3124 = smul.addr %s3123, 64
        %s3125 = scalar_lea.vmem [#allocation8], %s3124
        %s3126 = sand.u32 %s328, 1
        %s3127 = sand.u32 %s328, 1
        %s3128 = smul.addr %s3127, 16
        %s3129 = scalar_lea.vmem [#allocation9], %s3128
        %s3130 = sand.u32 %s354, 1
        %s3131 = sand.u32 %s354, 1
        %s3132 = smul.addr %s3131, 16
        %s3133 = scalar_lea.vmem [#allocation10], %s3132
        // Predicated region
        $region225: #{_lambda_.1} parent=199 // pred_check
          %p3134 = pneg %p312
        $region226: #{_lambda_.1} parent=199 // pred_check_branch
          %3136 = sbr.rel (%p3134) target = $region228
        $region227: #{_lambda_.1} parent=199 // pred_region
          %s3137 = smul.u32 8, %s30
          %s3138 = smul.addr %s3137, 2
          %s3139 = sadd.s32 %s29, %s3138
          %s3140 = smul.addr %s3139, 8
          %s3141 = scalar_lea.vmem %s11, %s3140
          // Predicated region
          $region229: #{_lambda_.1} parent=227 // pred_check
            _
          $region230: #{_lambda_.1} parent=227 // pred_check_branch
            %3143 = sbr.rel (0) target = $region232
          $region231: #{_lambda_.1} parent=227 // pred_region
            // Predicated region
            $region233: #{_lambda_.1} parent=231 // pred_check
              _
            $region234: #{_lambda_.1} parent=231 // pred_check_branch
              %3145 = sbr.rel (0) target = $region236
            $region235: #{_lambda_.1} parent=231 // pred_region
              // Predicated region
              $region248: #{_lambda_.1} parent=235 // pred_check
                _
              $region249: #{_lambda_.1} parent=235 // pred_check_branch
                %3174 = sbr.rel (0) target = $region251
              $region250: #{_lambda_.1} parent=235 // pred_region
                loop: start=0, step=1, limit=1
                $region252: #{_lambda_.1} parent=250 // loop_pre_header
                  _
                $region253: #{_lambda_.1} parent=250 // loop_header
                  %s3176 = sphi 0, %s3180
                  %p3177 = scmp.ge.s32.totalorder %s3176, 1
                  %s3181 = sphi %s3125, %s3125
                  %s3182 = sphi %s3141, %s3141
                $region254: #{_lambda_.1} parent=250 // loop_header_branch
                  %3179 = sbr.rel (%p3177) target = $region258
                $region255: #{_lambda_.1} parent=250 // loop_body
                  %v3183 = vld [vmem:[%s3181] sm:$0xff]
                  %3184 = vst [vmem:[%s3182] sm:$0xff] %v3183
                  %v3185 = vld [vmem:[%s3181 + $0x8] sm:$0xff]
                  %3186 = vst [vmem:[%s3182 + $0x10] sm:$0xff] %v3185
                  %v3187 = vld [vmem:[%s3181 + $0x10] sm:$0xff]
                  %3188 = vst [vmem:[%s3182 + $0x20] sm:$0xff] %v3187
                  %v3189 = vld [vmem:[%s3181 + $0x18] sm:$0xff]
                  %3190 = vst [vmem:[%s3182 + $0x30] sm:$0xff] %v3189
                  %v3191 = vld [vmem:[%s3181 + $0x20] sm:$0xff]
                  %3192 = vst [vmem:[%s3182 + $0x40] sm:$0xff] %v3191
                  %v3193 = vld [vmem:[%s3181 + $0x28] sm:$0xff]
                  %3194 = vst [vmem:[%s3182 + $0x50] sm:$0xff] %v3193
                  %v3195 = vld [vmem:[%s3181 + $0x30] sm:$0xff]
                  %3196 = vst [vmem:[%s3182 + $0x60] sm:$0xff] %v3195
                  %v3197 = vld [vmem:[%s3181 + $0x38] sm:$0xff]
                  %3198 = vst [vmem:[%s3182 + $0x70] sm:$0xff] %v3197
                $region256: #{_lambda_.1} parent=250 // loop_footer
                  %s3180 = sadd.s32 1, %s3176
                $region257: #{_lambda_.1} parent=250 // loop_footer_branch
                  %3175 = sbr.rel target = $region253
                $region258: #{_lambda_.1} parent=250 // loop_exit
                  _
              $region251: #{_lambda_.1} parent=235 // pred_fallthru
                _
              // Predicated region
              $region259: #{_lambda_.1} parent=235 // pred_check
                _
              $region260: #{_lambda_.1} parent=235 // pred_check_branch
                %3200 = sbr.rel target = $region262
              $region261: #{_lambda_.1} parent=235 // pred_region
                _
              $region262: #{_lambda_.1} parent=235 // pred_fallthru
                _
            $region236: #{_lambda_.1} parent=231 // pred_fallthru
              _
            // Predicated region
            $region237: #{_lambda_.1} parent=231 // pred_check
              _
            $region238: #{_lambda_.1} parent=231 // pred_check_branch
              %3147 = sbr.rel target = $region240
            $region239: #{_lambda_.1} parent=231 // pred_region
              loop: start=0, step=1, limit=1
              $region241: #{_lambda_.1} parent=239 // loop_pre_header
                _
              $region242: #{_lambda_.1} parent=239 // loop_header
                %s3150 = sphi 0, %s3154
                %p3151 = scmp.ge.s32.totalorder %s3150, 1
                %s3155 = sphi %s3125, %s3125
                %s3156 = sphi %s3141, %s3141
              $region243: #{_lambda_.1} parent=239 // loop_header_branch
                %3153 = sbr.rel (%p3151) target = $region247
              $region244: #{_lambda_.1} parent=239 // loop_body
                %v3157 = vld [vmem:[%s3155] sm:$0xff]
                %3158 = vst [vmem:[%s3156] sm:$0xff] %v3157
                %v3159 = vld [vmem:[%s3155 + $0x8] sm:$0xff]
                %3160 = vst [vmem:[%s3156 + $0x10] sm:$0xff] %v3159
                %v3161 = vld [vmem:[%s3155 + $0x10] sm:$0xff]
                %3162 = vst [vmem:[%s3156 + $0x20] sm:$0xff] %v3161
                %v3163 = vld [vmem:[%s3155 + $0x18] sm:$0xff]
                %3164 = vst [vmem:[%s3156 + $0x30] sm:$0xff] %v3163
                %v3165 = vld [vmem:[%s3155 + $0x20] sm:$0xff]
                %3166 = vst [vmem:[%s3156 + $0x40] sm:$0xff] %v3165
                %v3167 = vld [vmem:[%s3155 + $0x28] sm:$0xff]
                %3168 = vst [vmem:[%s3156 + $0x50] sm:$0xff] %v3167
                %v3169 = vld [vmem:[%s3155 + $0x30] sm:$0xff]
                %3170 = vst [vmem:[%s3156 + $0x60] sm:$0xff] %v3169
                %v3171 = vld [vmem:[%s3155 + $0x38] sm:$0xff]
                %3172 = vst [vmem:[%s3156 + $0x70] sm:$0xff] %v3171
              $region245: #{_lambda_.1} parent=239 // loop_footer
                %s3154 = sadd.s32 1, %s3150
              $region246: #{_lambda_.1} parent=239 // loop_footer_branch
                %3149 = sbr.rel target = $region242
              $region247: #{_lambda_.1} parent=239 // loop_exit
                _
            $region240: #{_lambda_.1} parent=231 // pred_fallthru
              _
          $region232: #{_lambda_.1} parent=227 // pred_fallthru
            _
          %3201 = vnop
        $region228: #{_lambda_.1} parent=199 // pred_fallthru
          _
        // Predicated region
        $region263: #{_lambda_.1} parent=199 // pred_check
          %p3202 = pneg %p338
        $region264: #{_lambda_.1} parent=199 // pred_check_branch
          %3204 = sbr.rel (%p3202) target = $region266
        $region265: #{_lambda_.1} parent=199 // pred_region
          %s3205 = smul.addr %s29, 8
          %s3206 = scalar_lea.vmem %s12, %s3205
          // Predicated region
          $region267: #{_lambda_.1} parent=265 // pred_check
            _
          $region268: #{_lambda_.1} parent=265 // pred_check_branch
            %3208 = sbr.rel (0) target = $region270
          $region269: #{_lambda_.1} parent=265 // pred_region
            // Predicated region
            $region271: #{_lambda_.1} parent=269 // pred_check
              _
            $region272: #{_lambda_.1} parent=269 // pred_check_branch
              %3210 = sbr.rel (0) target = $region274
            $region273: #{_lambda_.1} parent=269 // pred_region
              // Predicated region
              $region286: #{_lambda_.1} parent=273 // pred_check
                _
              $region287: #{_lambda_.1} parent=273 // pred_check_branch
                %3227 = sbr.rel (0) target = $region289
              $region288: #{_lambda_.1} parent=273 // pred_region
                loop: start=0, step=1, limit=1
                $region290: #{_lambda_.1} parent=288 // loop_pre_header
                  _
                $region291: #{_lambda_.1} parent=288 // loop_header
                  %s3229 = sphi 0, %s3233
                  %p3230 = scmp.ge.s32.totalorder %s3229, 1
                  %s3234 = sphi %s3129, %s3129
                  %s3235 = sphi %s3206, %s3206
                $region292: #{_lambda_.1} parent=288 // loop_header_branch
                  %3232 = sbr.rel (%p3230) target = $region296
                $region293: #{_lambda_.1} parent=288 // loop_body
                  %v3236 = vld [vmem:[%s3234] sm:$0xff]
                  %3237 = vst [vmem:[%s3235] sm:$0xff] %v3236
                  %v3238 = vld [vmem:[%s3234 + $0x8] sm:$0xff]
                  %3239 = vst [vmem:[%s3235 + $0x10] sm:$0xff] %v3238
                $region294: #{_lambda_.1} parent=288 // loop_footer
                  %s3233 = sadd.s32 1, %s3229
                $region295: #{_lambda_.1} parent=288 // loop_footer_branch
                  %3228 = sbr.rel target = $region291
                $region296: #{_lambda_.1} parent=288 // loop_exit
                  _
              $region289: #{_lambda_.1} parent=273 // pred_fallthru
                _
              // Predicated region
              $region297: #{_lambda_.1} parent=273 // pred_check
                _
              $region298: #{_lambda_.1} parent=273 // pred_check_branch
                %3241 = sbr.rel target = $region300
              $region299: #{_lambda_.1} parent=273 // pred_region
                _
              $region300: #{_lambda_.1} parent=273 // pred_fallthru
                _
            $region274: #{_lambda_.1} parent=269 // pred_fallthru
              _
            // Predicated region
            $region275: #{_lambda_.1} parent=269 // pred_check
              _
            $region276: #{_lambda_.1} parent=269 // pred_check_branch
              %3212 = sbr.rel target = $region278
            $region277: #{_lambda_.1} parent=269 // pred_region
              loop: start=0, step=1, limit=1
              $region279: #{_lambda_.1} parent=277 // loop_pre_header
                _
              $region280: #{_lambda_.1} parent=277 // loop_header
                %s3215 = sphi 0, %s3219
                %p3216 = scmp.ge.s32.totalorder %s3215, 1
                %s3220 = sphi %s3129, %s3129
                %s3221 = sphi %s3206, %s3206
              $region281: #{_lambda_.1} parent=277 // loop_header_branch
                %3218 = sbr.rel (%p3216) target = $region285
              $region282: #{_lambda_.1} parent=277 // loop_body
                %v3222 = vld [vmem:[%s3220] sm:$0xff]
                %3223 = vst [vmem:[%s3221] sm:$0xff] %v3222
                %v3224 = vld [vmem:[%s3220 + $0x8] sm:$0xff]
                %3225 = vst [vmem:[%s3221 + $0x10] sm:$0xff] %v3224
              $region283: #{_lambda_.1} parent=277 // loop_footer
                %s3219 = sadd.s32 1, %s3215
              $region284: #{_lambda_.1} parent=277 // loop_footer_branch
                %3214 = sbr.rel target = $region280
              $region285: #{_lambda_.1} parent=277 // loop_exit
                _
            $region278: #{_lambda_.1} parent=269 // pred_fallthru
              _
          $region270: #{_lambda_.1} parent=265 // pred_fallthru
            _
          %3242 = vnop
        $region266: #{_lambda_.1} parent=199 // pred_fallthru
          _
        // Predicated region
        $region301: #{_lambda_.1} parent=199 // pred_check
          %p3243 = pneg %p364
        $region302: #{_lambda_.1} parent=199 // pred_check_branch
          %3245 = sbr.rel (%p3243) target = $region304
        $region303: #{_lambda_.1} parent=199 // pred_region
          %s3246 = smul.addr %s29, 8
          %s3247 = scalar_lea.vmem %s13, %s3246
          // Predicated region
          $region305: #{_lambda_.1} parent=303 // pred_check
            _
          $region306: #{_lambda_.1} parent=303 // pred_check_branch
            %3249 = sbr.rel (0) target = $region308
          $region307: #{_lambda_.1} parent=303 // pred_region
            // Predicated region
            $region309: #{_lambda_.1} parent=307 // pred_check
              _
            $region310: #{_lambda_.1} parent=307 // pred_check_branch
              %3251 = sbr.rel (0) target = $region312
            $region311: #{_lambda_.1} parent=307 // pred_region
              // Predicated region
              $region324: #{_lambda_.1} parent=311 // pred_check
                _
              $region325: #{_lambda_.1} parent=311 // pred_check_branch
                %3268 = sbr.rel (0) target = $region327
              $region326: #{_lambda_.1} parent=311 // pred_region
                loop: start=0, step=1, limit=1
                $region328: #{_lambda_.1} parent=326 // loop_pre_header
                  _
                $region329: #{_lambda_.1} parent=326 // loop_header
                  %s3270 = sphi 0, %s3274
                  %p3271 = scmp.ge.s32.totalorder %s3270, 1
                  %s3275 = sphi %s3133, %s3133
                  %s3276 = sphi %s3247, %s3247
                $region330: #{_lambda_.1} parent=326 // loop_header_branch
                  %3273 = sbr.rel (%p3271) target = $region334
                $region331: #{_lambda_.1} parent=326 // loop_body
                  %v3277 = vld [vmem:[%s3275] sm:$0xff]
                  %3278 = vst [vmem:[%s3276] sm:$0xff] %v3277
                  %v3279 = vld [vmem:[%s3275 + $0x8] sm:$0xff]
                  %3280 = vst [vmem:[%s3276 + $0x10] sm:$0xff] %v3279
                $region332: #{_lambda_.1} parent=326 // loop_footer
                  %s3274 = sadd.s32 1, %s3270
                $region333: #{_lambda_.1} parent=326 // loop_footer_branch
                  %3269 = sbr.rel target = $region329
                $region334: #{_lambda_.1} parent=326 // loop_exit
                  _
              $region327: #{_lambda_.1} parent=311 // pred_fallthru
                _
              // Predicated region
              $region335: #{_lambda_.1} parent=311 // pred_check
                _
              $region336: #{_lambda_.1} parent=311 // pred_check_branch
                %3282 = sbr.rel target = $region338
              $region337: #{_lambda_.1} parent=311 // pred_region
                _
              $region338: #{_lambda_.1} parent=311 // pred_fallthru
                _
            $region312: #{_lambda_.1} parent=307 // pred_fallthru
              _
            // Predicated region
            $region313: #{_lambda_.1} parent=307 // pred_check
              _
            $region314: #{_lambda_.1} parent=307 // pred_check_branch
              %3253 = sbr.rel target = $region316
            $region315: #{_lambda_.1} parent=307 // pred_region
              loop: start=0, step=1, limit=1
              $region317: #{_lambda_.1} parent=315 // loop_pre_header
                _
              $region318: #{_lambda_.1} parent=315 // loop_header
                %s3256 = sphi 0, %s3260
                %p3257 = scmp.ge.s32.totalorder %s3256, 1
                %s3261 = sphi %s3133, %s3133
                %s3262 = sphi %s3247, %s3247
              $region319: #{_lambda_.1} parent=315 // loop_header_branch
                %3259 = sbr.rel (%p3257) target = $region323
              $region320: #{_lambda_.1} parent=315 // loop_body
                %v3263 = vld [vmem:[%s3261] sm:$0xff]
                %3264 = vst [vmem:[%s3262] sm:$0xff] %v3263
                %v3265 = vld [vmem:[%s3261 + $0x8] sm:$0xff]
                %3266 = vst [vmem:[%s3262 + $0x10] sm:$0xff] %v3265
              $region321: #{_lambda_.1} parent=315 // loop_footer
                %s3260 = sadd.s32 1, %s3256
              $region322: #{_lambda_.1} parent=315 // loop_footer_branch
                %3255 = sbr.rel target = $region318
              $region323: #{_lambda_.1} parent=315 // loop_exit
                _
            $region316: #{_lambda_.1} parent=307 // pred_fallthru
              _
          $region308: #{_lambda_.1} parent=303 // pred_fallthru
            _
          %3283 = vnop
        $region304: #{_lambda_.1} parent=199 // pred_fallthru
          _
      $region200: #{_lambda_.1} parent=5 // pred_fallthru
        _
      %p3284 = scmp.le.s32.totalorder 2, %s20
      // Predicated region
      $region339: #{_lambda_.1} parent=5 // pred_check
        %p3285 = pneg %p3284
      $region340: #{_lambda_.1} parent=5 // pred_check_branch
        %3287 = sbr.rel (%p3285) target = $region342
      $region341: #{_lambda_.1} parent=5 // pred_region
        %s3288 = ssub.s32 %s20, 2
        // Predicated region
        $region343: #{_lambda_.1} parent=341 // pred_check
          %p3289 = pneg %p318
        $region344: #{_lambda_.1} parent=341 // pred_check_branch
          %3291 = sbr.rel (%p3289) target = $region346
        $region345: #{_lambda_.1} parent=341 // pred_region
          %s3292 = sand.u32 %s303, 1
          %s3293 = sand.u32 %s303, 1
          %s3294 = smul.addr %s3293, 64
          %s3295 = scalar_lea.vmem [#allocation8], %s3294
        $region346: #{_lambda_.1} parent=341 // pred_fallthru
          _
        // Predicated region
        $region347: #{_lambda_.1} parent=341 // pred_check
          %p3296 = pneg %p344
        $region348: #{_lambda_.1} parent=341 // pred_check_branch
          %3298 = sbr.rel (%p3296) target = $region350
        $region349: #{_lambda_.1} parent=341 // pred_region
          %s3299 = sand.u32 %s329, 1
          %s3300 = sand.u32 %s329, 1
          %s3301 = smul.addr %s3300, 16
          %s3302 = scalar_lea.vmem [#allocation9], %s3301
        $region350: #{_lambda_.1} parent=341 // pred_fallthru
          _
        // Predicated region
        $region351: #{_lambda_.1} parent=341 // pred_check
          %p3303 = pneg %p370
        $region352: #{_lambda_.1} parent=341 // pred_check_branch
          %3305 = sbr.rel (%p3303) target = $region354
        $region353: #{_lambda_.1} parent=341 // pred_region
          %s3306 = sand.u32 %s355, 1
          %s3307 = sand.u32 %s355, 1
          %s3308 = smul.addr %s3307, 16
          %s3309 = scalar_lea.vmem [#allocation10], %s3308
        $region354: #{_lambda_.1} parent=341 // pred_fallthru
          _
      $region342: #{_lambda_.1} parent=5 // pred_fallthru
        _
    $region6: #{_lambda_.1} parent=1 // loop_footer
      %s24 = sadd.s32 1, %s20
    $region7: #{_lambda_.1} parent=1 // loop_footer_branch
      %19 = sbr.rel target = $region3
    $region8: #{_lambda_.1} parent=1 // loop_exit
      _

</llo_original>
